<compile_context>
chip_gen: v6e
topology: v6e:2x2x1
jax: 0.10.0
libtpu: 0.0.40
codegen_flags: <defaults>
</compile_context>

<pallas_src>
import math
from functools import partial

import jax
import jax.numpy as jnp
from jax.experimental import pallas as pl
from jax.experimental.pallas import tpu as pltpu  # noqa: F401  (TPU backend)

# ----------------------- model hyper-parameters (small) -----------------------
NUM_TOKEN = 32    # vocab size
NUM_INPUT = 32    # d_model
NUM_HEAD = 4
NUM_HIDDEN = 64   # FFN hidden
NUM_LAYERS = 2
SEQ = 8
BATCH = 2
HEAD_DIM = NUM_INPUT // NUM_HEAD
LN_EPS = 1e-5
NEG_BIG = -1e30   # finite "minus infinity" for the attention mask


# ------------------------------- Pallas kernel --------------------------------
def _layernorm(x, g, b):
    mu = jnp.mean(x, axis=-1, keepdims=True)
    var = jnp.mean((x - mu) ** 2, axis=-1, keepdims=True)
    return (x - mu) * jax.lax.rsqrt(var + LN_EPS) * g + b


def fused_transformer_kernel(ids_ref, pe_ref, emb_ref, mask_ref,
                             wqkv_ref, bqkv_ref, wo_ref, bo_ref,
                             ln1g_ref, ln1b_ref, ln2g_ref, ln2b_ref,
                             w1_ref, b1_ref, w2_ref, b2_ref,
                             dec_w_ref, dec_b_ref,
                             out_ref,
                             *, n_layers, n_head, head_dim, d_model, vocab):
    """Whole forward pass in one grid-less invocation.

    Token rows are ordered r = s * batch + b (seq-major), so the (S, B, V)
    output is a plain reshape on the host. All per-layer weights are stacked
    with a leading layer axis and indexed with a static Python layer index.
    """
    n_tok = ids_ref.shape[0]

    # ---- embedding (one-hot matmul), *sqrt(D), positional encoding ----
    ids = ids_ref[...]                                               # (N, 1) int32
    lanes = jax.lax.broadcasted_iota(jnp.int32, (n_tok, vocab), 1)
    onehot = jnp.where(ids == lanes, 1.0, 0.0).astype(jnp.float32)   # (N, V)
    x = jnp.dot(onehot, emb_ref[...], preferred_element_type=jnp.float32)
    x = x * math.sqrt(d_model) + pe_ref[...]                         # (N, D)

    # layer-invariant additive mask: 0 where attend allowed, -1e30 otherwise
    bias = mask_ref[...]                                             # (N, N)

    # ---- unrolled transformer encoder layers (post-norm, ReLU FFN) ----
    for l in range(n_layers):
        # fused QKV projection: one (N, D) @ (D, 3*H*Dh) matmul.
        # Q columns/bias already carry the 1/sqrt(head_dim) scale (folded at init).
        qkv = jnp.dot(x, wqkv_ref[l], preferred_element_type=jnp.float32)
        qkv = qkv + bqkv_ref[l]                                      # (N, 3D)

        ctx_parts = []
        for h in range(n_head):
            q_h = qkv[:, h * head_dim:(h + 1) * head_dim]                       # (N, Dh)
            k_h = qkv[:, (n_head + h) * head_dim:(n_head + h + 1) * head_dim]
            v_h = qkv[:, (2 * n_head + h) * head_dim:(2 * n_head + h + 1) * head_dim]

            # scores = q @ k^T (contract last dims), plus causal/same-seq bias
            s = jax.lax.dot_general(q_h, k_h, (((1,), (1,)), ((), ())),
                                    preferred_element_type=jnp.float32)         # (N, N)
            s = s + bias
            s = s - jnp.max(s, axis=-1, keepdims=True)
            p = jnp.exp(s)
            p = p * pl.reciprocal(jnp.sum(p, axis=-1, keepdims=True), approx=True)
            ctx_parts.append(jnp.dot(p, v_h, preferred_element_type=jnp.float32))  # (N, Dh)

        # concat heads along lanes -> one fused output projection (N,D)@(D,D)
        ctx = jnp.concatenate(ctx_parts, axis=-1)                    # (N, D)
        attn = jnp.dot(ctx, wo_ref[l], preferred_element_type=jnp.float32) + bo_ref[l]

        # post-norm residual block 1 (dropout = identity in eval)
        h1 = _layernorm(x + attn, ln1g_ref[l], ln1b_ref[l])

        # feed-forward (ReLU)
        ff = jnp.dot(h1, w1_ref[l], preferred_element_type=jnp.float32) + b1_ref[l]
        ff = jnp.maximum(ff, 0.0)
        ff = jnp.dot(ff, w2_ref[l], preferred_element_type=jnp.float32) + b2_ref[l]

        # post-norm residual block 2
        x = _layernorm(h1 + ff, ln2g_ref[l], ln2b_ref[l])

    # ---- decoder Linear ----
    out_ref[...] = (jnp.dot(x, dec_w_ref[...], preferred_element_type=jnp.float32)
                    + dec_b_ref[...])


# -------------------------------- wrapper --------------------------------------
def fused_transformer(ids, pe_x, mask_bias, params):
    """ids: (N, 1) int32, pe_x: (N, D) f32, mask_bias: (N, N) f32 -> (N, V) logits."""
    N = ids.shape[0]
    kernel = partial(fused_transformer_kernel,
                     n_layers=NUM_LAYERS, n_head=NUM_HEAD, head_dim=HEAD_DIM,
                     d_model=NUM_INPUT, vocab=NUM_TOKEN)
    # Grid-less call: every operand is a whole-array VMEM block (total < 0.1 MiB),
    # so there is no pipeline / per-layer DMA overhead at all.
    return pl.pallas_call(
        kernel,
        out_shape=jax.ShapeDtypeStruct((N, NUM_TOKEN), jnp.float32),
    )(ids, pe_x, params["emb"], mask_bias,
      params["wqkv"], params["bqkv"], params["wo"], params["bo"],
      params["ln1g"], params["ln1b"], params["ln2g"], params["ln2b"],
      params["w1"], params["b1"], params["w2"], params["b2"],
      params["dec_w"], params["dec_b"])


def make_positional_encoding(max_len, d_model):
    position = jnp.arange(max_len, dtype=jnp.float32)[:, None]
    denominator = jnp.exp(jnp.arange(0, d_model, 2, dtype=jnp.float32)
                          * (-math.log(10000.0) / d_model))
    pe = jnp.zeros((max_len, d_model), dtype=jnp.float32)
    pe = pe.at[:, 0::2].set(jnp.sin(position * denominator))
    pe = pe.at[:, 1::2].set(jnp.cos(position * denominator))
    return pe                                                     # (max_len, d_model)


def init_params(key):
    D, V, Dh, F, L = NUM_INPUT, NUM_TOKEN, HEAD_DIM, NUM_HIDDEN, NUM_LAYERS
    keys = jax.random.split(key, 2 + 4 * L)
    it = iter(keys)

    # nn.Embedding / nn.Linear decoder (init_weights: uniform(-0.1, 0.1), bias 0)
    emb = jax.random.uniform(next(it), (V, D), minval=-0.1, maxval=0.1, dtype=jnp.float32)
    dec_w = jax.random.uniform(next(it), (V, D), minval=-0.1, maxval=0.1, dtype=jnp.float32)

    scale = 1.0 / math.sqrt(Dh)
    stacks = {k: [] for k in ("wqkv", "bqkv", "wo", "bo", "ln1g", "ln1b",
                              "ln2g", "ln2b", "w1", "b1", "w2", "b2")}
    for _ in range(L):
        # in-proj in "x @ W" layout (D, 3D); columns [Q | K | V], heads contiguous.
        w_in = jax.random.normal(next(it), (D, 3 * D), dtype=jnp.float32) * 0.05
        w_in = w_in.at[:, :D].multiply(scale)     # fold 1/sqrt(Dh) into Q columns
        b_in = jnp.zeros((1, 3 * D), jnp.float32)  # (Q part would be scaled too; zeros)
        stacks["wqkv"].append(w_in)
        stacks["bqkv"].append(b_in)

        # out-proj in "ctx @ W" layout (D, D); rows grouped by head.
        stacks["wo"].append(jax.random.normal(next(it), (D, D), dtype=jnp.float32) * 0.05)
        stacks["bo"].append(jnp.zeros((1, D), jnp.float32))

        stacks["ln1g"].append(jnp.ones((1, D), jnp.float32))
        stacks["ln1b"].append(jnp.zeros((1, D), jnp.float32))
        stacks["ln2g"].append(jnp.ones((1, D), jnp.float32))
        stacks["ln2b"].append(jnp.zeros((1, D), jnp.float32))

        stacks["w1"].append(jax.random.normal(next(it), (D, F), dtype=jnp.float32) * 0.05)
        stacks["b1"].append(jnp.zeros((1, F), jnp.float32))
        stacks["w2"].append(jax.random.normal(next(it), (F, D), dtype=jnp.float32) * 0.05)
        stacks["b2"].append(jnp.zeros((1, D), jnp.float32))

    params = {k: jnp.stack(v) for k, v in stacks.items()}
    params["emb"] = emb
    params["dec_w"] = dec_w.T                     # (D, V) for x @ W
    params["dec_b"] = jnp.zeros((1, V), jnp.float32)
    return params


def transformer_model_forward(src, params, pe_table):
    """src: (S, B) int32 -> logits (S, B, NUM_TOKEN), like the PyTorch module."""
    S, B = src.shape
    N = S * B
    ids = src.reshape(N, 1).astype(jnp.int32)          # rows r = s*B + b (seq-major)
    pe_x = jnp.repeat(pe_table[:S], B, axis=0)         # (N, D): pe[s] for each row

    # layer-invariant additive attention mask (causal + same-sequence), finite.
    r = jnp.arange(N, dtype=jnp.int32)
    batch_id = r % B
    pos_id = r // B
    allowed = (batch_id[:, None] == batch_id[None, :]) & (pos_id[None, :] <= pos_id[:, None])
    mask_bias = jnp.where(allowed, 0.0, NEG_BIG).astype(jnp.float32)   # (N, N)

    logits = fused_transformer(ids, pe_x, mask_bias, params)  # (N, V), one kernel
    return logits.reshape(S, B, NUM_TOKEN)                     # no transpose needed


# ----------------------------------- main --------------------------------------
if __name__ == "__main__":
    key = jax.random.PRNGKey(0)
    k_param, k_src = jax.random.split(key)

    params = init_params(k_param)
    pe_table = make_positional_encoding(max_len=5000, d_model=NUM_INPUT)

    src = jax.random.randint(k_src, (SEQ, BATCH), 0, NUM_TOKEN, dtype=jnp.int32)

    forward = jax.jit(transformer_model_forward)
    out = forward(src, params, pe_table)
    out = jax.block_until_ready(out)
    assert out.shape == (SEQ, BATCH, NUM_TOKEN)
    assert bool(jnp.all(jnp.isfinite(out)))
    print("KERNEL_OK")
</pallas_src>

<mosaic_0001>
module attributes {stable_mosaic.version = 11 : i64} {
  func.func @fused_transformer_kernel(%arg0: memref<16x1xi32, #tpu.memory_space<vmem>>, %arg1: memref<16x32xf32, #tpu.memory_space<vmem>>, %arg2: memref<32x32xf32, #tpu.memory_space<vmem>>, %arg3: memref<16x16xf32, #tpu.memory_space<vmem>>, %arg4: memref<2x32x96xf32, #tpu.memory_space<vmem>>, %arg5: memref<2x1x96xf32, #tpu.memory_space<vmem>>, %arg6: memref<2x32x32xf32, #tpu.memory_space<vmem>>, %arg7: memref<2x1x32xf32, #tpu.memory_space<vmem>>, %arg8: memref<2x1x32xf32, #tpu.memory_space<vmem>>, %arg9: memref<2x1x32xf32, #tpu.memory_space<vmem>>, %arg10: memref<2x1x32xf32, #tpu.memory_space<vmem>>, %arg11: memref<2x1x32xf32, #tpu.memory_space<vmem>>, %arg12: memref<2x32x64xf32, #tpu.memory_space<vmem>>, %arg13: memref<2x1x64xf32, #tpu.memory_space<vmem>>, %arg14: memref<2x64x32xf32, #tpu.memory_space<vmem>>, %arg15: memref<2x1x32xf32, #tpu.memory_space<vmem>>, %arg16: memref<32x32xf32, #tpu.memory_space<vmem>>, %arg17: memref<1x32xf32, #tpu.memory_space<vmem>>, %arg18: memref<16x32xf32, #tpu.memory_space<vmem>>) attributes {dimension_semantics = [], scalar_prefetch = 0 : i64, scratch_operands = 0 : i64, tpu.core_type = #tpu.core_type<tc>} {
    %c0 = arith.constant 0 : index
    %c0_0 = arith.constant 0 : index
    %0 = vector.load %arg0[%c0, %c0_0] : memref<16x1xi32, #tpu.memory_space<vmem>>, vector<16x1xi32>
    %1 = tpu.iota {dimensions = array<i32: 1>} : vector<16x32xi32>
    %2 = vector.broadcast %0 : vector<16x1xi32> to vector<16x32xi32>
    %3 = arith.cmpi eq, %2, %1 : vector<16x32xi32>
    %cst = arith.constant 1.000000e+00 : f32
    %cst_1 = arith.constant 0.000000e+00 : f32
    %4 = vector.broadcast %cst : f32 to vector<16x32xf32>
    %5 = vector.broadcast %cst_1 : f32 to vector<16x32xf32>
    %6 = arith.select %3, %4, %5 : vector<16x32xi1>, vector<16x32xf32>
    %c0_2 = arith.constant 0 : index
    %c0_3 = arith.constant 0 : index
    %7 = vector.load %arg2[%c0_2, %c0_3] : memref<32x32xf32, #tpu.memory_space<vmem>>, vector<32x32xf32>
    %cst_4 = arith.constant dense<0.000000e+00> : vector<16x32xf32>
    %8 = tpu.matmul %6, %7, %cst_4 {dimension_numbers = #tpu.dot_dimension_numbers<[1], [0], [0], [1], [0, 0, 1, 1], [], []>} : vector<16x32xf32>, vector<32x32xf32>, vector<16x32xf32> -> vector<16x32xf32>
    %cst_5 = arith.constant 5.65685415 : f32
    %9 = vector.broadcast %cst_5 : f32 to vector<16x32xf32>
    %10 = arith.mulf %8, %9 : vector<16x32xf32>
    %c0_6 = arith.constant 0 : index
    %c0_7 = arith.constant 0 : index
    %11 = vector.load %arg1[%c0_6, %c0_7] : memref<16x32xf32, #tpu.memory_space<vmem>>, vector<16x32xf32>
    %12 = arith.addf %10, %11 : vector<16x32xf32>
    %c0_8 = arith.constant 0 : index
    %c0_9 = arith.constant 0 : index
    %13 = vector.load %arg3[%c0_8, %c0_9] : memref<16x16xf32, #tpu.memory_space<vmem>>, vector<16x16xf32>
    %c0_10 = arith.constant 0 : index
    %c0_11 = arith.constant 0 : index
    %c0_12 = arith.constant 0 : index
    %14 = vector.load %arg4[%c0_10, %c0_11, %c0_12] : memref<2x32x96xf32, #tpu.memory_space<vmem>>, vector<1x32x96xf32>
    %15 = vector.shape_cast %14 : vector<1x32x96xf32> to vector<32x96xf32>
    %cst_13 = arith.constant dense<0.000000e+00> : vector<16x96xf32>
    %16 = tpu.matmul %12, %15, %cst_13 {dimension_numbers = #tpu.dot_dimension_numbers<[1], [0], [0], [1], [0, 0, 1, 1], [], []>} : vector<16x32xf32>, vector<32x96xf32>, vector<16x96xf32> -> vector<16x96xf32>
    %c0_14 = arith.constant 0 : index
    %c0_15 = arith.constant 0 : index
    %c0_16 = arith.constant 0 : index
    %17 = vector.load %arg5[%c0_14, %c0_15, %c0_16] : memref<2x1x96xf32, #tpu.memory_space<vmem>>, vector<1x1x96xf32>
    %18 = vector.shape_cast %17 : vector<1x1x96xf32> to vector<1x96xf32>
    %19 = vector.broadcast %18 : vector<1x96xf32> to vector<16x96xf32>
    %20 = arith.addf %16, %19 : vector<16x96xf32>
    %21 = vector.extract_strided_slice %20 {offsets = [0, 0], sizes = [16, 8], strides = [1, 1]} : vector<16x96xf32> to vector<16x8xf32>
    %22 = vector.extract_strided_slice %20 {offsets = [0, 32], sizes = [16, 8], strides = [1, 1]} : vector<16x96xf32> to vector<16x8xf32>
    %23 = vector.extract_strided_slice %20 {offsets = [0, 64], sizes = [16, 8], strides = [1, 1]} : vector<16x96xf32> to vector<16x8xf32>
    %cst_17 = arith.constant dense<0.000000e+00> : vector<16x16xf32>
    %24 = tpu.matmul %21, %22, %cst_17 {dimension_numbers = #tpu.dot_dimension_numbers<[1], [1], [0], [0], [0, 0, 1, 0], [], []>} : vector<16x8xf32>, vector<16x8xf32>, vector<16x16xf32> -> vector<16x16xf32>
    %25 = arith.addf %24, %13 : vector<16x16xf32>
    %cst_18 = arith.constant dense<0xFF800000> : vector<16xf32>
    %26 = vector.multi_reduction <maximumf>, %25, %cst_18 [1] : vector<16x16xf32> to vector<16xf32>
    %27 = vector.shape_cast %26 : vector<16xf32> to vector<16x1xf32>
    %28 = vector.broadcast %27 : vector<16x1xf32> to vector<16x16xf32>
    %29 = arith.subf %25, %28 : vector<16x16xf32>
    %30 = math.exp %29 : vector<16x16xf32>
    %cst_19 = arith.constant dense<0.000000e+00> : vector<16xf32>
    %31 = vector.multi_reduction <add>, %30, %cst_19 [1] : vector<16x16xf32> to vector<16xf32>
    %32 = vector.shape_cast %31 : vector<16xf32> to vector<16x1xf32>
    %33 = tpu.reciprocal %32 {approx = true} : vector<16x1xf32> -> vector<16x1xf32>
    %34 = vector.broadcast %33 : vector<16x1xf32> to vector<16x16xf32>
    %35 = arith.mulf %30, %34 : vector<16x16xf32>
    %cst_20 = arith.constant dense<0.000000e+00> : vector<16x8xf32>
    %36 = tpu.matmul %35, %23, %cst_20 {dimension_numbers = #tpu.dot_dimension_numbers<[1], [0], [0], [1], [0, 0, 1, 1], [], []>} : vector<16x16xf32>, vector<16x8xf32>, vector<16x8xf32> -> vector<16x8xf32>
    %37 = vector.extract_strided_slice %20 {offsets = [0, 8], sizes = [16, 8], strides = [1, 1]} : vector<16x96xf32> to vector<16x8xf32>
    %38 = vector.extract_strided_slice %20 {offsets = [0, 40], sizes = [16, 8], strides = [1, 1]} : vector<16x96xf32> to vector<16x8xf32>
    %39 = vector.extract_strided_slice %20 {offsets = [0, 72], sizes = [16, 8], strides = [1, 1]} : vector<16x96xf32> to vector<16x8xf32>
    %cst_21 = arith.constant dense<0.000000e+00> : vector<16x16xf32>
    %40 = tpu.matmul %37, %38, %cst_21 {dimension_numbers = #tpu.dot_dimension_numbers<[1], [1], [0], [0], [0, 0, 1, 0], [], []>} : vector<16x8xf32>, vector<16x8xf32>, vector<16x16xf32> -> vector<16x16xf32>
    %41 = arith.addf %40, %13 : vector<16x16xf32>
    %cst_22 = arith.constant dense<0xFF800000> : vector<16xf32>
    %42 = vector.multi_reduction <maximumf>, %41, %cst_22 [1] : vector<16x16xf32> to vector<16xf32>
    %43 = vector.shape_cast %42 : vector<16xf32> to vector<16x1xf32>
    %44 = vector.broadcast %43 : vector<16x1xf32> to vector<16x16xf32>
    %45 = arith.subf %41, %44 : vector<16x16xf32>
    %46 = math.exp %45 : vector<16x16xf32>
    %cst_23 = arith.constant dense<0.000000e+00> : vector<16xf32>
    %47 = vector.multi_reduction <add>, %46, %cst_23 [1] : vector<16x16xf32> to vector<16xf32>
    %48 = vector.shape_cast %47 : vector<16xf32> to vector<16x1xf32>
    %49 = tpu.reciprocal %48 {approx = true} : vector<16x1xf32> -> vector<16x1xf32>
    %50 = vector.broadcast %49 : vector<16x1xf32> to vector<16x16xf32>
    %51 = arith.mulf %46, %50 : vector<16x16xf32>
    %cst_24 = arith.constant dense<0.000000e+00> : vector<16x8xf32>
    %52 = tpu.matmul %51, %39, %cst_24 {dimension_numbers = #tpu.dot_dimension_numbers<[1], [0], [0], [1], [0, 0, 1, 1], [], []>} : vector<16x16xf32>, vector<16x8xf32>, vector<16x8xf32> -> vector<16x8xf32>
    %53 = vector.extract_strided_slice %20 {offsets = [0, 16], sizes = [16, 8], strides = [1, 1]} : vector<16x96xf32> to vector<16x8xf32>
    %54 = vector.extract_strided_slice %20 {offsets = [0, 48], sizes = [16, 8], strides = [1, 1]} : vector<16x96xf32> to vector<16x8xf32>
    %55 = vector.extract_strided_slice %20 {offsets = [0, 80], sizes = [16, 8], strides = [1, 1]} : vector<16x96xf32> to vector<16x8xf32>
    %cst_25 = arith.constant dense<0.000000e+00> : vector<16x16xf32>
    %56 = tpu.matmul %53, %54, %cst_25 {dimension_numbers = #tpu.dot_dimension_numbers<[1], [1], [0], [0], [0, 0, 1, 0], [], []>} : vector<16x8xf32>, vector<16x8xf32>, vector<16x16xf32> -> vector<16x16xf32>
    %57 = arith.addf %56, %13 : vector<16x16xf32>
    %cst_26 = arith.constant dense<0xFF800000> : vector<16xf32>
    %58 = vector.multi_reduction <maximumf>, %57, %cst_26 [1] : vector<16x16xf32> to vector<16xf32>
    %59 = vector.shape_cast %58 : vector<16xf32> to vector<16x1xf32>
    %60 = vector.broadcast %59 : vector<16x1xf32> to vector<16x16xf32>
    %61 = arith.subf %57, %60 : vector<16x16xf32>
    %62 = math.exp %61 : vector<16x16xf32>
    %cst_27 = arith.constant dense<0.000000e+00> : vector<16xf32>
    %63 = vector.multi_reduction <add>, %62, %cst_27 [1] : vector<16x16xf32> to vector<16xf32>
    %64 = vector.shape_cast %63 : vector<16xf32> to vector<16x1xf32>
    %65 = tpu.reciprocal %64 {approx = true} : vector<16x1xf32> -> vector<16x1xf32>
    %66 = vector.broadcast %65 : vector<16x1xf32> to vector<16x16xf32>
    %67 = arith.mulf %62, %66 : vector<16x16xf32>
    %cst_28 = arith.constant dense<0.000000e+00> : vector<16x8xf32>
    %68 = tpu.matmul %67, %55, %cst_28 {dimension_numbers = #tpu.dot_dimension_numbers<[1], [0], [0], [1], [0, 0, 1, 1], [], []>} : vector<16x16xf32>, vector<16x8xf32>, vector<16x8xf32> -> vector<16x8xf32>
    %69 = vector.extract_strided_slice %20 {offsets = [0, 24], sizes = [16, 8], strides = [1, 1]} : vector<16x96xf32> to vector<16x8xf32>
    %70 = vector.extract_strided_slice %20 {offsets = [0, 56], sizes = [16, 8], strides = [1, 1]} : vector<16x96xf32> to vector<16x8xf32>
    %71 = vector.extract_strided_slice %20 {offsets = [0, 88], sizes = [16, 8], strides = [1, 1]} : vector<16x96xf32> to vector<16x8xf32>
    %cst_29 = arith.constant dense<0.000000e+00> : vector<16x16xf32>
    %72 = tpu.matmul %69, %70, %cst_29 {dimension_numbers = #tpu.dot_dimension_numbers<[1], [1], [0], [0], [0, 0, 1, 0], [], []>} : vector<16x8xf32>, vector<16x8xf32>, vector<16x16xf32> -> vector<16x16xf32>
    %73 = arith.addf %72, %13 : vector<16x16xf32>
    %cst_30 = arith.constant dense<0xFF800000> : vector<16xf32>
    %74 = vector.multi_reduction <maximumf>, %73, %cst_30 [1] : vector<16x16xf32> to vector<16xf32>
    %75 = vector.shape_cast %74 : vector<16xf32> to vector<16x1xf32>
    %76 = vector.broadcast %75 : vector<16x1xf32> to vector<16x16xf32>
    %77 = arith.subf %73, %76 : vector<16x16xf32>
    %78 = math.exp %77 : vector<16x16xf32>
    %cst_31 = arith.constant dense<0.000000e+00> : vector<16xf32>
    %79 = vector.multi_reduction <add>, %78, %cst_31 [1] : vector<16x16xf32> to vector<16xf32>
    %80 = vector.shape_cast %79 : vector<16xf32> to vector<16x1xf32>
    %81 = tpu.reciprocal %80 {approx = true} : vector<16x1xf32> -> vector<16x1xf32>
    %82 = vector.broadcast %81 : vector<16x1xf32> to vector<16x16xf32>
    %83 = arith.mulf %78, %82 : vector<16x16xf32>
    %cst_32 = arith.constant dense<0.000000e+00> : vector<16x8xf32>
    %84 = tpu.matmul %83, %71, %cst_32 {dimension_numbers = #tpu.dot_dimension_numbers<[1], [0], [0], [1], [0, 0, 1, 1], [], []>} : vector<16x16xf32>, vector<16x8xf32>, vector<16x8xf32> -> vector<16x8xf32>
    %85 = tpu.concatenate %36, %52, %68, %84 in 1 : vector<16x8xf32>, vector<16x8xf32>, vector<16x8xf32>, vector<16x8xf32> -> vector<16x32xf32>
    %c0_33 = arith.constant 0 : index
    %c0_34 = arith.constant 0 : index
    %c0_35 = arith.constant 0 : index
    %86 = vector.load %arg6[%c0_33, %c0_34, %c0_35] : memref<2x32x32xf32, #tpu.memory_space<vmem>>, vector<1x32x32xf32>
    %87 = vector.shape_cast %86 : vector<1x32x32xf32> to vector<32x32xf32>
    %cst_36 = arith.constant dense<0.000000e+00> : vector<16x32xf32>
    %88 = tpu.matmul %85, %87, %cst_36 {dimension_numbers = #tpu.dot_dimension_numbers<[1], [0], [0], [1], [0, 0, 1, 1], [], []>} : vector<16x32xf32>, vector<32x32xf32>, vector<16x32xf32> -> vector<16x32xf32>
    %c0_37 = arith.constant 0 : index
    %c0_38 = arith.constant 0 : index
    %c0_39 = arith.constant 0 : index
    %89 = vector.load %arg7[%c0_37, %c0_38, %c0_39] : memref<2x1x32xf32, #tpu.memory_space<vmem>>, vector<1x1x32xf32>
    %90 = vector.shape_cast %89 : vector<1x1x32xf32> to vector<1x32xf32>
    %91 = vector.broadcast %90 : vector<1x32xf32> to vector<16x32xf32>
    %92 = arith.addf %88, %91 : vector<16x32xf32>
    %93 = arith.addf %12, %92 : vector<16x32xf32>
    %c0_40 = arith.constant 0 : index
    %c0_41 = arith.constant 0 : index
    %c0_42 = arith.constant 0 : index
    %94 = vector.load %arg8[%c0_40, %c0_41, %c0_42] : memref<2x1x32xf32, #tpu.memory_space<vmem>>, vector<1x1x32xf32>
    %95 = vector.shape_cast %94 : vector<1x1x32xf32> to vector<1x32xf32>
    %c0_43 = arith.constant 0 : index
    %c0_44 = arith.constant 0 : index
    %c0_45 = arith.constant 0 : index
    %96 = vector.load %arg9[%c0_43, %c0_44, %c0_45] : memref<2x1x32xf32, #tpu.memory_space<vmem>>, vector<1x1x32xf32>
    %97 = vector.shape_cast %96 : vector<1x1x32xf32> to vector<1x32xf32>
    %cst_46 = arith.constant dense<0.000000e+00> : vector<16xf32>
    %98 = vector.multi_reduction <add>, %93, %cst_46 [1] : vector<16x32xf32> to vector<16xf32>
    %99 = vector.shape_cast %98 : vector<16xf32> to vector<16x1xf32>
    %cst_47 = arith.constant 3.200000e+01 : f32
    %100 = vector.broadcast %cst_47 : f32 to vector<16x1xf32>
    %101 = arith.divf %99, %100 : vector<16x1xf32>
    %102 = vector.broadcast %101 : vector<16x1xf32> to vector<16x32xf32>
    %103 = arith.subf %93, %102 : vector<16x32xf32>
    %104 = arith.mulf %103, %103 : vector<16x32xf32>
    %cst_48 = arith.constant dense<0.000000e+00> : vector<16xf32>
    %105 = vector.multi_reduction <add>, %104, %cst_48 [1] : vector<16x32xf32> to vector<16xf32>
    %106 = vector.shape_cast %105 : vector<16xf32> to vector<16x1xf32>
    %cst_49 = arith.constant 3.200000e+01 : f32
    %107 = vector.broadcast %cst_49 : f32 to vector<16x1xf32>
    %108 = arith.divf %106, %107 : vector<16x1xf32>
    %109 = vector.broadcast %101 : vector<16x1xf32> to vector<16x32xf32>
    %110 = arith.subf %93, %109 : vector<16x32xf32>
    %cst_50 = arith.constant 9.99999974E-6 : f32
    %111 = vector.broadcast %cst_50 : f32 to vector<16x1xf32>
    %112 = arith.addf %108, %111 : vector<16x1xf32>
    %113 = math.rsqrt %112 : vector<16x1xf32>
    %114 = vector.broadcast %113 : vector<16x1xf32> to vector<16x32xf32>
    %115 = arith.mulf %110, %114 : vector<16x32xf32>
    %116 = vector.broadcast %95 : vector<1x32xf32> to vector<16x32xf32>
    %117 = arith.mulf %115, %116 : vector<16x32xf32>
    %118 = vector.broadcast %97 : vector<1x32xf32> to vector<16x32xf32>
    %119 = arith.addf %117, %118 : vector<16x32xf32>
    %c0_51 = arith.constant 0 : index
    %c0_52 = arith.constant 0 : index
    %c0_53 = arith.constant 0 : index
    %120 = vector.load %arg12[%c0_51, %c0_52, %c0_53] : memref<2x32x64xf32, #tpu.memory_space<vmem>>, vector<1x32x64xf32>
    %121 = vector.shape_cast %120 : vector<1x32x64xf32> to vector<32x64xf32>
    %cst_54 = arith.constant dense<0.000000e+00> : vector<16x64xf32>
    %122 = tpu.matmul %119, %121, %cst_54 {dimension_numbers = #tpu.dot_dimension_numbers<[1], [0], [0], [1], [0, 0, 1, 1], [], []>} : vector<16x32xf32>, vector<32x64xf32>, vector<16x64xf32> -> vector<16x64xf32>
    %c0_55 = arith.constant 0 : index
    %c0_56 = arith.constant 0 : index
    %c0_57 = arith.constant 0 : index
    %123 = vector.load %arg13[%c0_55, %c0_56, %c0_57] : memref<2x1x64xf32, #tpu.memory_space<vmem>>, vector<1x1x64xf32>
    %124 = vector.shape_cast %123 : vector<1x1x64xf32> to vector<1x64xf32>
    %125 = vector.broadcast %124 : vector<1x64xf32> to vector<16x64xf32>
    %126 = arith.addf %122, %125 : vector<16x64xf32>
    %cst_58 = arith.constant 0.000000e+00 : f32
    %127 = vector.broadcast %cst_58 : f32 to vector<16x64xf32>
    %128 = arith.maximumf %126, %127 : vector<16x64xf32>
    %c0_59 = arith.constant 0 : index
    %c0_60 = arith.constant 0 : index
    %c0_61 = arith.constant 0 : index
    %129 = vector.load %arg14[%c0_59, %c0_60, %c0_61] : memref<2x64x32xf32, #tpu.memory_space<vmem>>, vector<1x64x32xf32>
    %130 = vector.shape_cast %129 : vector<1x64x32xf32> to vector<64x32xf32>
    %cst_62 = arith.constant dense<0.000000e+00> : vector<16x32xf32>
    %131 = tpu.matmul %128, %130, %cst_62 {dimension_numbers = #tpu.dot_dimension_numbers<[1], [0], [0], [1], [0, 0, 1, 1], [], []>} : vector<16x64xf32>, vector<64x32xf32>, vector<16x32xf32> -> vector<16x32xf32>
    %c0_63 = arith.constant 0 : index
    %c0_64 = arith.constant 0 : index
    %c0_65 = arith.constant 0 : index
    %132 = vector.load %arg15[%c0_63, %c0_64, %c0_65] : memref<2x1x32xf32, #tpu.memory_space<vmem>>, vector<1x1x32xf32>
    %133 = vector.shape_cast %132 : vector<1x1x32xf32> to vector<1x32xf32>
    %134 = vector.broadcast %133 : vector<1x32xf32> to vector<16x32xf32>
    %135 = arith.addf %131, %134 : vector<16x32xf32>
    %136 = arith.addf %119, %135 : vector<16x32xf32>
    %c0_66 = arith.constant 0 : index
    %c0_67 = arith.constant 0 : index
    %c0_68 = arith.constant 0 : index
    %137 = vector.load %arg10[%c0_66, %c0_67, %c0_68] : memref<2x1x32xf32, #tpu.memory_space<vmem>>, vector<1x1x32xf32>
    %138 = vector.shape_cast %137 : vector<1x1x32xf32> to vector<1x32xf32>
    %c0_69 = arith.constant 0 : index
    %c0_70 = arith.constant 0 : index
    %c0_71 = arith.constant 0 : index
    %139 = vector.load %arg11[%c0_69, %c0_70, %c0_71] : memref<2x1x32xf32, #tpu.memory_space<vmem>>, vector<1x1x32xf32>
    %140 = vector.shape_cast %139 : vector<1x1x32xf32> to vector<1x32xf32>
    %cst_72 = arith.constant dense<0.000000e+00> : vector<16xf32>
    %141 = vector.multi_reduction <add>, %136, %cst_72 [1] : vector<16x32xf32> to vector<16xf32>
    %142 = vector.shape_cast %141 : vector<16xf32> to vector<16x1xf32>
    %cst_73 = arith.constant 3.200000e+01 : f32
    %143 = vector.broadcast %cst_73 : f32 to vector<16x1xf32>
    %144 = arith.divf %142, %143 : vector<16x1xf32>
    %145 = vector.broadcast %144 : vector<16x1xf32> to vector<16x32xf32>
    %146 = arith.subf %136, %145 : vector<16x32xf32>
    %147 = arith.mulf %146, %146 : vector<16x32xf32>
    %cst_74 = arith.constant dense<0.000000e+00> : vector<16xf32>
    %148 = vector.multi_reduction <add>, %147, %cst_74 [1] : vector<16x32xf32> to vector<16xf32>
    %149 = vector.shape_cast %148 : vector<16xf32> to vector<16x1xf32>
    %cst_75 = arith.constant 3.200000e+01 : f32
    %150 = vector.broadcast %cst_75 : f32 to vector<16x1xf32>
    %151 = arith.divf %149, %150 : vector<16x1xf32>
    %152 = vector.broadcast %144 : vector<16x1xf32> to vector<16x32xf32>
    %153 = arith.subf %136, %152 : vector<16x32xf32>
    %cst_76 = arith.constant 9.99999974E-6 : f32
    %154 = vector.broadcast %cst_76 : f32 to vector<16x1xf32>
    %155 = arith.addf %151, %154 : vector<16x1xf32>
    %156 = math.rsqrt %155 : vector<16x1xf32>
    %157 = vector.broadcast %156 : vector<16x1xf32> to vector<16x32xf32>
    %158 = arith.mulf %153, %157 : vector<16x32xf32>
    %159 = vector.broadcast %138 : vector<1x32xf32> to vector<16x32xf32>
    %160 = arith.mulf %158, %159 : vector<16x32xf32>
    %161 = vector.broadcast %140 : vector<1x32xf32> to vector<16x32xf32>
    %162 = arith.addf %160, %161 : vector<16x32xf32>
    %c1 = arith.constant 1 : index
    %c0_77 = arith.constant 0 : index
    %c0_78 = arith.constant 0 : index
    %163 = vector.load %arg4[%c1, %c0_77, %c0_78] : memref<2x32x96xf32, #tpu.memory_space<vmem>>, vector<1x32x96xf32>
    %164 = vector.shape_cast %163 : vector<1x32x96xf32> to vector<32x96xf32>
    %cst_79 = arith.constant dense<0.000000e+00> : vector<16x96xf32>
    %165 = tpu.matmul %162, %164, %cst_79 {dimension_numbers = #tpu.dot_dimension_numbers<[1], [0], [0], [1], [0, 0, 1, 1], [], []>} : vector<16x32xf32>, vector<32x96xf32>, vector<16x96xf32> -> vector<16x96xf32>
    %c1_80 = arith.constant 1 : index
    %c0_81 = arith.constant 0 : index
    %c0_82 = arith.constant 0 : index
    %166 = vector.load %arg5[%c1_80, %c0_81, %c0_82] : memref<2x1x96xf32, #tpu.memory_space<vmem>>, vector<1x1x96xf32>
    %167 = vector.shape_cast %166 : vector<1x1x96xf32> to vector<1x96xf32>
    %168 = vector.broadcast %167 : vector<1x96xf32> to vector<16x96xf32>
    %169 = arith.addf %165, %168 : vector<16x96xf32>
    %170 = vector.extract_strided_slice %169 {offsets = [0, 0], sizes = [16, 8], strides = [1, 1]} : vector<16x96xf32> to vector<16x8xf32>
    %171 = vector.extract_strided_slice %169 {offsets = [0, 32], sizes = [16, 8], strides = [1, 1]} : vector<16x96xf32> to vector<16x8xf32>
    %172 = vector.extract_strided_slice %169 {offsets = [0, 64], sizes = [16, 8], strides = [1, 1]} : vector<16x96xf32> to vector<16x8xf32>
    %cst_83 = arith.constant dense<0.000000e+00> : vector<16x16xf32>
    %173 = tpu.matmul %170, %171, %cst_83 {dimension_numbers = #tpu.dot_dimension_numbers<[1], [1], [0], [0], [0, 0, 1, 0], [], []>} : vector<16x8xf32>, vector<16x8xf32>, vector<16x16xf32> -> vector<16x16xf32>
    %174 = arith.addf %173, %13 : vector<16x16xf32>
    %cst_84 = arith.constant dense<0xFF800000> : vector<16xf32>
    %175 = vector.multi_reduction <maximumf>, %174, %cst_84 [1] : vector<16x16xf32> to vector<16xf32>
    %176 = vector.shape_cast %175 : vector<16xf32> to vector<16x1xf32>
    %177 = vector.broadcast %176 : vector<16x1xf32> to vector<16x16xf32>
    %178 = arith.subf %174, %177 : vector<16x16xf32>
    %179 = math.exp %178 : vector<16x16xf32>
    %cst_85 = arith.constant dense<0.000000e+00> : vector<16xf32>
    %180 = vector.multi_reduction <add>, %179, %cst_85 [1] : vector<16x16xf32> to vector<16xf32>
    %181 = vector.shape_cast %180 : vector<16xf32> to vector<16x1xf32>
    %182 = tpu.reciprocal %181 {approx = true} : vector<16x1xf32> -> vector<16x1xf32>
    %183 = vector.broadcast %182 : vector<16x1xf32> to vector<16x16xf32>
    %184 = arith.mulf %179, %183 : vector<16x16xf32>
    %cst_86 = arith.constant dense<0.000000e+00> : vector<16x8xf32>
    %185 = tpu.matmul %184, %172, %cst_86 {dimension_numbers = #tpu.dot_dimension_numbers<[1], [0], [0], [1], [0, 0, 1, 1], [], []>} : vector<16x16xf32>, vector<16x8xf32>, vector<16x8xf32> -> vector<16x8xf32>
    %186 = vector.extract_strided_slice %169 {offsets = [0, 8], sizes = [16, 8], strides = [1, 1]} : vector<16x96xf32> to vector<16x8xf32>
    %187 = vector.extract_strided_slice %169 {offsets = [0, 40], sizes = [16, 8], strides = [1, 1]} : vector<16x96xf32> to vector<16x8xf32>
    %188 = vector.extract_strided_slice %169 {offsets = [0, 72], sizes = [16, 8], strides = [1, 1]} : vector<16x96xf32> to vector<16x8xf32>
    %cst_87 = arith.constant dense<0.000000e+00> : vector<16x16xf32>
    %189 = tpu.matmul %186, %187, %cst_87 {dimension_numbers = #tpu.dot_dimension_numbers<[1], [1], [0], [0], [0, 0, 1, 0], [], []>} : vector<16x8xf32>, vector<16x8xf32>, vector<16x16xf32> -> vector<16x16xf32>
    %190 = arith.addf %189, %13 : vector<16x16xf32>
    %cst_88 = arith.constant dense<0xFF800000> : vector<16xf32>
    %191 = vector.multi_reduction <maximumf>, %190, %cst_88 [1] : vector<16x16xf32> to vector<16xf32>
    %192 = vector.shape_cast %191 : vector<16xf32> to vector<16x1xf32>
    %193 = vector.broadcast %192 : vector<16x1xf32> to vector<16x16xf32>
    %194 = arith.subf %190, %193 : vector<16x16xf32>
    %195 = math.exp %194 : vector<16x16xf32>
    %cst_89 = arith.constant dense<0.000000e+00> : vector<16xf32>
    %196 = vector.multi_reduction <add>, %195, %cst_89 [1] : vector<16x16xf32> to vector<16xf32>
    %197 = vector.shape_cast %196 : vector<16xf32> to vector<16x1xf32>
    %198 = tpu.reciprocal %197 {approx = true} : vector<16x1xf32> -> vector<16x1xf32>
    %199 = vector.broadcast %198 : vector<16x1xf32> to vector<16x16xf32>
    %200 = arith.mulf %195, %199 : vector<16x16xf32>
    %cst_90 = arith.constant dense<0.000000e+00> : vector<16x8xf32>
    %201 = tpu.matmul %200, %188, %cst_90 {dimension_numbers = #tpu.dot_dimension_numbers<[1], [0], [0], [1], [0, 0, 1, 1], [], []>} : vector<16x16xf32>, vector<16x8xf32>, vector<16x8xf32> -> vector<16x8xf32>
    %202 = vector.extract_strided_slice %169 {offsets = [0, 16], sizes = [16, 8], strides = [1, 1]} : vector<16x96xf32> to vector<16x8xf32>
    %203 = vector.extract_strided_slice %169 {offsets = [0, 48], sizes = [16, 8], strides = [1, 1]} : vector<16x96xf32> to vector<16x8xf32>
    %204 = vector.extract_strided_slice %169 {offsets = [0, 80], sizes = [16, 8], strides = [1, 1]} : vector<16x96xf32> to vector<16x8xf32>
    %cst_91 = arith.constant dense<0.000000e+00> : vector<16x16xf32>
    %205 = tpu.matmul %202, %203, %cst_91 {dimension_numbers = #tpu.dot_dimension_numbers<[1], [1], [0], [0], [0, 0, 1, 0], [], []>} : vector<16x8xf32>, vector<16x8xf32>, vector<16x16xf32> -> vector<16x16xf32>
    %206 = arith.addf %205, %13 : vector<16x16xf32>
    %cst_92 = arith.constant dense<0xFF800000> : vector<16xf32>
    %207 = vector.multi_reduction <maximumf>, %206, %cst_92 [1] : vector<16x16xf32> to vector<16xf32>
    %208 = vector.shape_cast %207 : vector<16xf32> to vector<16x1xf32>
    %209 = vector.broadcast %208 : vector<16x1xf32> to vector<16x16xf32>
    %210 = arith.subf %206, %209 : vector<16x16xf32>
    %211 = math.exp %210 : vector<16x16xf32>
    %cst_93 = arith.constant dense<0.000000e+00> : vector<16xf32>
    %212 = vector.multi_reduction <add>, %211, %cst_93 [1] : vector<16x16xf32> to vector<16xf32>
    %213 = vector.shape_cast %212 : vector<16xf32> to vector<16x1xf32>
    %214 = tpu.reciprocal %213 {approx = true} : vector<16x1xf32> -> vector<16x1xf32>
    %215 = vector.broadcast %214 : vector<16x1xf32> to vector<16x16xf32>
    %216 = arith.mulf %211, %215 : vector<16x16xf32>
    %cst_94 = arith.constant dense<0.000000e+00> : vector<16x8xf32>
    %217 = tpu.matmul %216, %204, %cst_94 {dimension_numbers = #tpu.dot_dimension_numbers<[1], [0], [0], [1], [0, 0, 1, 1], [], []>} : vector<16x16xf32>, vector<16x8xf32>, vector<16x8xf32> -> vector<16x8xf32>
    %218 = vector.extract_strided_slice %169 {offsets = [0, 24], sizes = [16, 8], strides = [1, 1]} : vector<16x96xf32> to vector<16x8xf32>
    %219 = vector.extract_strided_slice %169 {offsets = [0, 56], sizes = [16, 8], strides = [1, 1]} : vector<16x96xf32> to vector<16x8xf32>
    %220 = vector.extract_strided_slice %169 {offsets = [0, 88], sizes = [16, 8], strides = [1, 1]} : vector<16x96xf32> to vector<16x8xf32>
    %cst_95 = arith.constant dense<0.000000e+00> : vector<16x16xf32>
    %221 = tpu.matmul %218, %219, %cst_95 {dimension_numbers = #tpu.dot_dimension_numbers<[1], [1], [0], [0], [0, 0, 1, 0], [], []>} : vector<16x8xf32>, vector<16x8xf32>, vector<16x16xf32> -> vector<16x16xf32>
    %222 = arith.addf %221, %13 : vector<16x16xf32>
    %cst_96 = arith.constant dense<0xFF800000> : vector<16xf32>
    %223 = vector.multi_reduction <maximumf>, %222, %cst_96 [1] : vector<16x16xf32> to vector<16xf32>
    %224 = vector.shape_cast %223 : vector<16xf32> to vector<16x1xf32>
    %225 = vector.broadcast %224 : vector<16x1xf32> to vector<16x16xf32>
    %226 = arith.subf %222, %225 : vector<16x16xf32>
    %227 = math.exp %226 : vector<16x16xf32>
    %cst_97 = arith.constant dense<0.000000e+00> : vector<16xf32>
    %228 = vector.multi_reduction <add>, %227, %cst_97 [1] : vector<16x16xf32> to vector<16xf32>
    %229 = vector.shape_cast %228 : vector<16xf32> to vector<16x1xf32>
    %230 = tpu.reciprocal %229 {approx = true} : vector<16x1xf32> -> vector<16x1xf32>
    %231 = vector.broadcast %230 : vector<16x1xf32> to vector<16x16xf32>
    %232 = arith.mulf %227, %231 : vector<16x16xf32>
    %cst_98 = arith.constant dense<0.000000e+00> : vector<16x8xf32>
    %233 = tpu.matmul %232, %220, %cst_98 {dimension_numbers = #tpu.dot_dimension_numbers<[1], [0], [0], [1], [0, 0, 1, 1], [], []>} : vector<16x16xf32>, vector<16x8xf32>, vector<16x8xf32> -> vector<16x8xf32>
    %234 = tpu.concatenate %185, %201, %217, %233 in 1 : vector<16x8xf32>, vector<16x8xf32>, vector<16x8xf32>, vector<16x8xf32> -> vector<16x32xf32>
    %c1_99 = arith.constant 1 : index
    %c0_100 = arith.constant 0 : index
    %c0_101 = arith.constant 0 : index
    %235 = vector.load %arg6[%c1_99, %c0_100, %c0_101] : memref<2x32x32xf32, #tpu.memory_space<vmem>>, vector<1x32x32xf32>
    %236 = vector.shape_cast %235 : vector<1x32x32xf32> to vector<32x32xf32>
    %cst_102 = arith.constant dense<0.000000e+00> : vector<16x32xf32>
    %237 = tpu.matmul %234, %236, %cst_102 {dimension_numbers = #tpu.dot_dimension_numbers<[1], [0], [0], [1], [0, 0, 1, 1], [], []>} : vector<16x32xf32>, vector<32x32xf32>, vector<16x32xf32> -> vector<16x32xf32>
    %c1_103 = arith.constant 1 : index
    %c0_104 = arith.constant 0 : index
    %c0_105 = arith.constant 0 : index
    %238 = vector.load %arg7[%c1_103, %c0_104, %c0_105] : memref<2x1x32xf32, #tpu.memory_space<vmem>>, vector<1x1x32xf32>
    %239 = vector.shape_cast %238 : vector<1x1x32xf32> to vector<1x32xf32>
    %240 = vector.broadcast %239 : vector<1x32xf32> to vector<16x32xf32>
    %241 = arith.addf %237, %240 : vector<16x32xf32>
    %242 = arith.addf %162, %241 : vector<16x32xf32>
    %c1_106 = arith.constant 1 : index
    %c0_107 = arith.constant 0 : index
    %c0_108 = arith.constant 0 : index
    %243 = vector.load %arg8[%c1_106, %c0_107, %c0_108] : memref<2x1x32xf32, #tpu.memory_space<vmem>>, vector<1x1x32xf32>
    %244 = vector.shape_cast %243 : vector<1x1x32xf32> to vector<1x32xf32>
    %c1_109 = arith.constant 1 : index
    %c0_110 = arith.constant 0 : index
    %c0_111 = arith.constant 0 : index
    %245 = vector.load %arg9[%c1_109, %c0_110, %c0_111] : memref<2x1x32xf32, #tpu.memory_space<vmem>>, vector<1x1x32xf32>
    %246 = vector.shape_cast %245 : vector<1x1x32xf32> to vector<1x32xf32>
    %cst_112 = arith.constant dense<0.000000e+00> : vector<16xf32>
    %247 = vector.multi_reduction <add>, %242, %cst_112 [1] : vector<16x32xf32> to vector<16xf32>
    %248 = vector.shape_cast %247 : vector<16xf32> to vector<16x1xf32>
    %cst_113 = arith.constant 3.200000e+01 : f32
    %249 = vector.broadcast %cst_113 : f32 to vector<16x1xf32>
    %250 = arith.divf %248, %249 : vector<16x1xf32>
    %251 = vector.broadcast %250 : vector<16x1xf32> to vector<16x32xf32>
    %252 = arith.subf %242, %251 : vector<16x32xf32>
    %253 = arith.mulf %252, %252 : vector<16x32xf32>
    %cst_114 = arith.constant dense<0.000000e+00> : vector<16xf32>
    %254 = vector.multi_reduction <add>, %253, %cst_114 [1] : vector<16x32xf32> to vector<16xf32>
    %255 = vector.shape_cast %254 : vector<16xf32> to vector<16x1xf32>
    %cst_115 = arith.constant 3.200000e+01 : f32
    %256 = vector.broadcast %cst_115 : f32 to vector<16x1xf32>
    %257 = arith.divf %255, %256 : vector<16x1xf32>
    %258 = vector.broadcast %250 : vector<16x1xf32> to vector<16x32xf32>
    %259 = arith.subf %242, %258 : vector<16x32xf32>
    %cst_116 = arith.constant 9.99999974E-6 : f32
    %260 = vector.broadcast %cst_116 : f32 to vector<16x1xf32>
    %261 = arith.addf %257, %260 : vector<16x1xf32>
    %262 = math.rsqrt %261 : vector<16x1xf32>
    %263 = vector.broadcast %262 : vector<16x1xf32> to vector<16x32xf32>
    %264 = arith.mulf %259, %263 : vector<16x32xf32>
    %265 = vector.broadcast %244 : vector<1x32xf32> to vector<16x32xf32>
    %266 = arith.mulf %264, %265 : vector<16x32xf32>
    %267 = vector.broadcast %246 : vector<1x32xf32> to vector<16x32xf32>
    %268 = arith.addf %266, %267 : vector<16x32xf32>
    %c1_117 = arith.constant 1 : index
    %c0_118 = arith.constant 0 : index
    %c0_119 = arith.constant 0 : index
    %269 = vector.load %arg12[%c1_117, %c0_118, %c0_119] : memref<2x32x64xf32, #tpu.memory_space<vmem>>, vector<1x32x64xf32>
    %270 = vector.shape_cast %269 : vector<1x32x64xf32> to vector<32x64xf32>
    %cst_120 = arith.constant dense<0.000000e+00> : vector<16x64xf32>
    %271 = tpu.matmul %268, %270, %cst_120 {dimension_numbers = #tpu.dot_dimension_numbers<[1], [0], [0], [1], [0, 0, 1, 1], [], []>} : vector<16x32xf32>, vector<32x64xf32>, vector<16x64xf32> -> vector<16x64xf32>
    %c1_121 = arith.constant 1 : index
    %c0_122 = arith.constant 0 : index
    %c0_123 = arith.constant 0 : index
    %272 = vector.load %arg13[%c1_121, %c0_122, %c0_123] : memref<2x1x64xf32, #tpu.memory_space<vmem>>, vector<1x1x64xf32>
    %273 = vector.shape_cast %272 : vector<1x1x64xf32> to vector<1x64xf32>
    %274 = vector.broadcast %273 : vector<1x64xf32> to vector<16x64xf32>
    %275 = arith.addf %271, %274 : vector<16x64xf32>
    %cst_124 = arith.constant 0.000000e+00 : f32
    %276 = vector.broadcast %cst_124 : f32 to vector<16x64xf32>
    %277 = arith.maximumf %275, %276 : vector<16x64xf32>
    %c1_125 = arith.constant 1 : index
    %c0_126 = arith.constant 0 : index
    %c0_127 = arith.constant 0 : index
    %278 = vector.load %arg14[%c1_125, %c0_126, %c0_127] : memref<2x64x32xf32, #tpu.memory_space<vmem>>, vector<1x64x32xf32>
    %279 = vector.shape_cast %278 : vector<1x64x32xf32> to vector<64x32xf32>
    %cst_128 = arith.constant dense<0.000000e+00> : vector<16x32xf32>
    %280 = tpu.matmul %277, %279, %cst_128 {dimension_numbers = #tpu.dot_dimension_numbers<[1], [0], [0], [1], [0, 0, 1, 1], [], []>} : vector<16x64xf32>, vector<64x32xf32>, vector<16x32xf32> -> vector<16x32xf32>
    %c1_129 = arith.constant 1 : index
    %c0_130 = arith.constant 0 : index
    %c0_131 = arith.constant 0 : index
    %281 = vector.load %arg15[%c1_129, %c0_130, %c0_131] : memref<2x1x32xf32, #tpu.memory_space<vmem>>, vector<1x1x32xf32>
    %282 = vector.shape_cast %281 : vector<1x1x32xf32> to vector<1x32xf32>
    %283 = vector.broadcast %282 : vector<1x32xf32> to vector<16x32xf32>
    %284 = arith.addf %280, %283 : vector<16x32xf32>
    %285 = arith.addf %268, %284 : vector<16x32xf32>
    %c1_132 = arith.constant 1 : index
    %c0_133 = arith.constant 0 : index
    %c0_134 = arith.constant 0 : index
    %286 = vector.load %arg10[%c1_132, %c0_133, %c0_134] : memref<2x1x32xf32, #tpu.memory_space<vmem>>, vector<1x1x32xf32>
    %287 = vector.shape_cast %286 : vector<1x1x32xf32> to vector<1x32xf32>
    %c1_135 = arith.constant 1 : index
    %c0_136 = arith.constant 0 : index
    %c0_137 = arith.constant 0 : index
    %288 = vector.load %arg11[%c1_135, %c0_136, %c0_137] : memref<2x1x32xf32, #tpu.memory_space<vmem>>, vector<1x1x32xf32>
    %289 = vector.shape_cast %288 : vector<1x1x32xf32> to vector<1x32xf32>
    %cst_138 = arith.constant dense<0.000000e+00> : vector<16xf32>
    %290 = vector.multi_reduction <add>, %285, %cst_138 [1] : vector<16x32xf32> to vector<16xf32>
    %291 = vector.shape_cast %290 : vector<16xf32> to vector<16x1xf32>
    %cst_139 = arith.constant 3.200000e+01 : f32
    %292 = vector.broadcast %cst_139 : f32 to vector<16x1xf32>
    %293 = arith.divf %291, %292 : vector<16x1xf32>
    %294 = vector.broadcast %293 : vector<16x1xf32> to vector<16x32xf32>
    %295 = arith.subf %285, %294 : vector<16x32xf32>
    %296 = arith.mulf %295, %295 : vector<16x32xf32>
    %cst_140 = arith.constant dense<0.000000e+00> : vector<16xf32>
    %297 = vector.multi_reduction <add>, %296, %cst_140 [1] : vector<16x32xf32> to vector<16xf32>
    %298 = vector.shape_cast %297 : vector<16xf32> to vector<16x1xf32>
    %cst_141 = arith.constant 3.200000e+01 : f32
    %299 = vector.broadcast %cst_141 : f32 to vector<16x1xf32>
    %300 = arith.divf %298, %299 : vector<16x1xf32>
    %301 = vector.broadcast %293 : vector<16x1xf32> to vector<16x32xf32>
    %302 = arith.subf %285, %301 : vector<16x32xf32>
    %cst_142 = arith.constant 9.99999974E-6 : f32
    %303 = vector.broadcast %cst_142 : f32 to vector<16x1xf32>
    %304 = arith.addf %300, %303 : vector<16x1xf32>
    %305 = math.rsqrt %304 : vector<16x1xf32>
    %306 = vector.broadcast %305 : vector<16x1xf32> to vector<16x32xf32>
    %307 = arith.mulf %302, %306 : vector<16x32xf32>
    %308 = vector.broadcast %287 : vector<1x32xf32> to vector<16x32xf32>
    %309 = arith.mulf %307, %308 : vector<16x32xf32>
    %310 = vector.broadcast %289 : vector<1x32xf32> to vector<16x32xf32>
    %311 = arith.addf %309, %310 : vector<16x32xf32>
    %c0_143 = arith.constant 0 : index
    %c0_144 = arith.constant 0 : index
    %312 = vector.load %arg16[%c0_143, %c0_144] : memref<32x32xf32, #tpu.memory_space<vmem>>, vector<32x32xf32>
    %cst_145 = arith.constant dense<0.000000e+00> : vector<16x32xf32>
    %313 = tpu.matmul %311, %312, %cst_145 {dimension_numbers = #tpu.dot_dimension_numbers<[1], [0], [0], [1], [0, 0, 1, 1], [], []>} : vector<16x32xf32>, vector<32x32xf32>, vector<16x32xf32> -> vector<16x32xf32>
    %c0_146 = arith.constant 0 : index
    %c0_147 = arith.constant 0 : index
    %314 = vector.load %arg17[%c0_146, %c0_147] : memref<1x32xf32, #tpu.memory_space<vmem>>, vector<1x32xf32>
    %315 = vector.broadcast %314 : vector<1x32xf32> to vector<16x32xf32>
    %316 = arith.addf %313, %315 : vector<16x32xf32>
    %c0_148 = arith.constant 0 : index
    %c0_149 = arith.constant 0 : index
    %317 = vector.load %arg18[%c0_148, %c0_149] : memref<16x32xf32, #tpu.memory_space<vmem>>, vector<16x32xf32>
    tpu.vector_store %arg18[%c0_148, %c0_149], %316 {strides = array<i32>} : memref<16x32xf32, #tpu.memory_space<vmem>>, vector<16x32xf32>,
    return
  }
}

</mosaic_0001>

<llo_original>
// kernel: transformer_model_forward.1
$region0: #{transformer_model_forward.1}
  #allocation0 [shape = 'u32[]', space=smem, size = 0x4, offset = 0x4, fixed_abs, tag = 'smem constant byte address 0x4 - core index']
  #allocation1 [shape = 'u32[144,128]{1,0:T(1,128)}', space=vmem, size = 0x12000, scoped, tag = 'internal scratch']
  %s0 = inlined_call_operand.vmem [shape: s32[16,1], index: 0, kind: input, shape index: {}]
  %s1 = inlined_call_operand.vmem [shape: f32[16,32], index: 1, kind: input, shape index: {}]
  %s2 = inlined_call_operand.vmem [shape: f32[32,32], index: 2, kind: input, shape index: {}]
  %s3 = inlined_call_operand.vmem [shape: f32[16,16], index: 3, kind: input, shape index: {}]
  %s4 = inlined_call_operand.vmem [shape: f32[2,32,96], index: 4, kind: input, shape index: {}]
  %s5 = inlined_call_operand.vmem [shape: f32[2,1,96], index: 5, kind: input, shape index: {}]
  %s6 = inlined_call_operand.vmem [shape: f32[2,32,32], index: 6, kind: input, shape index: {}]
  %s7 = inlined_call_operand.vmem [shape: f32[2,1,32], index: 7, kind: input, shape index: {}]
  %s8 = inlined_call_operand.vmem [shape: f32[2,1,32], index: 8, kind: input, shape index: {}]
  %s9 = inlined_call_operand.vmem [shape: f32[2,1,32], index: 9, kind: input, shape index: {}]
  %s10 = inlined_call_operand.vmem [shape: f32[2,1,32], index: 10, kind: input, shape index: {}]
  %s11 = inlined_call_operand.vmem [shape: f32[2,1,32], index: 11, kind: input, shape index: {}]
  %s12 = inlined_call_operand.vmem [shape: f32[2,32,64], index: 12, kind: input, shape index: {}]
  %s13 = inlined_call_operand.vmem [shape: f32[2,1,64], index: 13, kind: input, shape index: {}]
  %s14 = inlined_call_operand.vmem [shape: f32[2,64,32], index: 14, kind: input, shape index: {}]
  %s15 = inlined_call_operand.vmem [shape: f32[2,1,32], index: 15, kind: input, shape index: {}]
  %s16 = inlined_call_operand.vmem [shape: f32[32,32], index: 16, kind: input, shape index: {}]
  %s17 = inlined_call_operand.vmem [shape: f32[1,32], index: 17, kind: input, shape index: {}]
  %s18 = inlined_call_operand.hbm [shape: f32[16,32], index: 18, kind: output, shape index: {}]
  %s19 = sld [smem:[#allocation0]]
  $region82: #{transformer_model_forward.1} parent=0
    _
  %s21 = ssub.s32 1, %s19
  %s22 = scalar_select 0, %s21, %s19
  $region1: #{transformer_model_forward.1} parent=0
    #allocation2 [shape = 'u8[8192]{0}', space=vmem, size = 0x2000, scoped, tag = 'output window, operand 0, single buffered']
    #allocation3 [shape = 's32[1]{0}', space=sflag, size = 0x4, scoped, tag = 'scoped memory for transformer_model_forward.1']
    %23 = vsyncpa [#allocation3], 0
    // Predicated region
    $region2: #{transformer_model_forward.1} parent=1 // pred_check
      _
    $region3: #{transformer_model_forward.1} parent=1 // pred_check_branch
      %25 = sbr.rel (0) target = $region5
    $region4: #{transformer_model_forward.1} parent=1 // pred_region
      _
    $region5: #{transformer_model_forward.1} parent=1 // pred_fallthru
      _
    // Predicated region
    $region6: #{transformer_model_forward.1} parent=1 // pred_check
      _
    $region7: #{transformer_model_forward.1} parent=1 // pred_check_branch
      %27 = sbr.rel (0) target = $region9
    $region8: #{transformer_model_forward.1} parent=1 // pred_region
      _
    $region9: #{transformer_model_forward.1} parent=1 // pred_fallthru
      _
    // Predicated region
    $region10: #{transformer_model_forward.1} parent=1 // pred_check
      _
    $region11: #{transformer_model_forward.1} parent=1 // pred_check_branch
      %29 = sbr.rel (0) target = $region13
    $region12: #{transformer_model_forward.1} parent=1 // pred_region
      _
    $region13: #{transformer_model_forward.1} parent=1 // pred_fallthru
      _
    // Predicated region
    $region14: #{transformer_model_forward.1} parent=1 // pred_check
      _
    $region15: #{transformer_model_forward.1} parent=1 // pred_check_branch
      %31 = sbr.rel (0) target = $region17
    $region16: #{transformer_model_forward.1} parent=1 // pred_region
      _
    $region17: #{transformer_model_forward.1} parent=1 // pred_fallthru
      _
    // Predicated region
    $region18: #{transformer_model_forward.1} parent=1 // pred_check
      _
    $region19: #{transformer_model_forward.1} parent=1 // pred_check_branch
      %33 = sbr.rel (0) target = $region21
    $region20: #{transformer_model_forward.1} parent=1 // pred_region
      _
    $region21: #{transformer_model_forward.1} parent=1 // pred_fallthru
      _
    // Predicated region
    $region22: #{transformer_model_forward.1} parent=1 // pred_check
      _
    $region23: #{transformer_model_forward.1} parent=1 // pred_check_branch
      %35 = sbr.rel (0) target = $region25
    $region24: #{transformer_model_forward.1} parent=1 // pred_region
      _
    $region25: #{transformer_model_forward.1} parent=1 // pred_fallthru
      _
    // Predicated region
    $region26: #{transformer_model_forward.1} parent=1 // pred_check
      _
    $region27: #{transformer_model_forward.1} parent=1 // pred_check_branch
      %37 = sbr.rel (0) target = $region29
    $region28: #{transformer_model_forward.1} parent=1 // pred_region
      _
    $region29: #{transformer_model_forward.1} parent=1 // pred_fallthru
      _
    // Predicated region
    $region30: #{transformer_model_forward.1} parent=1 // pred_check
      _
    $region31: #{transformer_model_forward.1} parent=1 // pred_check_branch
      %39 = sbr.rel (0) target = $region33
    $region32: #{transformer_model_forward.1} parent=1 // pred_region
      _
    $region33: #{transformer_model_forward.1} parent=1 // pred_fallthru
      _
    // Predicated region
    $region34: #{transformer_model_forward.1} parent=1 // pred_check
      _
    $region35: #{transformer_model_forward.1} parent=1 // pred_check_branch
      %41 = sbr.rel (0) target = $region37
    $region36: #{transformer_model_forward.1} parent=1 // pred_region
      _
    $region37: #{transformer_model_forward.1} parent=1 // pred_fallthru
      _
    // Predicated region
    $region38: #{transformer_model_forward.1} parent=1 // pred_check
      _
    $region39: #{transformer_model_forward.1} parent=1 // pred_check_branch
      %43 = sbr.rel (0) target = $region41
    $region40: #{transformer_model_forward.1} parent=1 // pred_region
      _
    $region41: #{transformer_model_forward.1} parent=1 // pred_fallthru
      _
    // Predicated region
    $region42: #{transformer_model_forward.1} parent=1 // pred_check
      _
    $region43: #{transformer_model_forward.1} parent=1 // pred_check_branch
      %45 = sbr.rel (0) target = $region45
    $region44: #{transformer_model_forward.1} parent=1 // pred_region
      _
    $region45: #{transformer_model_forward.1} parent=1 // pred_fallthru
      _
    // Predicated region
    $region46: #{transformer_model_forward.1} parent=1 // pred_check
      _
    $region47: #{transformer_model_forward.1} parent=1 // pred_check_branch
      %47 = sbr.rel (0) target = $region49
    $region48: #{transformer_model_forward.1} parent=1 // pred_region
      _
    $region49: #{transformer_model_forward.1} parent=1 // pred_fallthru
      _
    // Predicated region
    $region50: #{transformer_model_forward.1} parent=1 // pred_check
      _
    $region51: #{transformer_model_forward.1} parent=1 // pred_check_branch
      %49 = sbr.rel (0) target = $region53
    $region52: #{transformer_model_forward.1} parent=1 // pred_region
      _
    $region53: #{transformer_model_forward.1} parent=1 // pred_fallthru
      _
    // Predicated region
    $region54: #{transformer_model_forward.1} parent=1 // pred_check
      _
    $region55: #{transformer_model_forward.1} parent=1 // pred_check_branch
      %51 = sbr.rel (0) target = $region57
    $region56: #{transformer_model_forward.1} parent=1 // pred_region
      _
    $region57: #{transformer_model_forward.1} parent=1 // pred_fallthru
      _
    // Predicated region
    $region58: #{transformer_model_forward.1} parent=1 // pred_check
      _
    $region59: #{transformer_model_forward.1} parent=1 // pred_check_branch
      %53 = sbr.rel (0) target = $region61
    $region60: #{transformer_model_forward.1} parent=1 // pred_region
      _
    $region61: #{transformer_model_forward.1} parent=1 // pred_fallthru
      _
    // Predicated region
    $region62: #{transformer_model_forward.1} parent=1 // pred_check
      _
    $region63: #{transformer_model_forward.1} parent=1 // pred_check_branch
      %55 = sbr.rel (0) target = $region65
    $region64: #{transformer_model_forward.1} parent=1 // pred_region
      _
    $region65: #{transformer_model_forward.1} parent=1 // pred_fallthru
      _
    // Predicated region
    $region66: #{transformer_model_forward.1} parent=1 // pred_check
      _
    $region67: #{transformer_model_forward.1} parent=1 // pred_check_branch
      %57 = sbr.rel (0) target = $region69
    $region68: #{transformer_model_forward.1} parent=1 // pred_region
      _
    $region69: #{transformer_model_forward.1} parent=1 // pred_fallthru
      _
    // Predicated region
    $region70: #{transformer_model_forward.1} parent=1 // pred_check
      _
    $region71: #{transformer_model_forward.1} parent=1 // pred_check_branch
      %59 = sbr.rel (0) target = $region73
    $region72: #{transformer_model_forward.1} parent=1 // pred_region
      _
    $region73: #{transformer_model_forward.1} parent=1 // pred_fallthru
      _
    %v60 = vld [vmem:[%s0] sm:$0xff]
    %v61 = vld [vmem:[%s0 + $0x8] sm:$0xff]
    %v62 = vlaneseq
    %v63 = vand.u32 %v62, 127
    %64 = vset.pattern.permute.xlu0 0
    %65 = vperm.xlu0 %64, %v60
    %v66 = vpop.permute.xlu0 %65
    %67 = vset.pattern.permute.xlu0 0
    %68 = vperm.xlu0 %67, %v61
    %v69 = vpop.permute.xlu0 %68
    %vm70 = vcmp.eq.s32.totalorder %v66, %v63
    %vm71 = vcmp.eq.s32.totalorder %v69, %v63
    %v72 = vsel %vm70, 1.0, 0.0
    %v73 = vsel %vm71, 1.0, 0.0
    %v74 = vld [vmem:[%s2] sm:$0xff]
    %v75 = vld [vmem:[%s2 + $0x8] sm:$0xff]
    %v76 = vld [vmem:[%s2 + $0x10] sm:$0xff]
    %v77 = vld [vmem:[%s2 + $0x18] sm:$0xff]
    %vm78 = vcmask 261120
    %v80 = vsel %vm78, %v72, 0
    %v83 = vsel %vm78, %v73, 0
    %85 = vmatprep.subr.mxu0 0.0
    %86 = vmatpush1.msra.mxu0 0.0
    %87 = vmatprep.subr.mxu0 0.0
    %88 = vmatpush1.msra.mxu0 0.0
    %89 = vmatprep.subr.mxu0 0.0
    %90 = vmatpush1.msra.mxu0 0.0
    %91 = vmatprep.subr.mxu0 0.0
    %92 = vmatpush1.msra.mxu0 0.0
    %93 = vmatprep.subr.mxu0 0.0
    %94 = vmatpush1.msra.mxu0 0.0
    %95 = vmatprep.subr.mxu0 0.0
    %96 = vmatpush1.msra.mxu0 0.0
    %97 = vmatprep.subr.mxu0 0.0
    %98 = vmatpush1.msra.mxu0 0.0
    %99 = vmatprep.subr.mxu0 0.0
    %100 = vmatpush1.msra.mxu0 0.0
    %101 = vmatprep.subr.mxu0 0.0
    %102 = vmatpush1.msra.mxu0 0.0
    %103 = vmatprep.subr.mxu0 0.0
    %104 = vmatpush1.msra.mxu0 0.0
    %105 = vmatprep.subr.mxu0 0.0
    %106 = vmatpush1.msra.mxu0 0.0
    %107 = vmatprep.subr.mxu0 0.0
    %108 = vmatpush1.msra.mxu0 0.0
    %109 = vmatprep.subr.mxu0 0.0
    %110 = vmatpush1.msra.mxu0 %v77
    %111 = vmatprep.subr.mxu0 0.0
    %112 = vmatpush1.msra.mxu0 %v76
    %113 = vmatprep.subr.mxu0 0.0
    %114 = vmatpush1.msra.mxu0 %v75
    %115 = vmatprep.subr.mxu0 0.0
    %116 = vmatpush1.msra.mxu0 %v74
    %117 = vmatprep.subr.mxu0 0.0
    %118 = vmatpush2.msra.mxu0 0.0
    %119 = vmatprep.subr.mxu0 0.0
    %120 = vmatpush2.msra.mxu0 0.0
    %121 = vmatprep.subr.mxu0 0.0
    %122 = vmatpush2.msra.mxu0 0.0
    %123 = vmatprep.subr.mxu0 0.0
    %124 = vmatpush2.msra.mxu0 0.0
    %125 = vmatprep.subr.mxu0 0.0
    %126 = vmatpush2.msra.mxu0 0.0
    %127 = vmatprep.subr.mxu0 0.0
    %128 = vmatpush2.msra.mxu0 0.0
    %129 = vmatprep.subr.mxu0 0.0
    %130 = vmatpush2.msra.mxu0 0.0
    %131 = vmatprep.subr.mxu0 0.0
    %132 = vmatpush2.msra.mxu0 0.0
    %133 = vmatprep.subr.mxu0 0.0
    %134 = vmatpush2.msra.mxu0 0.0
    %135 = vmatprep.subr.mxu0 0.0
    %136 = vmatpush2.msra.mxu0 0.0
    %137 = vmatprep.subr.mxu0 0.0
    %138 = vmatpush2.msra.mxu0 0.0
    %139 = vmatprep.subr.mxu0 0.0
    %140 = vmatpush2.msra.mxu0 0.0
    %141 = vmatprep.subr.mxu0 0.0
    %142 = vmatpush2.msra.mxu0 0.0
    %143 = vmatprep.subr.mxu0 0.0
    %144 = vmatpush2.msra.mxu0 0.0
    %145 = vmatprep.subr.mxu0 0.0
    %146 = vmatpush2.msra.mxu0 0.0
    %147 = vmatprep.subr.mxu0 0.0
    %148 = vmatpush2.msra.mxu0 0.0
    %149 = vmatprep.mubr.f32.mxu0 0.0
    %150 = vmatmul.mubr.f32.gmra.mxu0 %v80
    %v151 = vpop.f32.mrf.mxu0
    %v152 = vadd.f32 0.0, %v151
    %v153 = vpop.f32.mrf.mxu0
    %154 = vmatprep.mubr.f32.mxu0 0.0
    %155 = vmatmul.mubr.f32.gmra.mxu0 %v83
    %v156 = vpop.f32.mrf.mxu0
    %v157 = vadd.f32 0.0, %v156
    %v158 = vpop.f32.mrf.mxu0
    %159 = vdwg.mxu0
    %v160 = vmul.f32 %v152, 5.656854
    %v161 = vmul.f32 %v157, 5.656854
    %v162 = vld [vmem:[%s1] sm:$0xff]
    %v163 = vld [vmem:[%s1 + $0x8] sm:$0xff]
    %v164 = vadd.f32 %v160, %v162
    %v165 = vadd.f32 %v161, %v163
    %v166 = vld [vmem:[%s3] sm:$0xff]
    %v167 = vld [vmem:[%s3 + $0x8] sm:$0xff]
    %v168 = vld [vmem:[%s4] sm:$0xff]
    %v169 = vld [vmem:[%s4 + $0x8] sm:$0xff]
    %v170 = vld [vmem:[%s4 + $0x10] sm:$0xff]
    %v171 = vld [vmem:[%s4 + $0x18] sm:$0xff]
    %v172 = vld [vmem:[%s5] sm:$0x1]
    %v174 = vlaneseq
    %v175 = vshrl.u32 %v174, 7
    %v176 = vsub.s32 0, %v175
    %v177 = vrot.slane %v172, %v176
    %v180 = vsel %vm78, %v164, 0
    %v183 = vsel %vm78, %v165, 0
    %185 = vmatprep.subr.mxu0 0.0
    %186 = vmatpush1.msra.mxu0 0.0
    %187 = vmatprep.subr.mxu0 0.0
    %188 = vmatpush1.msra.mxu0 0.0
    %189 = vmatprep.subr.mxu0 0.0
    %190 = vmatpush1.msra.mxu0 0.0
    %191 = vmatprep.subr.mxu0 0.0
    %192 = vmatpush1.msra.mxu0 0.0
    %193 = vmatprep.subr.mxu0 0.0
    %194 = vmatpush1.msra.mxu0 0.0
    %195 = vmatprep.subr.mxu0 0.0
    %196 = vmatpush1.msra.mxu0 0.0
    %197 = vmatprep.subr.mxu0 0.0
    %198 = vmatpush1.msra.mxu0 0.0
    %199 = vmatprep.subr.mxu0 0.0
    %200 = vmatpush1.msra.mxu0 0.0
    %201 = vmatprep.subr.mxu0 0.0
    %202 = vmatpush1.msra.mxu0 0.0
    %203 = vmatprep.subr.mxu0 0.0
    %204 = vmatpush1.msra.mxu0 0.0
    %205 = vmatprep.subr.mxu0 0.0
    %206 = vmatpush1.msra.mxu0 0.0
    %207 = vmatprep.subr.mxu0 0.0
    %208 = vmatpush1.msra.mxu0 0.0
    %209 = vmatprep.subr.mxu0 0.0
    %210 = vmatpush1.msra.mxu0 %v171
    %211 = vmatprep.subr.mxu0 0.0
    %212 = vmatpush1.msra.mxu0 %v170
    %213 = vmatprep.subr.mxu0 0.0
    %214 = vmatpush1.msra.mxu0 %v169
    %215 = vmatprep.subr.mxu0 0.0
    %216 = vmatpush1.msra.mxu0 %v168
    %217 = vmatprep.subr.mxu0 0.0
    %218 = vmatpush2.msra.mxu0 0.0
    %219 = vmatprep.subr.mxu0 0.0
    %220 = vmatpush2.msra.mxu0 0.0
    %221 = vmatprep.subr.mxu0 0.0
    %222 = vmatpush2.msra.mxu0 0.0
    %223 = vmatprep.subr.mxu0 0.0
    %224 = vmatpush2.msra.mxu0 0.0
    %225 = vmatprep.subr.mxu0 0.0
    %226 = vmatpush2.msra.mxu0 0.0
    %227 = vmatprep.subr.mxu0 0.0
    %228 = vmatpush2.msra.mxu0 0.0
    %229 = vmatprep.subr.mxu0 0.0
    %230 = vmatpush2.msra.mxu0 0.0
    %231 = vmatprep.subr.mxu0 0.0
    %232 = vmatpush2.msra.mxu0 0.0
    %233 = vmatprep.subr.mxu0 0.0
    %234 = vmatpush2.msra.mxu0 0.0
    %235 = vmatprep.subr.mxu0 0.0
    %236 = vmatpush2.msra.mxu0 0.0
    %237 = vmatprep.subr.mxu0 0.0
    %238 = vmatpush2.msra.mxu0 0.0
    %239 = vmatprep.subr.mxu0 0.0
    %240 = vmatpush2.msra.mxu0 0.0
    %241 = vmatprep.subr.mxu0 0.0
    %242 = vmatpush2.msra.mxu0 0.0
    %243 = vmatprep.subr.mxu0 0.0
    %244 = vmatpush2.msra.mxu0 0.0
    %245 = vmatprep.subr.mxu0 0.0
    %246 = vmatpush2.msra.mxu0 0.0
    %247 = vmatprep.subr.mxu0 0.0
    %248 = vmatpush2.msra.mxu0 0.0
    %249 = vmatprep.mubr.f32.mxu0 0.0
    %250 = vmatmul.mubr.f32.gmra.mxu0 %v180
    %v251 = vpop.f32.mrf.mxu0
    %v252 = vadd.f32 %v177, %v251
    %v253 = vpop.f32.mrf.mxu0
    %254 = vmatprep.mubr.f32.mxu0 0.0
    %255 = vmatmul.mubr.f32.gmra.mxu0 %v183
    %v256 = vpop.f32.mrf.mxu0
    %v257 = vadd.f32 %v177, %v256
    %v258 = vpop.f32.mrf.mxu0
    %259 = vdwg.mxu0
    %262 = vrot.lane.b32.xlu0 %v252, 96
    %v263 = vpop.permute.xlu0 %262
    %264 = vrot.lane.b32.xlu0 %v257, 96
    %v265 = vpop.permute.xlu0 %264
    %vm266 = vcmask 64512
    %v267 = vsel %vm266, %v252, 0
    %v269 = vsel %vm266, %v257, 0
    %v271 = vsel %vm266, %v263, 0
    %v273 = vsel %vm266, %v265, 0
    %275 = vmatprep.subr.mxu0 0.0
    %276 = vmatpush1.xpose.msra.mxu0 0.0
    %277 = vmatprep.subr.mxu0 0.0
    %278 = vmatpush1.xpose.msra.mxu0 0.0
    %279 = vmatprep.subr.mxu0 0.0
    %280 = vmatpush1.xpose.msra.mxu0 0.0
    %281 = vmatprep.subr.mxu0 0.0
    %282 = vmatpush1.xpose.msra.mxu0 0.0
    %283 = vmatprep.subr.mxu0 0.0
    %284 = vmatpush1.xpose.msra.mxu0 0.0
    %285 = vmatprep.subr.mxu0 0.0
    %286 = vmatpush1.xpose.msra.mxu0 0.0
    %287 = vmatprep.subr.mxu0 0.0
    %288 = vmatpush1.xpose.msra.mxu0 0.0
    %289 = vmatprep.subr.mxu0 0.0
    %290 = vmatpush1.xpose.msra.mxu0 0.0
    %291 = vmatprep.subr.mxu0 0.0
    %292 = vmatpush1.xpose.msra.mxu0 0.0
    %293 = vmatprep.subr.mxu0 0.0
    %294 = vmatpush1.xpose.msra.mxu0 0.0
    %295 = vmatprep.subr.mxu0 0.0
    %296 = vmatpush1.xpose.msra.mxu0 0.0
    %297 = vmatprep.subr.mxu0 0.0
    %298 = vmatpush1.xpose.msra.mxu0 0.0
    %299 = vmatprep.subr.mxu0 0.0
    %300 = vmatpush1.xpose.msra.mxu0 0.0
    %301 = vmatprep.subr.mxu0 0.0
    %302 = vmatpush1.xpose.msra.mxu0 0.0
    %303 = vmatprep.subr.mxu0 0.0
    %304 = vmatpush1.xpose.msra.mxu0 %v273
    %305 = vmatprep.subr.mxu0 0.0
    %306 = vmatpush1.xpose.msra.mxu0 %v271
    %307 = vmatprep.subr.mxu0 0.0
    %308 = vmatpush2.xpose.msra.mxu0 0.0
    %309 = vmatprep.subr.mxu0 0.0
    %310 = vmatpush2.xpose.msra.mxu0 0.0
    %311 = vmatprep.subr.mxu0 0.0
    %312 = vmatpush2.xpose.msra.mxu0 0.0
    %313 = vmatprep.subr.mxu0 0.0
    %314 = vmatpush2.xpose.msra.mxu0 0.0
    %315 = vmatprep.subr.mxu0 0.0
    %316 = vmatpush2.xpose.msra.mxu0 0.0
    %317 = vmatprep.subr.mxu0 0.0
    %318 = vmatpush2.xpose.msra.mxu0 0.0
    %319 = vmatprep.subr.mxu0 0.0
    %320 = vmatpush2.xpose.msra.mxu0 0.0
    %321 = vmatprep.subr.mxu0 0.0
    %322 = vmatpush2.xpose.msra.mxu0 0.0
    %323 = vmatprep.subr.mxu0 0.0
    %324 = vmatpush2.xpose.msra.mxu0 0.0
    %325 = vmatprep.subr.mxu0 0.0
    %326 = vmatpush2.xpose.msra.mxu0 0.0
    %327 = vmatprep.subr.mxu0 0.0
    %328 = vmatpush2.xpose.msra.mxu0 0.0
    %329 = vmatprep.subr.mxu0 0.0
    %330 = vmatpush2.xpose.msra.mxu0 0.0
    %331 = vmatprep.subr.mxu0 0.0
    %332 = vmatpush2.xpose.msra.mxu0 0.0
    %333 = vmatprep.subr.mxu0 0.0
    %334 = vmatpush2.xpose.msra.mxu0 0.0
    %335 = vmatprep.subr.mxu0 0.0
    %336 = vmatpush2.xpose.msra.mxu0 0.0
    %337 = vmatprep.subr.mxu0 0.0
    %338 = vmatpush2.xpose.msra.mxu0 0.0
    %339 = vmatprep.mubr.f32.mxu0 0.0
    %340 = vmatmul.mubr.f32.gmra.mxu0 %v267
    %v341 = vpop.f32.mrf.mxu0
    %v342 = vadd.f32 %v166, %v341
    %v343 = vpop.f32.mrf.mxu0
    %344 = vmatprep.mubr.f32.mxu0 0.0
    %345 = vmatmul.mubr.f32.gmra.mxu0 %v269
    %v346 = vpop.f32.mrf.mxu0
    %v347 = vadd.f32 %v167, %v346
    %v348 = vpop.f32.mrf.mxu0
    %349 = vdwg.mxu0
    %vm350 = vcmask 130048
    %v351 = vsel %vm350, %v342, -inf
    %352 = vmax.xlane.f32.xlu0 %v351
    %v353 = vpop.xlane.xlu0 %352
    %v354 = vsel %vm350, %v347, -inf
    %355 = vmax.xlane.f32.xlu0 %v354
    %v356 = vpop.xlane.xlu0 %355
    %v357 = vsub.f32 %v342, %v353
    %v358 = vsub.f32 %v347, %v356
    %v359 = vmul.f32 %v357, 1.442695
    %v360 = vpow.pop %v359
    %v361 = vmul.f32 %v358, 1.442695
    %v362 = vpow.pop %v361
    %v363 = vsel %vm350, %v360, 0.0
    %364 = vadd.xlane.f32.xlu0 %v363
    %v365 = vpop.xlane.xlu0 %364
    %v366 = vsel %vm350, %v362, 0.0
    %367 = vadd.xlane.f32.xlu0 %v366
    %v368 = vpop.xlane.xlu0 %367
    %v369 = vrcp.pop %v365
    %v370 = vrcp.pop %v368
    %v371 = vmul.f32 %v360, %v369
    %v372 = vmul.f32 %v362, %v370
    %373 = vrot.lane.b32.xlu0 %v252, 64
    %v374 = vpop.permute.xlu0 %373
    %375 = vrot.lane.b32.xlu0 %v257, 64
    %v376 = vpop.permute.xlu0 %375
    %v380 = vsel %vm350, %v371, 0
    %v383 = vsel %vm350, %v372, 0
    %385 = vmatprep.subr.mxu0 0.0
    %386 = vmatpush1.msra.mxu0 0.0
    %387 = vmatprep.subr.mxu0 0.0
    %388 = vmatpush1.msra.mxu0 0.0
    %389 = vmatprep.subr.mxu0 0.0
    %390 = vmatpush1.msra.mxu0 0.0
    %391 = vmatprep.subr.mxu0 0.0
    %392 = vmatpush1.msra.mxu0 0.0
    %393 = vmatprep.subr.mxu0 0.0
    %394 = vmatpush1.msra.mxu0 0.0
    %395 = vmatprep.subr.mxu0 0.0
    %396 = vmatpush1.msra.mxu0 0.0
    %397 = vmatprep.subr.mxu0 0.0
    %398 = vmatpush1.msra.mxu0 0.0
    %399 = vmatprep.subr.mxu0 0.0
    %400 = vmatpush1.msra.mxu0 0.0
    %401 = vmatprep.subr.mxu0 0.0
    %402 = vmatpush1.msra.mxu0 0.0
    %403 = vmatprep.subr.mxu0 0.0
    %404 = vmatpush1.msra.mxu0 0.0
    %405 = vmatprep.subr.mxu0 0.0
    %406 = vmatpush1.msra.mxu0 0.0
    %407 = vmatprep.subr.mxu0 0.0
    %408 = vmatpush1.msra.mxu0 0.0
    %409 = vmatprep.subr.mxu0 0.0
    %410 = vmatpush1.msra.mxu0 0.0
    %411 = vmatprep.subr.mxu0 0.0
    %412 = vmatpush1.msra.mxu0 0.0
    %413 = vmatprep.subr.mxu0 0.0
    %414 = vmatpush1.msra.mxu0 %v376
    %415 = vmatprep.subr.mxu0 0.0
    %416 = vmatpush1.msra.mxu0 %v374
    %417 = vmatprep.subr.mxu0 0.0
    %418 = vmatpush2.msra.mxu0 0.0
    %419 = vmatprep.subr.mxu0 0.0
    %420 = vmatpush2.msra.mxu0 0.0
    %421 = vmatprep.subr.mxu0 0.0
    %422 = vmatpush2.msra.mxu0 0.0
    %423 = vmatprep.subr.mxu0 0.0
    %424 = vmatpush2.msra.mxu0 0.0
    %425 = vmatprep.subr.mxu0 0.0
    %426 = vmatpush2.msra.mxu0 0.0
    %427 = vmatprep.subr.mxu0 0.0
    %428 = vmatpush2.msra.mxu0 0.0
    %429 = vmatprep.subr.mxu0 0.0
    %430 = vmatpush2.msra.mxu0 0.0
    %431 = vmatprep.subr.mxu0 0.0
    %432 = vmatpush2.msra.mxu0 0.0
    %433 = vmatprep.subr.mxu0 0.0
    %434 = vmatpush2.msra.mxu0 0.0
    %435 = vmatprep.subr.mxu0 0.0
    %436 = vmatpush2.msra.mxu0 0.0
    %437 = vmatprep.subr.mxu0 0.0
    %438 = vmatpush2.msra.mxu0 0.0
    %439 = vmatprep.subr.mxu0 0.0
    %440 = vmatpush2.msra.mxu0 0.0
    %441 = vmatprep.subr.mxu0 0.0
    %442 = vmatpush2.msra.mxu0 0.0
    %443 = vmatprep.subr.mxu0 0.0
    %444 = vmatpush2.msra.mxu0 0.0
    %445 = vmatprep.subr.mxu0 0.0
    %446 = vmatpush2.msra.mxu0 0.0
    %447 = vmatprep.subr.mxu0 0.0
    %448 = vmatpush2.msra.mxu0 0.0
    %449 = vmatprep.mubr.f32.mxu0 0.0
    %450 = vmatmul.mubr.f32.gmra.mxu0 %v380
    %v451 = vpop.f32.mrf.mxu0
    %v452 = vadd.f32 0.0, %v451
    %v453 = vpop.f32.mrf.mxu0
    %454 = vmatprep.mubr.f32.mxu0 0.0
    %455 = vmatmul.mubr.f32.gmra.mxu0 %v383
    %v456 = vpop.f32.mrf.mxu0
    %v457 = vadd.f32 0.0, %v456
    %v458 = vpop.f32.mrf.mxu0
    %459 = vdwg.mxu0
    %460 = vrot.lane.b32.xlu0 %v252, 120
    %v461 = vpop.permute.xlu0 %460
    %462 = vrot.lane.b32.xlu0 %v257, 120
    %v463 = vpop.permute.xlu0 %462
    %464 = vrot.lane.b32.xlu0 %v252, 88
    %v465 = vpop.permute.xlu0 %464
    %466 = vrot.lane.b32.xlu0 %v257, 88
    %v467 = vpop.permute.xlu0 %466
    %v468 = vsel %vm266, %v461, 0
    %v470 = vsel %vm266, %v463, 0
    %v472 = vsel %vm266, %v465, 0
    %v474 = vsel %vm266, %v467, 0
    %476 = vmatprep.subr.mxu0 0.0
    %477 = vmatpush1.xpose.msra.mxu0 0.0
    %478 = vmatprep.subr.mxu0 0.0
    %479 = vmatpush1.xpose.msra.mxu0 0.0
    %480 = vmatprep.subr.mxu0 0.0
    %481 = vmatpush1.xpose.msra.mxu0 0.0
    %482 = vmatprep.subr.mxu0 0.0
    %483 = vmatpush1.xpose.msra.mxu0 0.0
    %484 = vmatprep.subr.mxu0 0.0
    %485 = vmatpush1.xpose.msra.mxu0 0.0
    %486 = vmatprep.subr.mxu0 0.0
    %487 = vmatpush1.xpose.msra.mxu0 0.0
    %488 = vmatprep.subr.mxu0 0.0
    %489 = vmatpush1.xpose.msra.mxu0 0.0
    %490 = vmatprep.subr.mxu0 0.0
    %491 = vmatpush1.xpose.msra.mxu0 0.0
    %492 = vmatprep.subr.mxu0 0.0
    %493 = vmatpush1.xpose.msra.mxu0 0.0
    %494 = vmatprep.subr.mxu0 0.0
    %495 = vmatpush1.xpose.msra.mxu0 0.0
    %496 = vmatprep.subr.mxu0 0.0
    %497 = vmatpush1.xpose.msra.mxu0 0.0
    %498 = vmatprep.subr.mxu0 0.0
    %499 = vmatpush1.xpose.msra.mxu0 0.0
    %500 = vmatprep.subr.mxu0 0.0
    %501 = vmatpush1.xpose.msra.mxu0 0.0
    %502 = vmatprep.subr.mxu0 0.0
    %503 = vmatpush1.xpose.msra.mxu0 0.0
    %504 = vmatprep.subr.mxu0 0.0
    %505 = vmatpush1.xpose.msra.mxu0 %v474
    %506 = vmatprep.subr.mxu0 0.0
    %507 = vmatpush1.xpose.msra.mxu0 %v472
    %508 = vmatprep.subr.mxu0 0.0
    %509 = vmatpush2.xpose.msra.mxu0 0.0
    %510 = vmatprep.subr.mxu0 0.0
    %511 = vmatpush2.xpose.msra.mxu0 0.0
    %512 = vmatprep.subr.mxu0 0.0
    %513 = vmatpush2.xpose.msra.mxu0 0.0
    %514 = vmatprep.subr.mxu0 0.0
    %515 = vmatpush2.xpose.msra.mxu0 0.0
    %516 = vmatprep.subr.mxu0 0.0
    %517 = vmatpush2.xpose.msra.mxu0 0.0
    %518 = vmatprep.subr.mxu0 0.0
    %519 = vmatpush2.xpose.msra.mxu0 0.0
    %520 = vmatprep.subr.mxu0 0.0
    %521 = vmatpush2.xpose.msra.mxu0 0.0
    %522 = vmatprep.subr.mxu0 0.0
    %523 = vmatpush2.xpose.msra.mxu0 0.0
    %524 = vmatprep.subr.mxu0 0.0
    %525 = vmatpush2.xpose.msra.mxu0 0.0
    %526 = vmatprep.subr.mxu0 0.0
    %527 = vmatpush2.xpose.msra.mxu0 0.0
    %528 = vmatprep.subr.mxu0 0.0
    %529 = vmatpush2.xpose.msra.mxu0 0.0
    %530 = vmatprep.subr.mxu0 0.0
    %531 = vmatpush2.xpose.msra.mxu0 0.0
    %532 = vmatprep.subr.mxu0 0.0
    %533 = vmatpush2.xpose.msra.mxu0 0.0
    %534 = vmatprep.subr.mxu0 0.0
    %535 = vmatpush2.xpose.msra.mxu0 0.0
    %536 = vmatprep.subr.mxu0 0.0
    %537 = vmatpush2.xpose.msra.mxu0 0.0
    %538 = vmatprep.subr.mxu0 0.0
    %539 = vmatpush2.xpose.msra.mxu0 0.0
    %540 = vmatprep.mubr.f32.mxu0 0.0
    %541 = vmatmul.mubr.f32.gmra.mxu0 %v468
    %v542 = vpop.f32.mrf.mxu0
    %v543 = vadd.f32 %v166, %v542
    %v544 = vpop.f32.mrf.mxu0
    %545 = vmatprep.mubr.f32.mxu0 0.0
    %546 = vmatmul.mubr.f32.gmra.mxu0 %v470
    %v547 = vpop.f32.mrf.mxu0
    %v548 = vadd.f32 %v167, %v547
    %v549 = vpop.f32.mrf.mxu0
    %550 = vdwg.mxu0
    %v551 = vsel %vm350, %v543, -inf
    %552 = vmax.xlane.f32.xlu0 %v551
    %v553 = vpop.xlane.xlu0 %552
    %v554 = vsel %vm350, %v548, -inf
    %555 = vmax.xlane.f32.xlu0 %v554
    %v556 = vpop.xlane.xlu0 %555
    %v557 = vsub.f32 %v543, %v553
    %v558 = vsub.f32 %v548, %v556
    %v559 = vmul.f32 %v557, 1.442695
    %v560 = vpow.pop %v559
    %v561 = vmul.f32 %v558, 1.442695
    %v562 = vpow.pop %v561
    %v563 = vsel %vm350, %v560, 0.0
    %564 = vadd.xlane.f32.xlu0 %v563
    %v565 = vpop.xlane.xlu0 %564
    %v566 = vsel %vm350, %v562, 0.0
    %567 = vadd.xlane.f32.xlu0 %v566
    %v568 = vpop.xlane.xlu0 %567
    %v569 = vrcp.pop %v565
    %v570 = vrcp.pop %v568
    %v571 = vmul.f32 %v560, %v569
    %v572 = vmul.f32 %v562, %v570
    %573 = vrot.lane.b32.xlu0 %v252, 56
    %v574 = vpop.permute.xlu0 %573
    %575 = vrot.lane.b32.xlu0 %v257, 56
    %v576 = vpop.permute.xlu0 %575
    %v580 = vsel %vm350, %v571, 0
    %v583 = vsel %vm350, %v572, 0
    %585 = vmatprep.subr.mxu0 0.0
    %586 = vmatpush1.msra.mxu0 0.0
    %587 = vmatprep.subr.mxu0 0.0
    %588 = vmatpush1.msra.mxu0 0.0
    %589 = vmatprep.subr.mxu0 0.0
    %590 = vmatpush1.msra.mxu0 0.0
    %591 = vmatprep.subr.mxu0 0.0
    %592 = vmatpush1.msra.mxu0 0.0
    %593 = vmatprep.subr.mxu0 0.0
    %594 = vmatpush1.msra.mxu0 0.0
    %595 = vmatprep.subr.mxu0 0.0
    %596 = vmatpush1.msra.mxu0 0.0
    %597 = vmatprep.subr.mxu0 0.0
    %598 = vmatpush1.msra.mxu0 0.0
    %599 = vmatprep.subr.mxu0 0.0
    %600 = vmatpush1.msra.mxu0 0.0
    %601 = vmatprep.subr.mxu0 0.0
    %602 = vmatpush1.msra.mxu0 0.0
    %603 = vmatprep.subr.mxu0 0.0
    %604 = vmatpush1.msra.mxu0 0.0
    %605 = vmatprep.subr.mxu0 0.0
    %606 = vmatpush1.msra.mxu0 0.0
    %607 = vmatprep.subr.mxu0 0.0
    %608 = vmatpush1.msra.mxu0 0.0
    %609 = vmatprep.subr.mxu0 0.0
    %610 = vmatpush1.msra.mxu0 0.0
    %611 = vmatprep.subr.mxu0 0.0
    %612 = vmatpush1.msra.mxu0 0.0
    %613 = vmatprep.subr.mxu0 0.0
    %614 = vmatpush1.msra.mxu0 %v576
    %615 = vmatprep.subr.mxu0 0.0
    %616 = vmatpush1.msra.mxu0 %v574
    %617 = vmatprep.subr.mxu0 0.0
    %618 = vmatpush2.msra.mxu0 0.0
    %619 = vmatprep.subr.mxu0 0.0
    %620 = vmatpush2.msra.mxu0 0.0
    %621 = vmatprep.subr.mxu0 0.0
    %622 = vmatpush2.msra.mxu0 0.0
    %623 = vmatprep.subr.mxu0 0.0
    %624 = vmatpush2.msra.mxu0 0.0
    %625 = vmatprep.subr.mxu0 0.0
    %626 = vmatpush2.msra.mxu0 0.0
    %627 = vmatprep.subr.mxu0 0.0
    %628 = vmatpush2.msra.mxu0 0.0
    %629 = vmatprep.subr.mxu0 0.0
    %630 = vmatpush2.msra.mxu0 0.0
    %631 = vmatprep.subr.mxu0 0.0
    %632 = vmatpush2.msra.mxu0 0.0
    %633 = vmatprep.subr.mxu0 0.0
    %634 = vmatpush2.msra.mxu0 0.0
    %635 = vmatprep.subr.mxu0 0.0
    %636 = vmatpush2.msra.mxu0 0.0
    %637 = vmatprep.subr.mxu0 0.0
    %638 = vmatpush2.msra.mxu0 0.0
    %639 = vmatprep.subr.mxu0 0.0
    %640 = vmatpush2.msra.mxu0 0.0
    %641 = vmatprep.subr.mxu0 0.0
    %642 = vmatpush2.msra.mxu0 0.0
    %643 = vmatprep.subr.mxu0 0.0
    %644 = vmatpush2.msra.mxu0 0.0
    %645 = vmatprep.subr.mxu0 0.0
    %646 = vmatpush2.msra.mxu0 0.0
    %647 = vmatprep.subr.mxu0 0.0
    %648 = vmatpush2.msra.mxu0 0.0
    %649 = vmatprep.mubr.f32.mxu0 0.0
    %650 = vmatmul.mubr.f32.gmra.mxu0 %v580
    %v651 = vpop.f32.mrf.mxu0
    %v652 = vadd.f32 0.0, %v651
    %v653 = vpop.f32.mrf.mxu0
    %654 = vmatprep.mubr.f32.mxu0 0.0
    %655 = vmatmul.mubr.f32.gmra.mxu0 %v583
    %v656 = vpop.f32.mrf.mxu0
    %v657 = vadd.f32 0.0, %v656
    %v658 = vpop.f32.mrf.mxu0
    %659 = vdwg.mxu0
    %660 = vrot.lane.b32.xlu0 %v252, 112
    %v661 = vpop.permute.xlu0 %660
    %662 = vrot.lane.b32.xlu0 %v257, 112
    %v663 = vpop.permute.xlu0 %662
    %664 = vrot.lane.b32.xlu0 %v252, 80
    %v665 = vpop.permute.xlu0 %664
    %666 = vrot.lane.b32.xlu0 %v257, 80
    %v667 = vpop.permute.xlu0 %666
    %v668 = vsel %vm266, %v661, 0
    %v670 = vsel %vm266, %v663, 0
    %v672 = vsel %vm266, %v665, 0
    %v674 = vsel %vm266, %v667, 0
    %676 = vmatprep.subr.mxu0 0.0
    %677 = vmatpush1.xpose.msra.mxu0 0.0
    %678 = vmatprep.subr.mxu0 0.0
    %679 = vmatpush1.xpose.msra.mxu0 0.0
    %680 = vmatprep.subr.mxu0 0.0
    %681 = vmatpush1.xpose.msra.mxu0 0.0
    %682 = vmatprep.subr.mxu0 0.0
    %683 = vmatpush1.xpose.msra.mxu0 0.0
    %684 = vmatprep.subr.mxu0 0.0
    %685 = vmatpush1.xpose.msra.mxu0 0.0
    %686 = vmatprep.subr.mxu0 0.0
    %687 = vmatpush1.xpose.msra.mxu0 0.0
    %688 = vmatprep.subr.mxu0 0.0
    %689 = vmatpush1.xpose.msra.mxu0 0.0
    %690 = vmatprep.subr.mxu0 0.0
    %691 = vmatpush1.xpose.msra.mxu0 0.0
    %692 = vmatprep.subr.mxu0 0.0
    %693 = vmatpush1.xpose.msra.mxu0 0.0
    %694 = vmatprep.subr.mxu0 0.0
    %695 = vmatpush1.xpose.msra.mxu0 0.0
    %696 = vmatprep.subr.mxu0 0.0
    %697 = vmatpush1.xpose.msra.mxu0 0.0
    %698 = vmatprep.subr.mxu0 0.0
    %699 = vmatpush1.xpose.msra.mxu0 0.0
    %700 = vmatprep.subr.mxu0 0.0
    %701 = vmatpush1.xpose.msra.mxu0 0.0
    %702 = vmatprep.subr.mxu0 0.0
    %703 = vmatpush1.xpose.msra.mxu0 0.0
    %704 = vmatprep.subr.mxu0 0.0
    %705 = vmatpush1.xpose.msra.mxu0 %v674
    %706 = vmatprep.subr.mxu0 0.0
    %707 = vmatpush1.xpose.msra.mxu0 %v672
    %708 = vmatprep.subr.mxu0 0.0
    %709 = vmatpush2.xpose.msra.mxu0 0.0
    %710 = vmatprep.subr.mxu0 0.0
    %711 = vmatpush2.xpose.msra.mxu0 0.0
    %712 = vmatprep.subr.mxu0 0.0
    %713 = vmatpush2.xpose.msra.mxu0 0.0
    %714 = vmatprep.subr.mxu0 0.0
    %715 = vmatpush2.xpose.msra.mxu0 0.0
    %716 = vmatprep.subr.mxu0 0.0
    %717 = vmatpush2.xpose.msra.mxu0 0.0
    %718 = vmatprep.subr.mxu0 0.0
    %719 = vmatpush2.xpose.msra.mxu0 0.0
    %720 = vmatprep.subr.mxu0 0.0
    %721 = vmatpush2.xpose.msra.mxu0 0.0
    %722 = vmatprep.subr.mxu0 0.0
    %723 = vmatpush2.xpose.msra.mxu0 0.0
    %724 = vmatprep.subr.mxu0 0.0
    %725 = vmatpush2.xpose.msra.mxu0 0.0
    %726 = vmatprep.subr.mxu0 0.0
    %727 = vmatpush2.xpose.msra.mxu0 0.0
    %728 = vmatprep.subr.mxu0 0.0
    %729 = vmatpush2.xpose.msra.mxu0 0.0
    %730 = vmatprep.subr.mxu0 0.0
    %731 = vmatpush2.xpose.msra.mxu0 0.0
    %732 = vmatprep.subr.mxu0 0.0
    %733 = vmatpush2.xpose.msra.mxu0 0.0
    %734 = vmatprep.subr.mxu0 0.0
    %735 = vmatpush2.xpose.msra.mxu0 0.0
    %736 = vmatprep.subr.mxu0 0.0
    %737 = vmatpush2.xpose.msra.mxu0 0.0
    %738 = vmatprep.subr.mxu0 0.0
    %739 = vmatpush2.xpose.msra.mxu0 0.0
    %740 = vmatprep.mubr.f32.mxu0 0.0
    %741 = vmatmul.mubr.f32.gmra.mxu0 %v668
    %v742 = vpop.f32.mrf.mxu0
    %v743 = vadd.f32 %v166, %v742
    %v744 = vpop.f32.mrf.mxu0
    %745 = vmatprep.mubr.f32.mxu0 0.0
    %746 = vmatmul.mubr.f32.gmra.mxu0 %v670
    %v747 = vpop.f32.mrf.mxu0
    %v748 = vadd.f32 %v167, %v747
    %v749 = vpop.f32.mrf.mxu0
    %750 = vdwg.mxu0
    %v751 = vsel %vm350, %v743, -inf
    %752 = vmax.xlane.f32.xlu0 %v751
    %v753 = vpop.xlane.xlu0 %752
    %v754 = vsel %vm350, %v748, -inf
    %755 = vmax.xlane.f32.xlu0 %v754
    %v756 = vpop.xlane.xlu0 %755
    %v757 = vsub.f32 %v743, %v753
    %v758 = vsub.f32 %v748, %v756
    %v759 = vmul.f32 %v757, 1.442695
    %v760 = vpow.pop %v759
    %v761 = vmul.f32 %v758, 1.442695
    %v762 = vpow.pop %v761
    %v763 = vsel %vm350, %v760, 0.0
    %764 = vadd.xlane.f32.xlu0 %v763
    %v765 = vpop.xlane.xlu0 %764
    %v766 = vsel %vm350, %v762, 0.0
    %767 = vadd.xlane.f32.xlu0 %v766
    %v768 = vpop.xlane.xlu0 %767
    %v769 = vrcp.pop %v765
    %v770 = vrcp.pop %v768
    %v771 = vmul.f32 %v760, %v769
    %v772 = vmul.f32 %v762, %v770
    %773 = vrot.lane.b32.xlu0 %v252, 48
    %v774 = vpop.permute.xlu0 %773
    %775 = vrot.lane.b32.xlu0 %v257, 48
    %v776 = vpop.permute.xlu0 %775
    %v780 = vsel %vm350, %v771, 0
    %v783 = vsel %vm350, %v772, 0
    %785 = vmatprep.subr.mxu0 0.0
    %786 = vmatpush1.msra.mxu0 0.0
    %787 = vmatprep.subr.mxu0 0.0
    %788 = vmatpush1.msra.mxu0 0.0
    %789 = vmatprep.subr.mxu0 0.0
    %790 = vmatpush1.msra.mxu0 0.0
    %791 = vmatprep.subr.mxu0 0.0
    %792 = vmatpush1.msra.mxu0 0.0
    %793 = vmatprep.subr.mxu0 0.0
    %794 = vmatpush1.msra.mxu0 0.0
    %795 = vmatprep.subr.mxu0 0.0
    %796 = vmatpush1.msra.mxu0 0.0
    %797 = vmatprep.subr.mxu0 0.0
    %798 = vmatpush1.msra.mxu0 0.0
    %799 = vmatprep.subr.mxu0 0.0
    %800 = vmatpush1.msra.mxu0 0.0
    %801 = vmatprep.subr.mxu0 0.0
    %802 = vmatpush1.msra.mxu0 0.0
    %803 = vmatprep.subr.mxu0 0.0
    %804 = vmatpush1.msra.mxu0 0.0
    %805 = vmatprep.subr.mxu0 0.0
    %806 = vmatpush1.msra.mxu0 0.0
    %807 = vmatprep.subr.mxu0 0.0
    %808 = vmatpush1.msra.mxu0 0.0
    %809 = vmatprep.subr.mxu0 0.0
    %810 = vmatpush1.msra.mxu0 0.0
    %811 = vmatprep.subr.mxu0 0.0
    %812 = vmatpush1.msra.mxu0 0.0
    %813 = vmatprep.subr.mxu0 0.0
    %814 = vmatpush1.msra.mxu0 %v776
    %815 = vmatprep.subr.mxu0 0.0
    %816 = vmatpush1.msra.mxu0 %v774
    %817 = vmatprep.subr.mxu0 0.0
    %818 = vmatpush2.msra.mxu0 0.0
    %819 = vmatprep.subr.mxu0 0.0
    %820 = vmatpush2.msra.mxu0 0.0
    %821 = vmatprep.subr.mxu0 0.0
    %822 = vmatpush2.msra.mxu0 0.0
    %823 = vmatprep.subr.mxu0 0.0
    %824 = vmatpush2.msra.mxu0 0.0
    %825 = vmatprep.subr.mxu0 0.0
    %826 = vmatpush2.msra.mxu0 0.0
    %827 = vmatprep.subr.mxu0 0.0
    %828 = vmatpush2.msra.mxu0 0.0
    %829 = vmatprep.subr.mxu0 0.0
    %830 = vmatpush2.msra.mxu0 0.0
    %831 = vmatprep.subr.mxu0 0.0
    %832 = vmatpush2.msra.mxu0 0.0
    %833 = vmatprep.subr.mxu0 0.0
    %834 = vmatpush2.msra.mxu0 0.0
    %835 = vmatprep.subr.mxu0 0.0
    %836 = vmatpush2.msra.mxu0 0.0
    %837 = vmatprep.subr.mxu0 0.0
    %838 = vmatpush2.msra.mxu0 0.0
    %839 = vmatprep.subr.mxu0 0.0
    %840 = vmatpush2.msra.mxu0 0.0
    %841 = vmatprep.subr.mxu0 0.0
    %842 = vmatpush2.msra.mxu0 0.0
    %843 = vmatprep.subr.mxu0 0.0
    %844 = vmatpush2.msra.mxu0 0.0
    %845 = vmatprep.subr.mxu0 0.0
    %846 = vmatpush2.msra.mxu0 0.0
    %847 = vmatprep.subr.mxu0 0.0
    %848 = vmatpush2.msra.mxu0 0.0
    %849 = vmatprep.mubr.f32.mxu0 0.0
    %850 = vmatmul.mubr.f32.gmra.mxu0 %v780
    %v851 = vpop.f32.mrf.mxu0
    %v852 = vadd.f32 0.0, %v851
    %v853 = vpop.f32.mrf.mxu0
    %854 = vmatprep.mubr.f32.mxu0 0.0
    %855 = vmatmul.mubr.f32.gmra.mxu0 %v783
    %v856 = vpop.f32.mrf.mxu0
    %v857 = vadd.f32 0.0, %v856
    %v858 = vpop.f32.mrf.mxu0
    %859 = vdwg.mxu0
    %860 = vrot.lane.b32.xlu0 %v252, 104
    %v861 = vpop.permute.xlu0 %860
    %862 = vrot.lane.b32.xlu0 %v257, 104
    %v863 = vpop.permute.xlu0 %862
    %864 = vrot.lane.b32.xlu0 %v252, 72
    %v865 = vpop.permute.xlu0 %864
    %866 = vrot.lane.b32.xlu0 %v257, 72
    %v867 = vpop.permute.xlu0 %866
    %v868 = vsel %vm266, %v861, 0
    %v870 = vsel %vm266, %v863, 0
    %v872 = vsel %vm266, %v865, 0
    %v874 = vsel %vm266, %v867, 0
    %876 = vmatprep.subr.mxu0 0.0
    %877 = vmatpush1.xpose.msra.mxu0 0.0
    %878 = vmatprep.subr.mxu0 0.0
    %879 = vmatpush1.xpose.msra.mxu0 0.0
    %880 = vmatprep.subr.mxu0 0.0
    %881 = vmatpush1.xpose.msra.mxu0 0.0
    %882 = vmatprep.subr.mxu0 0.0
    %883 = vmatpush1.xpose.msra.mxu0 0.0
    %884 = vmatprep.subr.mxu0 0.0
    %885 = vmatpush1.xpose.msra.mxu0 0.0
    %886 = vmatprep.subr.mxu0 0.0
    %887 = vmatpush1.xpose.msra.mxu0 0.0
    %888 = vmatprep.subr.mxu0 0.0
    %889 = vmatpush1.xpose.msra.mxu0 0.0
    %890 = vmatprep.subr.mxu0 0.0
    %891 = vmatpush1.xpose.msra.mxu0 0.0
    %892 = vmatprep.subr.mxu0 0.0
    %893 = vmatpush1.xpose.msra.mxu0 0.0
    %894 = vmatprep.subr.mxu0 0.0
    %895 = vmatpush1.xpose.msra.mxu0 0.0
    %896 = vmatprep.subr.mxu0 0.0
    %897 = vmatpush1.xpose.msra.mxu0 0.0
    %898 = vmatprep.subr.mxu0 0.0
    %899 = vmatpush1.xpose.msra.mxu0 0.0
    %900 = vmatprep.subr.mxu0 0.0
    %901 = vmatpush1.xpose.msra.mxu0 0.0
    %902 = vmatprep.subr.mxu0 0.0
    %903 = vmatpush1.xpose.msra.mxu0 0.0
    %904 = vmatprep.subr.mxu0 0.0
    %905 = vmatpush1.xpose.msra.mxu0 %v874
    %906 = vmatprep.subr.mxu0 0.0
    %907 = vmatpush1.xpose.msra.mxu0 %v872
    %908 = vmatprep.subr.mxu0 0.0
    %909 = vmatpush2.xpose.msra.mxu0 0.0
    %910 = vmatprep.subr.mxu0 0.0
    %911 = vmatpush2.xpose.msra.mxu0 0.0
    %912 = vmatprep.subr.mxu0 0.0
    %913 = vmatpush2.xpose.msra.mxu0 0.0
    %914 = vmatprep.subr.mxu0 0.0
    %915 = vmatpush2.xpose.msra.mxu0 0.0
    %916 = vmatprep.subr.mxu0 0.0
    %917 = vmatpush2.xpose.msra.mxu0 0.0
    %918 = vmatprep.subr.mxu0 0.0
    %919 = vmatpush2.xpose.msra.mxu0 0.0
    %920 = vmatprep.subr.mxu0 0.0
    %921 = vmatpush2.xpose.msra.mxu0 0.0
    %922 = vmatprep.subr.mxu0 0.0
    %923 = vmatpush2.xpose.msra.mxu0 0.0
    %924 = vmatprep.subr.mxu0 0.0
    %925 = vmatpush2.xpose.msra.mxu0 0.0
    %926 = vmatprep.subr.mxu0 0.0
    %927 = vmatpush2.xpose.msra.mxu0 0.0
    %928 = vmatprep.subr.mxu0 0.0
    %929 = vmatpush2.xpose.msra.mxu0 0.0
    %930 = vmatprep.subr.mxu0 0.0
    %931 = vmatpush2.xpose.msra.mxu0 0.0
    %932 = vmatprep.subr.mxu0 0.0
    %933 = vmatpush2.xpose.msra.mxu0 0.0
    %934 = vmatprep.subr.mxu0 0.0
    %935 = vmatpush2.xpose.msra.mxu0 0.0
    %936 = vmatprep.subr.mxu0 0.0
    %937 = vmatpush2.xpose.msra.mxu0 0.0
    %938 = vmatprep.subr.mxu0 0.0
    %939 = vmatpush2.xpose.msra.mxu0 0.0
    %940 = vmatprep.mubr.f32.mxu0 0.0
    %941 = vmatmul.mubr.f32.gmra.mxu0 %v868
    %v942 = vpop.f32.mrf.mxu0
    %v943 = vadd.f32 %v166, %v942
    %v944 = vpop.f32.mrf.mxu0
    %945 = vmatprep.mubr.f32.mxu0 0.0
    %946 = vmatmul.mubr.f32.gmra.mxu0 %v870
    %v947 = vpop.f32.mrf.mxu0
    %v948 = vadd.f32 %v167, %v947
    %v949 = vpop.f32.mrf.mxu0
    %950 = vdwg.mxu0
    %v951 = vsel %vm350, %v943, -inf
    %952 = vmax.xlane.f32.xlu0 %v951
    %v953 = vpop.xlane.xlu0 %952
    %v954 = vsel %vm350, %v948, -inf
    %955 = vmax.xlane.f32.xlu0 %v954
    %v956 = vpop.xlane.xlu0 %955
    %v957 = vsub.f32 %v943, %v953
    %v958 = vsub.f32 %v948, %v956
    %v959 = vmul.f32 %v957, 1.442695
    %v960 = vpow.pop %v959
    %v961 = vmul.f32 %v958, 1.442695
    %v962 = vpow.pop %v961
    %v963 = vsel %vm350, %v960, 0.0
    %964 = vadd.xlane.f32.xlu0 %v963
    %v965 = vpop.xlane.xlu0 %964
    %v966 = vsel %vm350, %v962, 0.0
    %967 = vadd.xlane.f32.xlu0 %v966
    %v968 = vpop.xlane.xlu0 %967
    %v969 = vrcp.pop %v965
    %v970 = vrcp.pop %v968
    %v971 = vmul.f32 %v960, %v969
    %v972 = vmul.f32 %v962, %v970
    %973 = vrot.lane.b32.xlu0 %v252, 40
    %v974 = vpop.permute.xlu0 %973
    %975 = vrot.lane.b32.xlu0 %v257, 40
    %v976 = vpop.permute.xlu0 %975
    %v980 = vsel %vm350, %v971, 0
    %v983 = vsel %vm350, %v972, 0
    %985 = vmatprep.subr.mxu0 0.0
    %986 = vmatpush1.msra.mxu0 0.0
    %987 = vmatprep.subr.mxu0 0.0
    %988 = vmatpush1.msra.mxu0 0.0
    %989 = vmatprep.subr.mxu0 0.0
    %990 = vmatpush1.msra.mxu0 0.0
    %991 = vmatprep.subr.mxu0 0.0
    %992 = vmatpush1.msra.mxu0 0.0
    %993 = vmatprep.subr.mxu0 0.0
    %994 = vmatpush1.msra.mxu0 0.0
    %995 = vmatprep.subr.mxu0 0.0
    %996 = vmatpush1.msra.mxu0 0.0
    %997 = vmatprep.subr.mxu0 0.0
    %998 = vmatpush1.msra.mxu0 0.0
    %999 = vmatprep.subr.mxu0 0.0
    %1000 = vmatpush1.msra.mxu0 0.0
    %1001 = vmatprep.subr.mxu0 0.0
    %1002 = vmatpush1.msra.mxu0 0.0
    %1003 = vmatprep.subr.mxu0 0.0
    %1004 = vmatpush1.msra.mxu0 0.0
    %1005 = vmatprep.subr.mxu0 0.0
    %1006 = vmatpush1.msra.mxu0 0.0
    %1007 = vmatprep.subr.mxu0 0.0
    %1008 = vmatpush1.msra.mxu0 0.0
    %1009 = vmatprep.subr.mxu0 0.0
    %1010 = vmatpush1.msra.mxu0 0.0
    %1011 = vmatprep.subr.mxu0 0.0
    %1012 = vmatpush1.msra.mxu0 0.0
    %1013 = vmatprep.subr.mxu0 0.0
    %1014 = vmatpush1.msra.mxu0 %v976
    %1015 = vmatprep.subr.mxu0 0.0
    %1016 = vmatpush1.msra.mxu0 %v974
    %1017 = vmatprep.subr.mxu0 0.0
    %1018 = vmatpush2.msra.mxu0 0.0
    %1019 = vmatprep.subr.mxu0 0.0
    %1020 = vmatpush2.msra.mxu0 0.0
    %1021 = vmatprep.subr.mxu0 0.0
    %1022 = vmatpush2.msra.mxu0 0.0
    %1023 = vmatprep.subr.mxu0 0.0
    %1024 = vmatpush2.msra.mxu0 0.0
    %1025 = vmatprep.subr.mxu0 0.0
    %1026 = vmatpush2.msra.mxu0 0.0
    %1027 = vmatprep.subr.mxu0 0.0
    %1028 = vmatpush2.msra.mxu0 0.0
    %1029 = vmatprep.subr.mxu0 0.0
    %1030 = vmatpush2.msra.mxu0 0.0
    %1031 = vmatprep.subr.mxu0 0.0
    %1032 = vmatpush2.msra.mxu0 0.0
    %1033 = vmatprep.subr.mxu0 0.0
    %1034 = vmatpush2.msra.mxu0 0.0
    %1035 = vmatprep.subr.mxu0 0.0
    %1036 = vmatpush2.msra.mxu0 0.0
    %1037 = vmatprep.subr.mxu0 0.0
    %1038 = vmatpush2.msra.mxu0 0.0
    %1039 = vmatprep.subr.mxu0 0.0
    %1040 = vmatpush2.msra.mxu0 0.0
    %1041 = vmatprep.subr.mxu0 0.0
    %1042 = vmatpush2.msra.mxu0 0.0
    %1043 = vmatprep.subr.mxu0 0.0
    %1044 = vmatpush2.msra.mxu0 0.0
    %1045 = vmatprep.subr.mxu0 0.0
    %1046 = vmatpush2.msra.mxu0 0.0
    %1047 = vmatprep.subr.mxu0 0.0
    %1048 = vmatpush2.msra.mxu0 0.0
    %1049 = vmatprep.mubr.f32.mxu0 0.0
    %1050 = vmatmul.mubr.f32.gmra.mxu0 %v980
    %v1051 = vpop.f32.mrf.mxu0
    %v1052 = vadd.f32 0.0, %v1051
    %v1053 = vpop.f32.mrf.mxu0
    %1054 = vmatprep.mubr.f32.mxu0 0.0
    %1055 = vmatmul.mubr.f32.gmra.mxu0 %v983
    %v1056 = vpop.f32.mrf.mxu0
    %v1057 = vadd.f32 0.0, %v1056
    %v1058 = vpop.f32.mrf.mxu0
    %1059 = vdwg.mxu0
    %1062 = vrot.lane.b32.xlu0 %v652, 8
    %v1063 = vpop.permute.xlu0 %1062
    %1064 = vrot.lane.b32.xlu0 %v657, 8
    %v1065 = vpop.permute.xlu0 %1064
    %1070 = vrot.lane.b32.xlu0 %v852, 16
    %v1071 = vpop.permute.xlu0 %1070
    %1072 = vrot.lane.b32.xlu0 %v857, 16
    %v1073 = vpop.permute.xlu0 %1072
    %1078 = vrot.lane.b32.xlu0 %v1052, 24
    %v1079 = vpop.permute.xlu0 %1078
    %1080 = vrot.lane.b32.xlu0 %v1057, 24
    %v1081 = vpop.permute.xlu0 %1080
    %v1084 = vsel %vm266, %v452, %v1063
    %v1085 = vsel %vm266, %v457, %v1065
    %v1086 = vsel %vm350, %v1084, %v1071
    %v1087 = vsel %vm350, %v1085, %v1073
    %vm1088 = vcmask 195584
    %v1089 = vsel %vm1088, %v1086, %v1079
    %v1090 = vsel %vm1088, %v1087, %v1081
    %v1091 = vld [vmem:[%s6] sm:$0xff]
    %v1092 = vld [vmem:[%s6 + $0x8] sm:$0xff]
    %v1093 = vld [vmem:[%s6 + $0x10] sm:$0xff]
    %v1094 = vld [vmem:[%s6 + $0x18] sm:$0xff]
    %v1095 = vld [vmem:[%s7] sm:$0x1]
    %v1097 = vlaneseq
    %v1098 = vshrl.u32 %v1097, 7
    %v1099 = vsub.s32 0, %v1098
    %v1100 = vrot.slane %v1095, %v1099
    %v1103 = vsel %vm78, %v1089, 0
    %v1106 = vsel %vm78, %v1090, 0
    %1108 = vmatprep.subr.mxu0 0.0
    %1109 = vmatpush1.msra.mxu0 0.0
    %1110 = vmatprep.subr.mxu0 0.0
    %1111 = vmatpush1.msra.mxu0 0.0
    %1112 = vmatprep.subr.mxu0 0.0
    %1113 = vmatpush1.msra.mxu0 0.0
    %1114 = vmatprep.subr.mxu0 0.0
    %1115 = vmatpush1.msra.mxu0 0.0
    %1116 = vmatprep.subr.mxu0 0.0
    %1117 = vmatpush1.msra.mxu0 0.0
    %1118 = vmatprep.subr.mxu0 0.0
    %1119 = vmatpush1.msra.mxu0 0.0
    %1120 = vmatprep.subr.mxu0 0.0
    %1121 = vmatpush1.msra.mxu0 0.0
    %1122 = vmatprep.subr.mxu0 0.0
    %1123 = vmatpush1.msra.mxu0 0.0
    %1124 = vmatprep.subr.mxu0 0.0
    %1125 = vmatpush1.msra.mxu0 0.0
    %1126 = vmatprep.subr.mxu0 0.0
    %1127 = vmatpush1.msra.mxu0 0.0
    %1128 = vmatprep.subr.mxu0 0.0
    %1129 = vmatpush1.msra.mxu0 0.0
    %1130 = vmatprep.subr.mxu0 0.0
    %1131 = vmatpush1.msra.mxu0 0.0
    %1132 = vmatprep.subr.mxu0 0.0
    %1133 = vmatpush1.msra.mxu0 %v1094
    %1134 = vmatprep.subr.mxu0 0.0
    %1135 = vmatpush1.msra.mxu0 %v1093
    %1136 = vmatprep.subr.mxu0 0.0
    %1137 = vmatpush1.msra.mxu0 %v1092
    %1138 = vmatprep.subr.mxu0 0.0
    %1139 = vmatpush1.msra.mxu0 %v1091
    %1140 = vmatprep.subr.mxu0 0.0
    %1141 = vmatpush2.msra.mxu0 0.0
    %1142 = vmatprep.subr.mxu0 0.0
    %1143 = vmatpush2.msra.mxu0 0.0
    %1144 = vmatprep.subr.mxu0 0.0
    %1145 = vmatpush2.msra.mxu0 0.0
    %1146 = vmatprep.subr.mxu0 0.0
    %1147 = vmatpush2.msra.mxu0 0.0
    %1148 = vmatprep.subr.mxu0 0.0
    %1149 = vmatpush2.msra.mxu0 0.0
    %1150 = vmatprep.subr.mxu0 0.0
    %1151 = vmatpush2.msra.mxu0 0.0
    %1152 = vmatprep.subr.mxu0 0.0
    %1153 = vmatpush2.msra.mxu0 0.0
    %1154 = vmatprep.subr.mxu0 0.0
    %1155 = vmatpush2.msra.mxu0 0.0
    %1156 = vmatprep.subr.mxu0 0.0
    %1157 = vmatpush2.msra.mxu0 0.0
    %1158 = vmatprep.subr.mxu0 0.0
    %1159 = vmatpush2.msra.mxu0 0.0
    %1160 = vmatprep.subr.mxu0 0.0
    %1161 = vmatpush2.msra.mxu0 0.0
    %1162 = vmatprep.subr.mxu0 0.0
    %1163 = vmatpush2.msra.mxu0 0.0
    %1164 = vmatprep.subr.mxu0 0.0
    %1165 = vmatpush2.msra.mxu0 0.0
    %1166 = vmatprep.subr.mxu0 0.0
    %1167 = vmatpush2.msra.mxu0 0.0
    %1168 = vmatprep.subr.mxu0 0.0
    %1169 = vmatpush2.msra.mxu0 0.0
    %1170 = vmatprep.subr.mxu0 0.0
    %1171 = vmatpush2.msra.mxu0 0.0
    %1172 = vmatprep.mubr.f32.mxu0 0.0
    %1173 = vmatmul.mubr.f32.gmra.mxu0 %v1103
    %v1174 = vpop.f32.mrf.mxu0
    %v1175 = vadd.f32 %v1100, %v1174
    %v1176 = vpop.f32.mrf.mxu0
    %1177 = vmatprep.mubr.f32.mxu0 0.0
    %1178 = vmatmul.mubr.f32.gmra.mxu0 %v1106
    %v1179 = vpop.f32.mrf.mxu0
    %v1180 = vadd.f32 %v1100, %v1179
    %v1181 = vpop.f32.mrf.mxu0
    %1182 = vdwg.mxu0
    %v1183 = vadd.f32 %v164, %v1175
    %v1184 = vadd.f32 %v165, %v1180
    %v1185 = vld [vmem:[%s8] sm:$0x1]
    %v1186 = vld [vmem:[%s9] sm:$0x1]
    %v1187 = vsel %vm78, %v1183, 0.0
    %1188 = vadd.xlane.f32.xlu0 %v1187
    %v1189 = vpop.xlane.xlu0 %1188
    %v1190 = vsel %vm78, %v1184, 0.0
    %1191 = vadd.xlane.f32.xlu0 %v1190
    %v1192 = vpop.xlane.xlu0 %1191
    %v1193 = vrcp.pop 32.0
    %v1194 = vmul.f32 %v1189, %v1193
    %v1195 = vmul.f32 %v1192, %v1193
    %v1196 = vsub.f32 %v1183, %v1194
    %v1197 = vsub.f32 %v1184, %v1195
    %v1198 = vmul.f32 %v1196, %v1196
    %v1199 = vmul.f32 %v1197, %v1197
    %v1200 = vsel %vm78, %v1198, 0.0
    %1201 = vadd.xlane.f32.xlu0 %v1200
    %v1202 = vpop.xlane.xlu0 %1201
    %v1203 = vsel %vm78, %v1199, 0.0
    %1204 = vadd.xlane.f32.xlu0 %v1203
    %v1205 = vpop.xlane.xlu0 %1204
    %v1206 = vmul.f32 %v1202, %v1193
    %v1207 = vmul.f32 %v1205, %v1193
    %v1208 = vadd.f32 %v1206, 1e-05
    %v1209 = vadd.f32 %v1207, 1e-05
    %v1210 = vrsqrt.pop %v1208
    %v1211 = vrsqrt.pop %v1209
    %v1212 = vmul.f32 %v1196, %v1210
    %v1213 = vmul.f32 %v1197, %v1211
    %v1215 = vlaneseq
    %v1216 = vshrl.u32 %v1215, 7
    %v1217 = vsub.s32 0, %v1216
    %v1218 = vrot.slane %v1185, %v1217
    %v1220 = vmul.f32 %v1212, %v1218
    %v1221 = vmul.f32 %v1213, %v1218
    %v1223 = vlaneseq
    %v1224 = vshrl.u32 %v1223, 7
    %v1225 = vsub.s32 0, %v1224
    %v1226 = vrot.slane %v1186, %v1225
    %v1228 = vadd.f32 %v1220, %v1226
    %v1229 = vadd.f32 %v1221, %v1226
    %v1230 = vld [vmem:[%s12] sm:$0xff]
    %v1231 = vld [vmem:[%s12 + $0x8] sm:$0xff]
    %v1232 = vld [vmem:[%s12 + $0x10] sm:$0xff]
    %v1233 = vld [vmem:[%s12 + $0x18] sm:$0xff]
    %v1234 = vld [vmem:[%s13] sm:$0x1]
    %v1236 = vlaneseq
    %v1237 = vshrl.u32 %v1236, 7
    %v1238 = vsub.s32 0, %v1237
    %v1239 = vrot.slane %v1234, %v1238
    %v1242 = vsel %vm78, %v1228, 0
    %v1245 = vsel %vm78, %v1229, 0
    %1247 = vmatprep.subr.mxu0 0.0
    %1248 = vmatpush1.msra.mxu0 0.0
    %1249 = vmatprep.subr.mxu0 0.0
    %1250 = vmatpush1.msra.mxu0 0.0
    %1251 = vmatprep.subr.mxu0 0.0
    %1252 = vmatpush1.msra.mxu0 0.0
    %1253 = vmatprep.subr.mxu0 0.0
    %1254 = vmatpush1.msra.mxu0 0.0
    %1255 = vmatprep.subr.mxu0 0.0
    %1256 = vmatpush1.msra.mxu0 0.0
    %1257 = vmatprep.subr.mxu0 0.0
    %1258 = vmatpush1.msra.mxu0 0.0
    %1259 = vmatprep.subr.mxu0 0.0
    %1260 = vmatpush1.msra.mxu0 0.0
    %1261 = vmatprep.subr.mxu0 0.0
    %1262 = vmatpush1.msra.mxu0 0.0
    %1263 = vmatprep.subr.mxu0 0.0
    %1264 = vmatpush1.msra.mxu0 0.0
    %1265 = vmatprep.subr.mxu0 0.0
    %1266 = vmatpush1.msra.mxu0 0.0
    %1267 = vmatprep.subr.mxu0 0.0
    %1268 = vmatpush1.msra.mxu0 0.0
    %1269 = vmatprep.subr.mxu0 0.0
    %1270 = vmatpush1.msra.mxu0 0.0
    %1271 = vmatprep.subr.mxu0 0.0
    %1272 = vmatpush1.msra.mxu0 %v1233
    %1273 = vmatprep.subr.mxu0 0.0
    %1274 = vmatpush1.msra.mxu0 %v1232
    %1275 = vmatprep.subr.mxu0 0.0
    %1276 = vmatpush1.msra.mxu0 %v1231
    %1277 = vmatprep.subr.mxu0 0.0
    %1278 = vmatpush1.msra.mxu0 %v1230
    %1279 = vmatprep.subr.mxu0 0.0
    %1280 = vmatpush2.msra.mxu0 0.0
    %1281 = vmatprep.subr.mxu0 0.0
    %1282 = vmatpush2.msra.mxu0 0.0
    %1283 = vmatprep.subr.mxu0 0.0
    %1284 = vmatpush2.msra.mxu0 0.0
    %1285 = vmatprep.subr.mxu0 0.0
    %1286 = vmatpush2.msra.mxu0 0.0
    %1287 = vmatprep.subr.mxu0 0.0
    %1288 = vmatpush2.msra.mxu0 0.0
    %1289 = vmatprep.subr.mxu0 0.0
    %1290 = vmatpush2.msra.mxu0 0.0
    %1291 = vmatprep.subr.mxu0 0.0
    %1292 = vmatpush2.msra.mxu0 0.0
    %1293 = vmatprep.subr.mxu0 0.0
    %1294 = vmatpush2.msra.mxu0 0.0
    %1295 = vmatprep.subr.mxu0 0.0
    %1296 = vmatpush2.msra.mxu0 0.0
    %1297 = vmatprep.subr.mxu0 0.0
    %1298 = vmatpush2.msra.mxu0 0.0
    %1299 = vmatprep.subr.mxu0 0.0
    %1300 = vmatpush2.msra.mxu0 0.0
    %1301 = vmatprep.subr.mxu0 0.0
    %1302 = vmatpush2.msra.mxu0 0.0
    %1303 = vmatprep.subr.mxu0 0.0
    %1304 = vmatpush2.msra.mxu0 0.0
    %1305 = vmatprep.subr.mxu0 0.0
    %1306 = vmatpush2.msra.mxu0 0.0
    %1307 = vmatprep.subr.mxu0 0.0
    %1308 = vmatpush2.msra.mxu0 0.0
    %1309 = vmatprep.subr.mxu0 0.0
    %1310 = vmatpush2.msra.mxu0 0.0
    %1311 = vmatprep.mubr.f32.mxu0 0.0
    %1312 = vmatmul.mubr.f32.gmra.mxu0 %v1242
    %v1313 = vpop.f32.mrf.mxu0
    %v1314 = vadd.f32 %v1239, %v1313
    %v1315 = vpop.f32.mrf.mxu0
    %1316 = vmatprep.mubr.f32.mxu0 0.0
    %1317 = vmatmul.mubr.f32.gmra.mxu0 %v1245
    %v1318 = vpop.f32.mrf.mxu0
    %v1319 = vadd.f32 %v1239, %v1318
    %v1320 = vpop.f32.mrf.mxu0
    %1321 = vdwg.mxu0
    %v1322 = vmax.f32 %v1314, 0.0
    %v1323 = vmax.f32 %v1319, 0.0
    %v1324 = vld [vmem:[%s14] sm:$0xff]
    %v1325 = vld [vmem:[%s14 + $0x8] sm:$0xff]
    %v1326 = vld [vmem:[%s14 + $0x10] sm:$0xff]
    %v1327 = vld [vmem:[%s14 + $0x18] sm:$0xff]
    %v1328 = vld [vmem:[%s14 + $0x20] sm:$0xff]
    %v1329 = vld [vmem:[%s14 + $0x28] sm:$0xff]
    %v1330 = vld [vmem:[%s14 + $0x30] sm:$0xff]
    %v1331 = vld [vmem:[%s14 + $0x38] sm:$0xff]
    %v1332 = vld [vmem:[%s15] sm:$0x1]
    %v1334 = vlaneseq
    %v1335 = vshrl.u32 %v1334, 7
    %v1336 = vsub.s32 0, %v1335
    %v1337 = vrot.slane %v1332, %v1336
    %vm1339 = vcmask 523264
    %v1341 = vsel %vm1339, %v1322, 0
    %v1344 = vsel %vm1339, %v1323, 0
    %1346 = vmatprep.subr.mxu0 0.0
    %1347 = vmatpush1.msra.mxu0 0.0
    %1348 = vmatprep.subr.mxu0 0.0
    %1349 = vmatpush1.msra.mxu0 0.0
    %1350 = vmatprep.subr.mxu0 0.0
    %1351 = vmatpush1.msra.mxu0 0.0
    %1352 = vmatprep.subr.mxu0 0.0
    %1353 = vmatpush1.msra.mxu0 0.0
    %1354 = vmatprep.subr.mxu0 0.0
    %1355 = vmatpush1.msra.mxu0 0.0
    %1356 = vmatprep.subr.mxu0 0.0
    %1357 = vmatpush1.msra.mxu0 0.0
    %1358 = vmatprep.subr.mxu0 0.0
    %1359 = vmatpush1.msra.mxu0 0.0
    %1360 = vmatprep.subr.mxu0 0.0
    %1361 = vmatpush1.msra.mxu0 0.0
    %1362 = vmatprep.subr.mxu0 0.0
    %1363 = vmatpush1.msra.mxu0 %v1331
    %1364 = vmatprep.subr.mxu0 0.0
    %1365 = vmatpush1.msra.mxu0 %v1330
    %1366 = vmatprep.subr.mxu0 0.0
    %1367 = vmatpush1.msra.mxu0 %v1329
    %1368 = vmatprep.subr.mxu0 0.0
    %1369 = vmatpush1.msra.mxu0 %v1328
    %1370 = vmatprep.subr.mxu0 0.0
    %1371 = vmatpush1.msra.mxu0 %v1327
    %1372 = vmatprep.subr.mxu0 0.0
    %1373 = vmatpush1.msra.mxu0 %v1326
    %1374 = vmatprep.subr.mxu0 0.0
    %1375 = vmatpush1.msra.mxu0 %v1325
    %1376 = vmatprep.subr.mxu0 0.0
    %1377 = vmatpush1.msra.mxu0 %v1324
    %1378 = vmatprep.subr.mxu0 0.0
    %1379 = vmatpush2.msra.mxu0 0.0
    %1380 = vmatprep.subr.mxu0 0.0
    %1381 = vmatpush2.msra.mxu0 0.0
    %1382 = vmatprep.subr.mxu0 0.0
    %1383 = vmatpush2.msra.mxu0 0.0
    %1384 = vmatprep.subr.mxu0 0.0
    %1385 = vmatpush2.msra.mxu0 0.0
    %1386 = vmatprep.subr.mxu0 0.0
    %1387 = vmatpush2.msra.mxu0 0.0
    %1388 = vmatprep.subr.mxu0 0.0
    %1389 = vmatpush2.msra.mxu0 0.0
    %1390 = vmatprep.subr.mxu0 0.0
    %1391 = vmatpush2.msra.mxu0 0.0
    %1392 = vmatprep.subr.mxu0 0.0
    %1393 = vmatpush2.msra.mxu0 0.0
    %1394 = vmatprep.subr.mxu0 0.0
    %1395 = vmatpush2.msra.mxu0 0.0
    %1396 = vmatprep.subr.mxu0 0.0
    %1397 = vmatpush2.msra.mxu0 0.0
    %1398 = vmatprep.subr.mxu0 0.0
    %1399 = vmatpush2.msra.mxu0 0.0
    %1400 = vmatprep.subr.mxu0 0.0
    %1401 = vmatpush2.msra.mxu0 0.0
    %1402 = vmatprep.subr.mxu0 0.0
    %1403 = vmatpush2.msra.mxu0 0.0
    %1404 = vmatprep.subr.mxu0 0.0
    %1405 = vmatpush2.msra.mxu0 0.0
    %1406 = vmatprep.subr.mxu0 0.0
    %1407 = vmatpush2.msra.mxu0 0.0
    %1408 = vmatprep.subr.mxu0 0.0
    %1409 = vmatpush2.msra.mxu0 0.0
    %1410 = vmatprep.mubr.f32.mxu0 0.0
    %1411 = vmatmul.mubr.f32.gmra.mxu0 %v1341
    %v1412 = vpop.f32.mrf.mxu0
    %v1413 = vadd.f32 %v1337, %v1412
    %v1414 = vpop.f32.mrf.mxu0
    %1415 = vmatprep.mubr.f32.mxu0 0.0
    %1416 = vmatmul.mubr.f32.gmra.mxu0 %v1344
    %v1417 = vpop.f32.mrf.mxu0
    %v1418 = vadd.f32 %v1337, %v1417
    %v1419 = vpop.f32.mrf.mxu0
    %1420 = vdwg.mxu0
    %v1421 = vadd.f32 %v1228, %v1413
    %v1422 = vadd.f32 %v1229, %v1418
    %v1423 = vld [vmem:[%s10] sm:$0x1]
    %v1424 = vld [vmem:[%s11] sm:$0x1]
    %v1425 = vsel %vm78, %v1421, 0.0
    %1426 = vadd.xlane.f32.xlu0 %v1425
    %v1427 = vpop.xlane.xlu0 %1426
    %v1428 = vsel %vm78, %v1422, 0.0
    %1429 = vadd.xlane.f32.xlu0 %v1428
    %v1430 = vpop.xlane.xlu0 %1429
    %v1431 = vmul.f32 %v1427, %v1193
    %v1432 = vmul.f32 %v1430, %v1193
    %v1433 = vsub.f32 %v1421, %v1431
    %v1434 = vsub.f32 %v1422, %v1432
    %v1435 = vmul.f32 %v1433, %v1433
    %v1436 = vmul.f32 %v1434, %v1434
    %v1437 = vsel %vm78, %v1435, 0.0
    %1438 = vadd.xlane.f32.xlu0 %v1437
    %v1439 = vpop.xlane.xlu0 %1438
    %v1440 = vsel %vm78, %v1436, 0.0
    %1441 = vadd.xlane.f32.xlu0 %v1440
    %v1442 = vpop.xlane.xlu0 %1441
    %v1443 = vmul.f32 %v1439, %v1193
    %v1444 = vmul.f32 %v1442, %v1193
    %v1445 = vadd.f32 %v1443, 1e-05
    %v1446 = vadd.f32 %v1444, 1e-05
    %v1447 = vrsqrt.pop %v1445
    %v1448 = vrsqrt.pop %v1446
    %v1449 = vmul.f32 %v1433, %v1447
    %v1450 = vmul.f32 %v1434, %v1448
    %v1452 = vlaneseq
    %v1453 = vshrl.u32 %v1452, 7
    %v1454 = vsub.s32 0, %v1453
    %v1455 = vrot.slane %v1423, %v1454
    %v1457 = vmul.f32 %v1449, %v1455
    %v1458 = vmul.f32 %v1450, %v1455
    %v1460 = vlaneseq
    %v1461 = vshrl.u32 %v1460, 7
    %v1462 = vsub.s32 0, %v1461
    %v1463 = vrot.slane %v1424, %v1462
    %v1465 = vadd.f32 %v1457, %v1463
    %v1466 = vadd.f32 %v1458, %v1463
    %s1467 = scalar_lea.vmem %s4, 32
    %v1468 = vld [vmem:[%s1467] sm:$0xff]
    %v1469 = vld [vmem:[%s1467 + $0x8] sm:$0xff]
    %v1470 = vld [vmem:[%s1467 + $0x10] sm:$0xff]
    %v1471 = vld [vmem:[%s1467 + $0x18] sm:$0xff]
    %s1472 = scalar_lea.vmem %s5, 1
    %v1473 = vld [vmem:[%s1472] sm:$0x1]
    %v1475 = vlaneseq
    %v1476 = vshrl.u32 %v1475, 7
    %v1477 = vsub.s32 0, %v1476
    %v1478 = vrot.slane %v1473, %v1477
    %v1481 = vsel %vm78, %v1465, 0
    %v1484 = vsel %vm78, %v1466, 0
    %1486 = vmatprep.subr.mxu0 0.0
    %1487 = vmatpush1.msra.mxu0 0.0
    %1488 = vmatprep.subr.mxu0 0.0
    %1489 = vmatpush1.msra.mxu0 0.0
    %1490 = vmatprep.subr.mxu0 0.0
    %1491 = vmatpush1.msra.mxu0 0.0
    %1492 = vmatprep.subr.mxu0 0.0
    %1493 = vmatpush1.msra.mxu0 0.0
    %1494 = vmatprep.subr.mxu0 0.0
    %1495 = vmatpush1.msra.mxu0 0.0
    %1496 = vmatprep.subr.mxu0 0.0
    %1497 = vmatpush1.msra.mxu0 0.0
    %1498 = vmatprep.subr.mxu0 0.0
    %1499 = vmatpush1.msra.mxu0 0.0
    %1500 = vmatprep.subr.mxu0 0.0
    %1501 = vmatpush1.msra.mxu0 0.0
    %1502 = vmatprep.subr.mxu0 0.0
    %1503 = vmatpush1.msra.mxu0 0.0
    %1504 = vmatprep.subr.mxu0 0.0
    %1505 = vmatpush1.msra.mxu0 0.0
    %1506 = vmatprep.subr.mxu0 0.0
    %1507 = vmatpush1.msra.mxu0 0.0
    %1508 = vmatprep.subr.mxu0 0.0
    %1509 = vmatpush1.msra.mxu0 0.0
    %1510 = vmatprep.subr.mxu0 0.0
    %1511 = vmatpush1.msra.mxu0 %v1471
    %1512 = vmatprep.subr.mxu0 0.0
    %1513 = vmatpush1.msra.mxu0 %v1470
    %1514 = vmatprep.subr.mxu0 0.0
    %1515 = vmatpush1.msra.mxu0 %v1469
    %1516 = vmatprep.subr.mxu0 0.0
    %1517 = vmatpush1.msra.mxu0 %v1468
    %1518 = vmatprep.subr.mxu0 0.0
    %1519 = vmatpush2.msra.mxu0 0.0
    %1520 = vmatprep.subr.mxu0 0.0
    %1521 = vmatpush2.msra.mxu0 0.0
    %1522 = vmatprep.subr.mxu0 0.0
    %1523 = vmatpush2.msra.mxu0 0.0
    %1524 = vmatprep.subr.mxu0 0.0
    %1525 = vmatpush2.msra.mxu0 0.0
    %1526 = vmatprep.subr.mxu0 0.0
    %1527 = vmatpush2.msra.mxu0 0.0
    %1528 = vmatprep.subr.mxu0 0.0
    %1529 = vmatpush2.msra.mxu0 0.0
    %1530 = vmatprep.subr.mxu0 0.0
    %1531 = vmatpush2.msra.mxu0 0.0
    %1532 = vmatprep.subr.mxu0 0.0
    %1533 = vmatpush2.msra.mxu0 0.0
    %1534 = vmatprep.subr.mxu0 0.0
    %1535 = vmatpush2.msra.mxu0 0.0
    %1536 = vmatprep.subr.mxu0 0.0
    %1537 = vmatpush2.msra.mxu0 0.0
    %1538 = vmatprep.subr.mxu0 0.0
    %1539 = vmatpush2.msra.mxu0 0.0
    %1540 = vmatprep.subr.mxu0 0.0
    %1541 = vmatpush2.msra.mxu0 0.0
    %1542 = vmatprep.subr.mxu0 0.0
    %1543 = vmatpush2.msra.mxu0 0.0
    %1544 = vmatprep.subr.mxu0 0.0
    %1545 = vmatpush2.msra.mxu0 0.0
    %1546 = vmatprep.subr.mxu0 0.0
    %1547 = vmatpush2.msra.mxu0 0.0
    %1548 = vmatprep.subr.mxu0 0.0
    %1549 = vmatpush2.msra.mxu0 0.0
    %1550 = vmatprep.mubr.f32.mxu0 0.0
    %1551 = vmatmul.mubr.f32.gmra.mxu0 %v1481
    %v1552 = vpop.f32.mrf.mxu0
    %v1553 = vadd.f32 %v1478, %v1552
    %v1554 = vpop.f32.mrf.mxu0
    %1555 = vmatprep.mubr.f32.mxu0 0.0
    %1556 = vmatmul.mubr.f32.gmra.mxu0 %v1484
    %v1557 = vpop.f32.mrf.mxu0
    %v1558 = vadd.f32 %v1478, %v1557
    %v1559 = vpop.f32.mrf.mxu0
    %1560 = vdwg.mxu0
    %1563 = vrot.lane.b32.xlu0 %v1553, 96
    %v1564 = vpop.permute.xlu0 %1563
    %1565 = vrot.lane.b32.xlu0 %v1558, 96
    %v1566 = vpop.permute.xlu0 %1565
    %v1567 = vsel %vm266, %v1553, 0
    %v1569 = vsel %vm266, %v1558, 0
    %v1571 = vsel %vm266, %v1564, 0
    %v1573 = vsel %vm266, %v1566, 0
    %1575 = vmatprep.subr.mxu0 0.0
    %1576 = vmatpush1.xpose.msra.mxu0 0.0
    %1577 = vmatprep.subr.mxu0 0.0
    %1578 = vmatpush1.xpose.msra.mxu0 0.0
    %1579 = vmatprep.subr.mxu0 0.0
    %1580 = vmatpush1.xpose.msra.mxu0 0.0
    %1581 = vmatprep.subr.mxu0 0.0
    %1582 = vmatpush1.xpose.msra.mxu0 0.0
    %1583 = vmatprep.subr.mxu0 0.0
    %1584 = vmatpush1.xpose.msra.mxu0 0.0
    %1585 = vmatprep.subr.mxu0 0.0
    %1586 = vmatpush1.xpose.msra.mxu0 0.0
    %1587 = vmatprep.subr.mxu0 0.0
    %1588 = vmatpush1.xpose.msra.mxu0 0.0
    %1589 = vmatprep.subr.mxu0 0.0
    %1590 = vmatpush1.xpose.msra.mxu0 0.0
    %1591 = vmatprep.subr.mxu0 0.0
    %1592 = vmatpush1.xpose.msra.mxu0 0.0
    %1593 = vmatprep.subr.mxu0 0.0
    %1594 = vmatpush1.xpose.msra.mxu0 0.0
    %1595 = vmatprep.subr.mxu0 0.0
    %1596 = vmatpush1.xpose.msra.mxu0 0.0
    %1597 = vmatprep.subr.mxu0 0.0
    %1598 = vmatpush1.xpose.msra.mxu0 0.0
    %1599 = vmatprep.subr.mxu0 0.0
    %1600 = vmatpush1.xpose.msra.mxu0 0.0
    %1601 = vmatprep.subr.mxu0 0.0
    %1602 = vmatpush1.xpose.msra.mxu0 0.0
    %1603 = vmatprep.subr.mxu0 0.0
    %1604 = vmatpush1.xpose.msra.mxu0 %v1573
    %1605 = vmatprep.subr.mxu0 0.0
    %1606 = vmatpush1.xpose.msra.mxu0 %v1571
    %1607 = vmatprep.subr.mxu0 0.0
    %1608 = vmatpush2.xpose.msra.mxu0 0.0
    %1609 = vmatprep.subr.mxu0 0.0
    %1610 = vmatpush2.xpose.msra.mxu0 0.0
    %1611 = vmatprep.subr.mxu0 0.0
    %1612 = vmatpush2.xpose.msra.mxu0 0.0
    %1613 = vmatprep.subr.mxu0 0.0
    %1614 = vmatpush2.xpose.msra.mxu0 0.0
    %1615 = vmatprep.subr.mxu0 0.0
    %1616 = vmatpush2.xpose.msra.mxu0 0.0
    %1617 = vmatprep.subr.mxu0 0.0
    %1618 = vmatpush2.xpose.msra.mxu0 0.0
    %1619 = vmatprep.subr.mxu0 0.0
    %1620 = vmatpush2.xpose.msra.mxu0 0.0
    %1621 = vmatprep.subr.mxu0 0.0
    %1622 = vmatpush2.xpose.msra.mxu0 0.0
    %1623 = vmatprep.subr.mxu0 0.0
    %1624 = vmatpush2.xpose.msra.mxu0 0.0
    %1625 = vmatprep.subr.mxu0 0.0
    %1626 = vmatpush2.xpose.msra.mxu0 0.0
    %1627 = vmatprep.subr.mxu0 0.0
    %1628 = vmatpush2.xpose.msra.mxu0 0.0
    %1629 = vmatprep.subr.mxu0 0.0
    %1630 = vmatpush2.xpose.msra.mxu0 0.0
    %1631 = vmatprep.subr.mxu0 0.0
    %1632 = vmatpush2.xpose.msra.mxu0 0.0
    %1633 = vmatprep.subr.mxu0 0.0
    %1634 = vmatpush2.xpose.msra.mxu0 0.0
    %1635 = vmatprep.subr.mxu0 0.0
    %1636 = vmatpush2.xpose.msra.mxu0 0.0
    %1637 = vmatprep.subr.mxu0 0.0
    %1638 = vmatpush2.xpose.msra.mxu0 0.0
    %1639 = vmatprep.mubr.f32.mxu0 0.0
    %1640 = vmatmul.mubr.f32.gmra.mxu0 %v1567
    %v1641 = vpop.f32.mrf.mxu0
    %v1642 = vadd.f32 %v166, %v1641
    %v1643 = vpop.f32.mrf.mxu0
    %1644 = vmatprep.mubr.f32.mxu0 0.0
    %1645 = vmatmul.mubr.f32.gmra.mxu0 %v1569
    %v1646 = vpop.f32.mrf.mxu0
    %v1647 = vadd.f32 %v167, %v1646
    %v1648 = vpop.f32.mrf.mxu0
    %1649 = vdwg.mxu0
    %v1650 = vsel %vm350, %v1642, -inf
    %1651 = vmax.xlane.f32.xlu0 %v1650
    %v1652 = vpop.xlane.xlu0 %1651
    %v1653 = vsel %vm350, %v1647, -inf
    %1654 = vmax.xlane.f32.xlu0 %v1653
    %v1655 = vpop.xlane.xlu0 %1654
    %v1656 = vsub.f32 %v1642, %v1652
    %v1657 = vsub.f32 %v1647, %v1655
    %v1658 = vmul.f32 %v1656, 1.442695
    %v1659 = vpow.pop %v1658
    %v1660 = vmul.f32 %v1657, 1.442695
    %v1661 = vpow.pop %v1660
    %v1662 = vsel %vm350, %v1659, 0.0
    %1663 = vadd.xlane.f32.xlu0 %v1662
    %v1664 = vpop.xlane.xlu0 %1663
    %v1665 = vsel %vm350, %v1661, 0.0
    %1666 = vadd.xlane.f32.xlu0 %v1665
    %v1667 = vpop.xlane.xlu0 %1666
    %v1668 = vrcp.pop %v1664
    %v1669 = vrcp.pop %v1667
    %v1670 = vmul.f32 %v1659, %v1668
    %v1671 = vmul.f32 %v1661, %v1669
    %1672 = vrot.lane.b32.xlu0 %v1553, 64
    %v1673 = vpop.permute.xlu0 %1672
    %1674 = vrot.lane.b32.xlu0 %v1558, 64
    %v1675 = vpop.permute.xlu0 %1674
    %v1679 = vsel %vm350, %v1670, 0
    %v1682 = vsel %vm350, %v1671, 0
    %1684 = vmatprep.subr.mxu0 0.0
    %1685 = vmatpush1.msra.mxu0 0.0
    %1686 = vmatprep.subr.mxu0 0.0
    %1687 = vmatpush1.msra.mxu0 0.0
    %1688 = vmatprep.subr.mxu0 0.0
    %1689 = vmatpush1.msra.mxu0 0.0
    %1690 = vmatprep.subr.mxu0 0.0
    %1691 = vmatpush1.msra.mxu0 0.0
    %1692 = vmatprep.subr.mxu0 0.0
    %1693 = vmatpush1.msra.mxu0 0.0
    %1694 = vmatprep.subr.mxu0 0.0
    %1695 = vmatpush1.msra.mxu0 0.0
    %1696 = vmatprep.subr.mxu0 0.0
    %1697 = vmatpush1.msra.mxu0 0.0
    %1698 = vmatprep.subr.mxu0 0.0
    %1699 = vmatpush1.msra.mxu0 0.0
    %1700 = vmatprep.subr.mxu0 0.0
    %1701 = vmatpush1.msra.mxu0 0.0
    %1702 = vmatprep.subr.mxu0 0.0
    %1703 = vmatpush1.msra.mxu0 0.0
    %1704 = vmatprep.subr.mxu0 0.0
    %1705 = vmatpush1.msra.mxu0 0.0
    %1706 = vmatprep.subr.mxu0 0.0
    %1707 = vmatpush1.msra.mxu0 0.0
    %1708 = vmatprep.subr.mxu0 0.0
    %1709 = vmatpush1.msra.mxu0 0.0
    %1710 = vmatprep.subr.mxu0 0.0
    %1711 = vmatpush1.msra.mxu0 0.0
    %1712 = vmatprep.subr.mxu0 0.0
    %1713 = vmatpush1.msra.mxu0 %v1675
    %1714 = vmatprep.subr.mxu0 0.0
    %1715 = vmatpush1.msra.mxu0 %v1673
    %1716 = vmatprep.subr.mxu0 0.0
    %1717 = vmatpush2.msra.mxu0 0.0
    %1718 = vmatprep.subr.mxu0 0.0
    %1719 = vmatpush2.msra.mxu0 0.0
    %1720 = vmatprep.subr.mxu0 0.0
    %1721 = vmatpush2.msra.mxu0 0.0
    %1722 = vmatprep.subr.mxu0 0.0
    %1723 = vmatpush2.msra.mxu0 0.0
    %1724 = vmatprep.subr.mxu0 0.0
    %1725 = vmatpush2.msra.mxu0 0.0
    %1726 = vmatprep.subr.mxu0 0.0
    %1727 = vmatpush2.msra.mxu0 0.0
    %1728 = vmatprep.subr.mxu0 0.0
    %1729 = vmatpush2.msra.mxu0 0.0
    %1730 = vmatprep.subr.mxu0 0.0
    %1731 = vmatpush2.msra.mxu0 0.0
    %1732 = vmatprep.subr.mxu0 0.0
    %1733 = vmatpush2.msra.mxu0 0.0
    %1734 = vmatprep.subr.mxu0 0.0
    %1735 = vmatpush2.msra.mxu0 0.0
    %1736 = vmatprep.subr.mxu0 0.0
    %1737 = vmatpush2.msra.mxu0 0.0
    %1738 = vmatprep.subr.mxu0 0.0
    %1739 = vmatpush2.msra.mxu0 0.0
    %1740 = vmatprep.subr.mxu0 0.0
    %1741 = vmatpush2.msra.mxu0 0.0
    %1742 = vmatprep.subr.mxu0 0.0
    %1743 = vmatpush2.msra.mxu0 0.0
    %1744 = vmatprep.subr.mxu0 0.0
    %1745 = vmatpush2.msra.mxu0 0.0
    %1746 = vmatprep.subr.mxu0 0.0
    %1747 = vmatpush2.msra.mxu0 0.0
    %1748 = vmatprep.mubr.f32.mxu0 0.0
    %1749 = vmatmul.mubr.f32.gmra.mxu0 %v1679
    %v1750 = vpop.f32.mrf.mxu0
    %v1751 = vadd.f32 0.0, %v1750
    %v1752 = vpop.f32.mrf.mxu0
    %1753 = vmatprep.mubr.f32.mxu0 0.0
    %1754 = vmatmul.mubr.f32.gmra.mxu0 %v1682
    %v1755 = vpop.f32.mrf.mxu0
    %v1756 = vadd.f32 0.0, %v1755
    %v1757 = vpop.f32.mrf.mxu0
    %1758 = vdwg.mxu0
    %1759 = vrot.lane.b32.xlu0 %v1553, 120
    %v1760 = vpop.permute.xlu0 %1759
    %1761 = vrot.lane.b32.xlu0 %v1558, 120
    %v1762 = vpop.permute.xlu0 %1761
    %1763 = vrot.lane.b32.xlu0 %v1553, 88
    %v1764 = vpop.permute.xlu0 %1763
    %1765 = vrot.lane.b32.xlu0 %v1558, 88
    %v1766 = vpop.permute.xlu0 %1765
    %v1767 = vsel %vm266, %v1760, 0
    %v1769 = vsel %vm266, %v1762, 0
    %v1771 = vsel %vm266, %v1764, 0
    %v1773 = vsel %vm266, %v1766, 0
    %1775 = vmatprep.subr.mxu0 0.0
    %1776 = vmatpush1.xpose.msra.mxu0 0.0
    %1777 = vmatprep.subr.mxu0 0.0
    %1778 = vmatpush1.xpose.msra.mxu0 0.0
    %1779 = vmatprep.subr.mxu0 0.0
    %1780 = vmatpush1.xpose.msra.mxu0 0.0
    %1781 = vmatprep.subr.mxu0 0.0
    %1782 = vmatpush1.xpose.msra.mxu0 0.0
    %1783 = vmatprep.subr.mxu0 0.0
    %1784 = vmatpush1.xpose.msra.mxu0 0.0
    %1785 = vmatprep.subr.mxu0 0.0
    %1786 = vmatpush1.xpose.msra.mxu0 0.0
    %1787 = vmatprep.subr.mxu0 0.0
    %1788 = vmatpush1.xpose.msra.mxu0 0.0
    %1789 = vmatprep.subr.mxu0 0.0
    %1790 = vmatpush1.xpose.msra.mxu0 0.0
    %1791 = vmatprep.subr.mxu0 0.0
    %1792 = vmatpush1.xpose.msra.mxu0 0.0
    %1793 = vmatprep.subr.mxu0 0.0
    %1794 = vmatpush1.xpose.msra.mxu0 0.0
    %1795 = vmatprep.subr.mxu0 0.0
    %1796 = vmatpush1.xpose.msra.mxu0 0.0
    %1797 = vmatprep.subr.mxu0 0.0
    %1798 = vmatpush1.xpose.msra.mxu0 0.0
    %1799 = vmatprep.subr.mxu0 0.0
    %1800 = vmatpush1.xpose.msra.mxu0 0.0
    %1801 = vmatprep.subr.mxu0 0.0
    %1802 = vmatpush1.xpose.msra.mxu0 0.0
    %1803 = vmatprep.subr.mxu0 0.0
    %1804 = vmatpush1.xpose.msra.mxu0 %v1773
    %1805 = vmatprep.subr.mxu0 0.0
    %1806 = vmatpush1.xpose.msra.mxu0 %v1771
    %1807 = vmatprep.subr.mxu0 0.0
    %1808 = vmatpush2.xpose.msra.mxu0 0.0
    %1809 = vmatprep.subr.mxu0 0.0
    %1810 = vmatpush2.xpose.msra.mxu0 0.0
    %1811 = vmatprep.subr.mxu0 0.0
    %1812 = vmatpush2.xpose.msra.mxu0 0.0
    %1813 = vmatprep.subr.mxu0 0.0
    %1814 = vmatpush2.xpose.msra.mxu0 0.0
    %1815 = vmatprep.subr.mxu0 0.0
    %1816 = vmatpush2.xpose.msra.mxu0 0.0
    %1817 = vmatprep.subr.mxu0 0.0
    %1818 = vmatpush2.xpose.msra.mxu0 0.0
    %1819 = vmatprep.subr.mxu0 0.0
    %1820 = vmatpush2.xpose.msra.mxu0 0.0
    %1821 = vmatprep.subr.mxu0 0.0
    %1822 = vmatpush2.xpose.msra.mxu0 0.0
    %1823 = vmatprep.subr.mxu0 0.0
    %1824 = vmatpush2.xpose.msra.mxu0 0.0
    %1825 = vmatprep.subr.mxu0 0.0
    %1826 = vmatpush2.xpose.msra.mxu0 0.0
    %1827 = vmatprep.subr.mxu0 0.0
    %1828 = vmatpush2.xpose.msra.mxu0 0.0
    %1829 = vmatprep.subr.mxu0 0.0
    %1830 = vmatpush2.xpose.msra.mxu0 0.0
    %1831 = vmatprep.subr.mxu0 0.0
    %1832 = vmatpush2.xpose.msra.mxu0 0.0
    %1833 = vmatprep.subr.mxu0 0.0
    %1834 = vmatpush2.xpose.msra.mxu0 0.0
    %1835 = vmatprep.subr.mxu0 0.0
    %1836 = vmatpush2.xpose.msra.mxu0 0.0
    %1837 = vmatprep.subr.mxu0 0.0
    %1838 = vmatpush2.xpose.msra.mxu0 0.0
    %1839 = vmatprep.mubr.f32.mxu0 0.0
    %1840 = vmatmul.mubr.f32.gmra.mxu0 %v1767
    %v1841 = vpop.f32.mrf.mxu0
    %v1842 = vadd.f32 %v166, %v1841
    %v1843 = vpop.f32.mrf.mxu0
    %1844 = vmatprep.mubr.f32.mxu0 0.0
    %1845 = vmatmul.mubr.f32.gmra.mxu0 %v1769
    %v1846 = vpop.f32.mrf.mxu0
    %v1847 = vadd.f32 %v167, %v1846
    %v1848 = vpop.f32.mrf.mxu0
    %1849 = vdwg.mxu0
    %v1850 = vsel %vm350, %v1842, -inf
    %1851 = vmax.xlane.f32.xlu0 %v1850
    %v1852 = vpop.xlane.xlu0 %1851
    %v1853 = vsel %vm350, %v1847, -inf
    %1854 = vmax.xlane.f32.xlu0 %v1853
    %v1855 = vpop.xlane.xlu0 %1854
    %v1856 = vsub.f32 %v1842, %v1852
    %v1857 = vsub.f32 %v1847, %v1855
    %v1858 = vmul.f32 %v1856, 1.442695
    %v1859 = vpow.pop %v1858
    %v1860 = vmul.f32 %v1857, 1.442695
    %v1861 = vpow.pop %v1860
    %v1862 = vsel %vm350, %v1859, 0.0
    %1863 = vadd.xlane.f32.xlu0 %v1862
    %v1864 = vpop.xlane.xlu0 %1863
    %v1865 = vsel %vm350, %v1861, 0.0
    %1866 = vadd.xlane.f32.xlu0 %v1865
    %v1867 = vpop.xlane.xlu0 %1866
    %v1868 = vrcp.pop %v1864
    %v1869 = vrcp.pop %v1867
    %v1870 = vmul.f32 %v1859, %v1868
    %v1871 = vmul.f32 %v1861, %v1869
    %1872 = vrot.lane.b32.xlu0 %v1553, 56
    %v1873 = vpop.permute.xlu0 %1872
    %1874 = vrot.lane.b32.xlu0 %v1558, 56
    %v1875 = vpop.permute.xlu0 %1874
    %v1879 = vsel %vm350, %v1870, 0
    %v1882 = vsel %vm350, %v1871, 0
    %1884 = vmatprep.subr.mxu0 0.0
    %1885 = vmatpush1.msra.mxu0 0.0
    %1886 = vmatprep.subr.mxu0 0.0
    %1887 = vmatpush1.msra.mxu0 0.0
    %1888 = vmatprep.subr.mxu0 0.0
    %1889 = vmatpush1.msra.mxu0 0.0
    %1890 = vmatprep.subr.mxu0 0.0
    %1891 = vmatpush1.msra.mxu0 0.0
    %1892 = vmatprep.subr.mxu0 0.0
    %1893 = vmatpush1.msra.mxu0 0.0
    %1894 = vmatprep.subr.mxu0 0.0
    %1895 = vmatpush1.msra.mxu0 0.0
    %1896 = vmatprep.subr.mxu0 0.0
    %1897 = vmatpush1.msra.mxu0 0.0
    %1898 = vmatprep.subr.mxu0 0.0
    %1899 = vmatpush1.msra.mxu0 0.0
    %1900 = vmatprep.subr.mxu0 0.0
    %1901 = vmatpush1.msra.mxu0 0.0
    %1902 = vmatprep.subr.mxu0 0.0
    %1903 = vmatpush1.msra.mxu0 0.0
    %1904 = vmatprep.subr.mxu0 0.0
    %1905 = vmatpush1.msra.mxu0 0.0
    %1906 = vmatprep.subr.mxu0 0.0
    %1907 = vmatpush1.msra.mxu0 0.0
    %1908 = vmatprep.subr.mxu0 0.0
    %1909 = vmatpush1.msra.mxu0 0.0
    %1910 = vmatprep.subr.mxu0 0.0
    %1911 = vmatpush1.msra.mxu0 0.0
    %1912 = vmatprep.subr.mxu0 0.0
    %1913 = vmatpush1.msra.mxu0 %v1875
    %1914 = vmatprep.subr.mxu0 0.0
    %1915 = vmatpush1.msra.mxu0 %v1873
    %1916 = vmatprep.subr.mxu0 0.0
    %1917 = vmatpush2.msra.mxu0 0.0
    %1918 = vmatprep.subr.mxu0 0.0
    %1919 = vmatpush2.msra.mxu0 0.0
    %1920 = vmatprep.subr.mxu0 0.0
    %1921 = vmatpush2.msra.mxu0 0.0
    %1922 = vmatprep.subr.mxu0 0.0
    %1923 = vmatpush2.msra.mxu0 0.0
    %1924 = vmatprep.subr.mxu0 0.0
    %1925 = vmatpush2.msra.mxu0 0.0
    %1926 = vmatprep.subr.mxu0 0.0
    %1927 = vmatpush2.msra.mxu0 0.0
    %1928 = vmatprep.subr.mxu0 0.0
    %1929 = vmatpush2.msra.mxu0 0.0
    %1930 = vmatprep.subr.mxu0 0.0
    %1931 = vmatpush2.msra.mxu0 0.0
    %1932 = vmatprep.subr.mxu0 0.0
    %1933 = vmatpush2.msra.mxu0 0.0
    %1934 = vmatprep.subr.mxu0 0.0
    %1935 = vmatpush2.msra.mxu0 0.0
    %1936 = vmatprep.subr.mxu0 0.0
    %1937 = vmatpush2.msra.mxu0 0.0
    %1938 = vmatprep.subr.mxu0 0.0
    %1939 = vmatpush2.msra.mxu0 0.0
    %1940 = vmatprep.subr.mxu0 0.0
    %1941 = vmatpush2.msra.mxu0 0.0
    %1942 = vmatprep.subr.mxu0 0.0
    %1943 = vmatpush2.msra.mxu0 0.0
    %1944 = vmatprep.subr.mxu0 0.0
    %1945 = vmatpush2.msra.mxu0 0.0
    %1946 = vmatprep.subr.mxu0 0.0
    %1947 = vmatpush2.msra.mxu0 0.0
    %1948 = vmatprep.mubr.f32.mxu0 0.0
    %1949 = vmatmul.mubr.f32.gmra.mxu0 %v1879
    %v1950 = vpop.f32.mrf.mxu0
    %v1951 = vadd.f32 0.0, %v1950
    %v1952 = vpop.f32.mrf.mxu0
    %1953 = vmatprep.mubr.f32.mxu0 0.0
    %1954 = vmatmul.mubr.f32.gmra.mxu0 %v1882
    %v1955 = vpop.f32.mrf.mxu0
    %v1956 = vadd.f32 0.0, %v1955
    %v1957 = vpop.f32.mrf.mxu0
    %1958 = vdwg.mxu0
    %1959 = vrot.lane.b32.xlu0 %v1553, 112
    %v1960 = vpop.permute.xlu0 %1959
    %1961 = vrot.lane.b32.xlu0 %v1558, 112
    %v1962 = vpop.permute.xlu0 %1961
    %1963 = vrot.lane.b32.xlu0 %v1553, 80
    %v1964 = vpop.permute.xlu0 %1963
    %1965 = vrot.lane.b32.xlu0 %v1558, 80
    %v1966 = vpop.permute.xlu0 %1965
    %v1967 = vsel %vm266, %v1960, 0
    %v1969 = vsel %vm266, %v1962, 0
    %v1971 = vsel %vm266, %v1964, 0
    %v1973 = vsel %vm266, %v1966, 0
    %1975 = vmatprep.subr.mxu0 0.0
    %1976 = vmatpush1.xpose.msra.mxu0 0.0
    %1977 = vmatprep.subr.mxu0 0.0
    %1978 = vmatpush1.xpose.msra.mxu0 0.0
    %1979 = vmatprep.subr.mxu0 0.0
    %1980 = vmatpush1.xpose.msra.mxu0 0.0
    %1981 = vmatprep.subr.mxu0 0.0
    %1982 = vmatpush1.xpose.msra.mxu0 0.0
    %1983 = vmatprep.subr.mxu0 0.0
    %1984 = vmatpush1.xpose.msra.mxu0 0.0
    %1985 = vmatprep.subr.mxu0 0.0
    %1986 = vmatpush1.xpose.msra.mxu0 0.0
    %1987 = vmatprep.subr.mxu0 0.0
    %1988 = vmatpush1.xpose.msra.mxu0 0.0
    %1989 = vmatprep.subr.mxu0 0.0
    %1990 = vmatpush1.xpose.msra.mxu0 0.0
    %1991 = vmatprep.subr.mxu0 0.0
    %1992 = vmatpush1.xpose.msra.mxu0 0.0
    %1993 = vmatprep.subr.mxu0 0.0
    %1994 = vmatpush1.xpose.msra.mxu0 0.0
    %1995 = vmatprep.subr.mxu0 0.0
    %1996 = vmatpush1.xpose.msra.mxu0 0.0
    %1997 = vmatprep.subr.mxu0 0.0
    %1998 = vmatpush1.xpose.msra.mxu0 0.0
    %1999 = vmatprep.subr.mxu0 0.0
    %2000 = vmatpush1.xpose.msra.mxu0 0.0
    %2001 = vmatprep.subr.mxu0 0.0
    %2002 = vmatpush1.xpose.msra.mxu0 0.0
    %2003 = vmatprep.subr.mxu0 0.0
    %2004 = vmatpush1.xpose.msra.mxu0 %v1973
    %2005 = vmatprep.subr.mxu0 0.0
    %2006 = vmatpush1.xpose.msra.mxu0 %v1971
    %2007 = vmatprep.subr.mxu0 0.0
    %2008 = vmatpush2.xpose.msra.mxu0 0.0
    %2009 = vmatprep.subr.mxu0 0.0
    %2010 = vmatpush2.xpose.msra.mxu0 0.0
    %2011 = vmatprep.subr.mxu0 0.0
    %2012 = vmatpush2.xpose.msra.mxu0 0.0
    %2013 = vmatprep.subr.mxu0 0.0
    %2014 = vmatpush2.xpose.msra.mxu0 0.0
    %2015 = vmatprep.subr.mxu0 0.0
    %2016 = vmatpush2.xpose.msra.mxu0 0.0
    %2017 = vmatprep.subr.mxu0 0.0
    %2018 = vmatpush2.xpose.msra.mxu0 0.0
    %2019 = vmatprep.subr.mxu0 0.0
    %2020 = vmatpush2.xpose.msra.mxu0 0.0
    %2021 = vmatprep.subr.mxu0 0.0
    %2022 = vmatpush2.xpose.msra.mxu0 0.0
    %2023 = vmatprep.subr.mxu0 0.0
    %2024 = vmatpush2.xpose.msra.mxu0 0.0
    %2025 = vmatprep.subr.mxu0 0.0
    %2026 = vmatpush2.xpose.msra.mxu0 0.0
    %2027 = vmatprep.subr.mxu0 0.0
    %2028 = vmatpush2.xpose.msra.mxu0 0.0
    %2029 = vmatprep.subr.mxu0 0.0
    %2030 = vmatpush2.xpose.msra.mxu0 0.0
    %2031 = vmatprep.subr.mxu0 0.0
    %2032 = vmatpush2.xpose.msra.mxu0 0.0
    %2033 = vmatprep.subr.mxu0 0.0
    %2034 = vmatpush2.xpose.msra.mxu0 0.0
    %2035 = vmatprep.subr.mxu0 0.0
    %2036 = vmatpush2.xpose.msra.mxu0 0.0
    %2037 = vmatprep.subr.mxu0 0.0
    %2038 = vmatpush2.xpose.msra.mxu0 0.0
    %2039 = vmatprep.mubr.f32.mxu0 0.0
    %2040 = vmatmul.mubr.f32.gmra.mxu0 %v1967
    %v2041 = vpop.f32.mrf.mxu0
    %v2042 = vadd.f32 %v166, %v2041
    %v2043 = vpop.f32.mrf.mxu0
    %2044 = vmatprep.mubr.f32.mxu0 0.0
    %2045 = vmatmul.mubr.f32.gmra.mxu0 %v1969
    %v2046 = vpop.f32.mrf.mxu0
    %v2047 = vadd.f32 %v167, %v2046
    %v2048 = vpop.f32.mrf.mxu0
    %2049 = vdwg.mxu0
    %v2050 = vsel %vm350, %v2042, -inf
    %2051 = vmax.xlane.f32.xlu0 %v2050
    %v2052 = vpop.xlane.xlu0 %2051
    %v2053 = vsel %vm350, %v2047, -inf
    %2054 = vmax.xlane.f32.xlu0 %v2053
    %v2055 = vpop.xlane.xlu0 %2054
    %v2056 = vsub.f32 %v2042, %v2052
    %v2057 = vsub.f32 %v2047, %v2055
    %v2058 = vmul.f32 %v2056, 1.442695
    %v2059 = vpow.pop %v2058
    %v2060 = vmul.f32 %v2057, 1.442695
    %v2061 = vpow.pop %v2060
    %v2062 = vsel %vm350, %v2059, 0.0
    %2063 = vadd.xlane.f32.xlu0 %v2062
    %v2064 = vpop.xlane.xlu0 %2063
    %v2065 = vsel %vm350, %v2061, 0.0
    %2066 = vadd.xlane.f32.xlu0 %v2065
    %v2067 = vpop.xlane.xlu0 %2066
    %v2068 = vrcp.pop %v2064
    %v2069 = vrcp.pop %v2067
    %v2070 = vmul.f32 %v2059, %v2068
    %v2071 = vmul.f32 %v2061, %v2069
    %2072 = vrot.lane.b32.xlu0 %v1553, 48
    %v2073 = vpop.permute.xlu0 %2072
    %2074 = vrot.lane.b32.xlu0 %v1558, 48
    %v2075 = vpop.permute.xlu0 %2074
    %v2079 = vsel %vm350, %v2070, 0
    %v2082 = vsel %vm350, %v2071, 0
    %2084 = vmatprep.subr.mxu0 0.0
    %2085 = vmatpush1.msra.mxu0 0.0
    %2086 = vmatprep.subr.mxu0 0.0
    %2087 = vmatpush1.msra.mxu0 0.0
    %2088 = vmatprep.subr.mxu0 0.0
    %2089 = vmatpush1.msra.mxu0 0.0
    %2090 = vmatprep.subr.mxu0 0.0
    %2091 = vmatpush1.msra.mxu0 0.0
    %2092 = vmatprep.subr.mxu0 0.0
    %2093 = vmatpush1.msra.mxu0 0.0
    %2094 = vmatprep.subr.mxu0 0.0
    %2095 = vmatpush1.msra.mxu0 0.0
    %2096 = vmatprep.subr.mxu0 0.0
    %2097 = vmatpush1.msra.mxu0 0.0
    %2098 = vmatprep.subr.mxu0 0.0
    %2099 = vmatpush1.msra.mxu0 0.0
    %2100 = vmatprep.subr.mxu0 0.0
    %2101 = vmatpush1.msra.mxu0 0.0
    %2102 = vmatprep.subr.mxu0 0.0
    %2103 = vmatpush1.msra.mxu0 0.0
    %2104 = vmatprep.subr.mxu0 0.0
    %2105 = vmatpush1.msra.mxu0 0.0
    %2106 = vmatprep.subr.mxu0 0.0
    %2107 = vmatpush1.msra.mxu0 0.0
    %2108 = vmatprep.subr.mxu0 0.0
    %2109 = vmatpush1.msra.mxu0 0.0
    %2110 = vmatprep.subr.mxu0 0.0
    %2111 = vmatpush1.msra.mxu0 0.0
    %2112 = vmatprep.subr.mxu0 0.0
    %2113 = vmatpush1.msra.mxu0 %v2075
    %2114 = vmatprep.subr.mxu0 0.0
    %2115 = vmatpush1.msra.mxu0 %v2073
    %2116 = vmatprep.subr.mxu0 0.0
    %2117 = vmatpush2.msra.mxu0 0.0
    %2118 = vmatprep.subr.mxu0 0.0
    %2119 = vmatpush2.msra.mxu0 0.0
    %2120 = vmatprep.subr.mxu0 0.0
    %2121 = vmatpush2.msra.mxu0 0.0
    %2122 = vmatprep.subr.mxu0 0.0
    %2123 = vmatpush2.msra.mxu0 0.0
    %2124 = vmatprep.subr.mxu0 0.0
    %2125 = vmatpush2.msra.mxu0 0.0
    %2126 = vmatprep.subr.mxu0 0.0
    %2127 = vmatpush2.msra.mxu0 0.0
    %2128 = vmatprep.subr.mxu0 0.0
    %2129 = vmatpush2.msra.mxu0 0.0
    %2130 = vmatprep.subr.mxu0 0.0
    %2131 = vmatpush2.msra.mxu0 0.0
    %2132 = vmatprep.subr.mxu0 0.0
    %2133 = vmatpush2.msra.mxu0 0.0
    %2134 = vmatprep.subr.mxu0 0.0
    %2135 = vmatpush2.msra.mxu0 0.0
    %2136 = vmatprep.subr.mxu0 0.0
    %2137 = vmatpush2.msra.mxu0 0.0
    %2138 = vmatprep.subr.mxu0 0.0
    %2139 = vmatpush2.msra.mxu0 0.0
    %2140 = vmatprep.subr.mxu0 0.0
    %2141 = vmatpush2.msra.mxu0 0.0
    %2142 = vmatprep.subr.mxu0 0.0
    %2143 = vmatpush2.msra.mxu0 0.0
    %2144 = vmatprep.subr.mxu0 0.0
    %2145 = vmatpush2.msra.mxu0 0.0
    %2146 = vmatprep.subr.mxu0 0.0
    %2147 = vmatpush2.msra.mxu0 0.0
    %2148 = vmatprep.mubr.f32.mxu0 0.0
    %2149 = vmatmul.mubr.f32.gmra.mxu0 %v2079
    %v2150 = vpop.f32.mrf.mxu0
    %v2151 = vadd.f32 0.0, %v2150
    %v2152 = vpop.f32.mrf.mxu0
    %2153 = vmatprep.mubr.f32.mxu0 0.0
    %2154 = vmatmul.mubr.f32.gmra.mxu0 %v2082
    %v2155 = vpop.f32.mrf.mxu0
    %v2156 = vadd.f32 0.0, %v2155
    %v2157 = vpop.f32.mrf.mxu0
    %2158 = vdwg.mxu0
    %2159 = vrot.lane.b32.xlu0 %v1553, 104
    %v2160 = vpop.permute.xlu0 %2159
    %2161 = vrot.lane.b32.xlu0 %v1558, 104
    %v2162 = vpop.permute.xlu0 %2161
    %2163 = vrot.lane.b32.xlu0 %v1553, 72
    %v2164 = vpop.permute.xlu0 %2163
    %2165 = vrot.lane.b32.xlu0 %v1558, 72
    %v2166 = vpop.permute.xlu0 %2165
    %v2167 = vsel %vm266, %v2160, 0
    %v2169 = vsel %vm266, %v2162, 0
    %v2171 = vsel %vm266, %v2164, 0
    %v2173 = vsel %vm266, %v2166, 0
    %2175 = vmatprep.subr.mxu0 0.0
    %2176 = vmatpush1.xpose.msra.mxu0 0.0
    %2177 = vmatprep.subr.mxu0 0.0
    %2178 = vmatpush1.xpose.msra.mxu0 0.0
    %2179 = vmatprep.subr.mxu0 0.0
    %2180 = vmatpush1.xpose.msra.mxu0 0.0
    %2181 = vmatprep.subr.mxu0 0.0
    %2182 = vmatpush1.xpose.msra.mxu0 0.0
    %2183 = vmatprep.subr.mxu0 0.0
    %2184 = vmatpush1.xpose.msra.mxu0 0.0
    %2185 = vmatprep.subr.mxu0 0.0
    %2186 = vmatpush1.xpose.msra.mxu0 0.0
    %2187 = vmatprep.subr.mxu0 0.0
    %2188 = vmatpush1.xpose.msra.mxu0 0.0
    %2189 = vmatprep.subr.mxu0 0.0
    %2190 = vmatpush1.xpose.msra.mxu0 0.0
    %2191 = vmatprep.subr.mxu0 0.0
    %2192 = vmatpush1.xpose.msra.mxu0 0.0
    %2193 = vmatprep.subr.mxu0 0.0
    %2194 = vmatpush1.xpose.msra.mxu0 0.0
    %2195 = vmatprep.subr.mxu0 0.0
    %2196 = vmatpush1.xpose.msra.mxu0 0.0
    %2197 = vmatprep.subr.mxu0 0.0
    %2198 = vmatpush1.xpose.msra.mxu0 0.0
    %2199 = vmatprep.subr.mxu0 0.0
    %2200 = vmatpush1.xpose.msra.mxu0 0.0
    %2201 = vmatprep.subr.mxu0 0.0
    %2202 = vmatpush1.xpose.msra.mxu0 0.0
    %2203 = vmatprep.subr.mxu0 0.0
    %2204 = vmatpush1.xpose.msra.mxu0 %v2173
    %2205 = vmatprep.subr.mxu0 0.0
    %2206 = vmatpush1.xpose.msra.mxu0 %v2171
    %2207 = vmatprep.subr.mxu0 0.0
    %2208 = vmatpush2.xpose.msra.mxu0 0.0
    %2209 = vmatprep.subr.mxu0 0.0
    %2210 = vmatpush2.xpose.msra.mxu0 0.0
    %2211 = vmatprep.subr.mxu0 0.0
    %2212 = vmatpush2.xpose.msra.mxu0 0.0
    %2213 = vmatprep.subr.mxu0 0.0
    %2214 = vmatpush2.xpose.msra.mxu0 0.0
    %2215 = vmatprep.subr.mxu0 0.0
    %2216 = vmatpush2.xpose.msra.mxu0 0.0
    %2217 = vmatprep.subr.mxu0 0.0
    %2218 = vmatpush2.xpose.msra.mxu0 0.0
    %2219 = vmatprep.subr.mxu0 0.0
    %2220 = vmatpush2.xpose.msra.mxu0 0.0
    %2221 = vmatprep.subr.mxu0 0.0
    %2222 = vmatpush2.xpose.msra.mxu0 0.0
    %2223 = vmatprep.subr.mxu0 0.0
    %2224 = vmatpush2.xpose.msra.mxu0 0.0
    %2225 = vmatprep.subr.mxu0 0.0
    %2226 = vmatpush2.xpose.msra.mxu0 0.0
    %2227 = vmatprep.subr.mxu0 0.0
    %2228 = vmatpush2.xpose.msra.mxu0 0.0
    %2229 = vmatprep.subr.mxu0 0.0
    %2230 = vmatpush2.xpose.msra.mxu0 0.0
    %2231 = vmatprep.subr.mxu0 0.0
    %2232 = vmatpush2.xpose.msra.mxu0 0.0
    %2233 = vmatprep.subr.mxu0 0.0
    %2234 = vmatpush2.xpose.msra.mxu0 0.0
    %2235 = vmatprep.subr.mxu0 0.0
    %2236 = vmatpush2.xpose.msra.mxu0 0.0
    %2237 = vmatprep.subr.mxu0 0.0
    %2238 = vmatpush2.xpose.msra.mxu0 0.0
    %2239 = vmatprep.mubr.f32.mxu0 0.0
    %2240 = vmatmul.mubr.f32.gmra.mxu0 %v2167
    %v2241 = vpop.f32.mrf.mxu0
    %v2242 = vadd.f32 %v166, %v2241
    %v2243 = vpop.f32.mrf.mxu0
    %2244 = vmatprep.mubr.f32.mxu0 0.0
    %2245 = vmatmul.mubr.f32.gmra.mxu0 %v2169
    %v2246 = vpop.f32.mrf.mxu0
    %v2247 = vadd.f32 %v167, %v2246
    %v2248 = vpop.f32.mrf.mxu0
    %2249 = vdwg.mxu0
    %v2250 = vsel %vm350, %v2242, -inf
    %2251 = vmax.xlane.f32.xlu0 %v2250
    %v2252 = vpop.xlane.xlu0 %2251
    %v2253 = vsel %vm350, %v2247, -inf
    %2254 = vmax.xlane.f32.xlu0 %v2253
    %v2255 = vpop.xlane.xlu0 %2254
    %v2256 = vsub.f32 %v2242, %v2252
    %v2257 = vsub.f32 %v2247, %v2255
    %v2258 = vmul.f32 %v2256, 1.442695
    %v2259 = vpow.pop %v2258
    %v2260 = vmul.f32 %v2257, 1.442695
    %v2261 = vpow.pop %v2260
    %v2262 = vsel %vm350, %v2259, 0.0
    %2263 = vadd.xlane.f32.xlu0 %v2262
    %v2264 = vpop.xlane.xlu0 %2263
    %v2265 = vsel %vm350, %v2261, 0.0
    %2266 = vadd.xlane.f32.xlu0 %v2265
    %v2267 = vpop.xlane.xlu0 %2266
    %v2268 = vrcp.pop %v2264
    %v2269 = vrcp.pop %v2267
    %v2270 = vmul.f32 %v2259, %v2268
    %v2271 = vmul.f32 %v2261, %v2269
    %2272 = vrot.lane.b32.xlu0 %v1553, 40
    %v2273 = vpop.permute.xlu0 %2272
    %2274 = vrot.lane.b32.xlu0 %v1558, 40
    %v2275 = vpop.permute.xlu0 %2274
    %v2279 = vsel %vm350, %v2270, 0
    %v2282 = vsel %vm350, %v2271, 0
    %2284 = vmatprep.subr.mxu0 0.0
    %2285 = vmatpush1.msra.mxu0 0.0
    %2286 = vmatprep.subr.mxu0 0.0
    %2287 = vmatpush1.msra.mxu0 0.0
    %2288 = vmatprep.subr.mxu0 0.0
    %2289 = vmatpush1.msra.mxu0 0.0
    %2290 = vmatprep.subr.mxu0 0.0
    %2291 = vmatpush1.msra.mxu0 0.0
    %2292 = vmatprep.subr.mxu0 0.0
    %2293 = vmatpush1.msra.mxu0 0.0
    %2294 = vmatprep.subr.mxu0 0.0
    %2295 = vmatpush1.msra.mxu0 0.0
    %2296 = vmatprep.subr.mxu0 0.0
    %2297 = vmatpush1.msra.mxu0 0.0
    %2298 = vmatprep.subr.mxu0 0.0
    %2299 = vmatpush1.msra.mxu0 0.0
    %2300 = vmatprep.subr.mxu0 0.0
    %2301 = vmatpush1.msra.mxu0 0.0
    %2302 = vmatprep.subr.mxu0 0.0
    %2303 = vmatpush1.msra.mxu0 0.0
    %2304 = vmatprep.subr.mxu0 0.0
    %2305 = vmatpush1.msra.mxu0 0.0
    %2306 = vmatprep.subr.mxu0 0.0
    %2307 = vmatpush1.msra.mxu0 0.0
    %2308 = vmatprep.subr.mxu0 0.0
    %2309 = vmatpush1.msra.mxu0 0.0
    %2310 = vmatprep.subr.mxu0 0.0
    %2311 = vmatpush1.msra.mxu0 0.0
    %2312 = vmatprep.subr.mxu0 0.0
    %2313 = vmatpush1.msra.mxu0 %v2275
    %2314 = vmatprep.subr.mxu0 0.0
    %2315 = vmatpush1.msra.mxu0 %v2273
    %2316 = vmatprep.subr.mxu0 0.0
    %2317 = vmatpush2.msra.mxu0 0.0
    %2318 = vmatprep.subr.mxu0 0.0
    %2319 = vmatpush2.msra.mxu0 0.0
    %2320 = vmatprep.subr.mxu0 0.0
    %2321 = vmatpush2.msra.mxu0 0.0
    %2322 = vmatprep.subr.mxu0 0.0
    %2323 = vmatpush2.msra.mxu0 0.0
    %2324 = vmatprep.subr.mxu0 0.0
    %2325 = vmatpush2.msra.mxu0 0.0
    %2326 = vmatprep.subr.mxu0 0.0
    %2327 = vmatpush2.msra.mxu0 0.0
    %2328 = vmatprep.subr.mxu0 0.0
    %2329 = vmatpush2.msra.mxu0 0.0
    %2330 = vmatprep.subr.mxu0 0.0
    %2331 = vmatpush2.msra.mxu0 0.0
    %2332 = vmatprep.subr.mxu0 0.0
    %2333 = vmatpush2.msra.mxu0 0.0
    %2334 = vmatprep.subr.mxu0 0.0
    %2335 = vmatpush2.msra.mxu0 0.0
    %2336 = vmatprep.subr.mxu0 0.0
    %2337 = vmatpush2.msra.mxu0 0.0
    %2338 = vmatprep.subr.mxu0 0.0
    %2339 = vmatpush2.msra.mxu0 0.0
    %2340 = vmatprep.subr.mxu0 0.0
    %2341 = vmatpush2.msra.mxu0 0.0
    %2342 = vmatprep.subr.mxu0 0.0
    %2343 = vmatpush2.msra.mxu0 0.0
    %2344 = vmatprep.subr.mxu0 0.0
    %2345 = vmatpush2.msra.mxu0 0.0
    %2346 = vmatprep.subr.mxu0 0.0
    %2347 = vmatpush2.msra.mxu0 0.0
    %2348 = vmatprep.mubr.f32.mxu0 0.0
    %2349 = vmatmul.mubr.f32.gmra.mxu0 %v2279
    %v2350 = vpop.f32.mrf.mxu0
    %v2351 = vadd.f32 0.0, %v2350
    %v2352 = vpop.f32.mrf.mxu0
    %2353 = vmatprep.mubr.f32.mxu0 0.0
    %2354 = vmatmul.mubr.f32.gmra.mxu0 %v2282
    %v2355 = vpop.f32.mrf.mxu0
    %v2356 = vadd.f32 0.0, %v2355
    %v2357 = vpop.f32.mrf.mxu0
    %2358 = vdwg.mxu0
    %2361 = vrot.lane.b32.xlu0 %v1951, 8
    %v2362 = vpop.permute.xlu0 %2361
    %2363 = vrot.lane.b32.xlu0 %v1956, 8
    %v2364 = vpop.permute.xlu0 %2363
    %2369 = vrot.lane.b32.xlu0 %v2151, 16
    %v2370 = vpop.permute.xlu0 %2369
    %2371 = vrot.lane.b32.xlu0 %v2156, 16
    %v2372 = vpop.permute.xlu0 %2371
    %2377 = vrot.lane.b32.xlu0 %v2351, 24
    %v2378 = vpop.permute.xlu0 %2377
    %2379 = vrot.lane.b32.xlu0 %v2356, 24
    %v2380 = vpop.permute.xlu0 %2379
    %v2383 = vsel %vm266, %v1751, %v2362
    %v2384 = vsel %vm266, %v1756, %v2364
    %v2385 = vsel %vm350, %v2383, %v2370
    %v2386 = vsel %vm350, %v2384, %v2372
    %v2387 = vsel %vm1088, %v2385, %v2378
    %v2388 = vsel %vm1088, %v2386, %v2380
    %s2389 = scalar_lea.vmem %s6, 32
    %v2390 = vld [vmem:[%s2389] sm:$0xff]
    %v2391 = vld [vmem:[%s2389 + $0x8] sm:$0xff]
    %v2392 = vld [vmem:[%s2389 + $0x10] sm:$0xff]
    %v2393 = vld [vmem:[%s2389 + $0x18] sm:$0xff]
    %s2394 = scalar_lea.vmem %s7, 1
    %v2395 = vld [vmem:[%s2394] sm:$0x1]
    %v2397 = vlaneseq
    %v2398 = vshrl.u32 %v2397, 7
    %v2399 = vsub.s32 0, %v2398
    %v2400 = vrot.slane %v2395, %v2399
    %v2403 = vsel %vm78, %v2387, 0
    %v2406 = vsel %vm78, %v2388, 0
    %2408 = vmatprep.subr.mxu0 0.0
    %2409 = vmatpush1.msra.mxu0 0.0
    %2410 = vmatprep.subr.mxu0 0.0
    %2411 = vmatpush1.msra.mxu0 0.0
    %2412 = vmatprep.subr.mxu0 0.0
    %2413 = vmatpush1.msra.mxu0 0.0
    %2414 = vmatprep.subr.mxu0 0.0
    %2415 = vmatpush1.msra.mxu0 0.0
    %2416 = vmatprep.subr.mxu0 0.0
    %2417 = vmatpush1.msra.mxu0 0.0
    %2418 = vmatprep.subr.mxu0 0.0
    %2419 = vmatpush1.msra.mxu0 0.0
    %2420 = vmatprep.subr.mxu0 0.0
    %2421 = vmatpush1.msra.mxu0 0.0
    %2422 = vmatprep.subr.mxu0 0.0
    %2423 = vmatpush1.msra.mxu0 0.0
    %2424 = vmatprep.subr.mxu0 0.0
    %2425 = vmatpush1.msra.mxu0 0.0
    %2426 = vmatprep.subr.mxu0 0.0
    %2427 = vmatpush1.msra.mxu0 0.0
    %2428 = vmatprep.subr.mxu0 0.0
    %2429 = vmatpush1.msra.mxu0 0.0
    %2430 = vmatprep.subr.mxu0 0.0
    %2431 = vmatpush1.msra.mxu0 0.0
    %2432 = vmatprep.subr.mxu0 0.0
    %2433 = vmatpush1.msra.mxu0 %v2393
    %2434 = vmatprep.subr.mxu0 0.0
    %2435 = vmatpush1.msra.mxu0 %v2392
    %2436 = vmatprep.subr.mxu0 0.0
    %2437 = vmatpush1.msra.mxu0 %v2391
    %2438 = vmatprep.subr.mxu0 0.0
    %2439 = vmatpush1.msra.mxu0 %v2390
    %2440 = vmatprep.subr.mxu0 0.0
    %2441 = vmatpush2.msra.mxu0 0.0
    %2442 = vmatprep.subr.mxu0 0.0
    %2443 = vmatpush2.msra.mxu0 0.0
    %2444 = vmatprep.subr.mxu0 0.0
    %2445 = vmatpush2.msra.mxu0 0.0
    %2446 = vmatprep.subr.mxu0 0.0
    %2447 = vmatpush2.msra.mxu0 0.0
    %2448 = vmatprep.subr.mxu0 0.0
    %2449 = vmatpush2.msra.mxu0 0.0
    %2450 = vmatprep.subr.mxu0 0.0
    %2451 = vmatpush2.msra.mxu0 0.0
    %2452 = vmatprep.subr.mxu0 0.0
    %2453 = vmatpush2.msra.mxu0 0.0
    %2454 = vmatprep.subr.mxu0 0.0
    %2455 = vmatpush2.msra.mxu0 0.0
    %2456 = vmatprep.subr.mxu0 0.0
    %2457 = vmatpush2.msra.mxu0 0.0
    %2458 = vmatprep.subr.mxu0 0.0
    %2459 = vmatpush2.msra.mxu0 0.0
    %2460 = vmatprep.subr.mxu0 0.0
    %2461 = vmatpush2.msra.mxu0 0.0
    %2462 = vmatprep.subr.mxu0 0.0
    %2463 = vmatpush2.msra.mxu0 0.0
    %2464 = vmatprep.subr.mxu0 0.0
    %2465 = vmatpush2.msra.mxu0 0.0
    %2466 = vmatprep.subr.mxu0 0.0
    %2467 = vmatpush2.msra.mxu0 0.0
    %2468 = vmatprep.subr.mxu0 0.0
    %2469 = vmatpush2.msra.mxu0 0.0
    %2470 = vmatprep.subr.mxu0 0.0
    %2471 = vmatpush2.msra.mxu0 0.0
    %2472 = vmatprep.mubr.f32.mxu0 0.0
    %2473 = vmatmul.mubr.f32.gmra.mxu0 %v2403
    %v2474 = vpop.f32.mrf.mxu0
    %v2475 = vadd.f32 %v2400, %v2474
    %v2476 = vpop.f32.mrf.mxu0
    %2477 = vmatprep.mubr.f32.mxu0 0.0
    %2478 = vmatmul.mubr.f32.gmra.mxu0 %v2406
    %v2479 = vpop.f32.mrf.mxu0
    %v2480 = vadd.f32 %v2400, %v2479
    %v2481 = vpop.f32.mrf.mxu0
    %2482 = vdwg.mxu0
    %v2483 = vadd.f32 %v1465, %v2475
    %v2484 = vadd.f32 %v1466, %v2480
    %s2485 = scalar_lea.vmem %s8, 1
    %v2486 = vld [vmem:[%s2485] sm:$0x1]
    %s2487 = scalar_lea.vmem %s9, 1
    %v2488 = vld [vmem:[%s2487] sm:$0x1]
    %v2489 = vsel %vm78, %v2483, 0.0
    %2490 = vadd.xlane.f32.xlu0 %v2489
    %v2491 = vpop.xlane.xlu0 %2490
    %v2492 = vsel %vm78, %v2484, 0.0
    %2493 = vadd.xlane.f32.xlu0 %v2492
    %v2494 = vpop.xlane.xlu0 %2493
    %v2495 = vmul.f32 %v2491, %v1193
    %v2496 = vmul.f32 %v2494, %v1193
    %v2497 = vsub.f32 %v2483, %v2495
    %v2498 = vsub.f32 %v2484, %v2496
    %v2499 = vmul.f32 %v2497, %v2497
    %v2500 = vmul.f32 %v2498, %v2498
    %v2501 = vsel %vm78, %v2499, 0.0
    %2502 = vadd.xlane.f32.xlu0 %v2501
    %v2503 = vpop.xlane.xlu0 %2502
    %v2504 = vsel %vm78, %v2500, 0.0
    %2505 = vadd.xlane.f32.xlu0 %v2504
    %v2506 = vpop.xlane.xlu0 %2505
    %v2507 = vmul.f32 %v2503, %v1193
    %v2508 = vmul.f32 %v2506, %v1193
    %v2509 = vadd.f32 %v2507, 1e-05
    %v2510 = vadd.f32 %v2508, 1e-05
    %v2511 = vrsqrt.pop %v2509
    %v2512 = vrsqrt.pop %v2510
    %v2513 = vmul.f32 %v2497, %v2511
    %v2514 = vmul.f32 %v2498, %v2512
    %v2516 = vlaneseq
    %v2517 = vshrl.u32 %v2516, 7
    %v2518 = vsub.s32 0, %v2517
    %v2519 = vrot.slane %v2486, %v2518
    %v2521 = vmul.f32 %v2513, %v2519
    %v2522 = vmul.f32 %v2514, %v2519
    %v2524 = vlaneseq
    %v2525 = vshrl.u32 %v2524, 7
    %v2526 = vsub.s32 0, %v2525
    %v2527 = vrot.slane %v2488, %v2526
    %v2529 = vadd.f32 %v2521, %v2527
    %v2530 = vadd.f32 %v2522, %v2527
    %s2531 = scalar_lea.vmem %s12, 32
    %v2532 = vld [vmem:[%s2531] sm:$0xff]
    %v2533 = vld [vmem:[%s2531 + $0x8] sm:$0xff]
    %v2534 = vld [vmem:[%s2531 + $0x10] sm:$0xff]
    %v2535 = vld [vmem:[%s2531 + $0x18] sm:$0xff]
    %s2536 = scalar_lea.vmem %s13, 1
    %v2537 = vld [vmem:[%s2536] sm:$0x1]
    %v2539 = vlaneseq
    %v2540 = vshrl.u32 %v2539, 7
    %v2541 = vsub.s32 0, %v2540
    %v2542 = vrot.slane %v2537, %v2541
    %v2545 = vsel %vm78, %v2529, 0
    %v2548 = vsel %vm78, %v2530, 0
    %2550 = vmatprep.subr.mxu0 0.0
    %2551 = vmatpush1.msra.mxu0 0.0
    %2552 = vmatprep.subr.mxu0 0.0
    %2553 = vmatpush1.msra.mxu0 0.0
    %2554 = vmatprep.subr.mxu0 0.0
    %2555 = vmatpush1.msra.mxu0 0.0
    %2556 = vmatprep.subr.mxu0 0.0
    %2557 = vmatpush1.msra.mxu0 0.0
    %2558 = vmatprep.subr.mxu0 0.0
    %2559 = vmatpush1.msra.mxu0 0.0
    %2560 = vmatprep.subr.mxu0 0.0
    %2561 = vmatpush1.msra.mxu0 0.0
    %2562 = vmatprep.subr.mxu0 0.0
    %2563 = vmatpush1.msra.mxu0 0.0
    %2564 = vmatprep.subr.mxu0 0.0
    %2565 = vmatpush1.msra.mxu0 0.0
    %2566 = vmatprep.subr.mxu0 0.0
    %2567 = vmatpush1.msra.mxu0 0.0
    %2568 = vmatprep.subr.mxu0 0.0
    %2569 = vmatpush1.msra.mxu0 0.0
    %2570 = vmatprep.subr.mxu0 0.0
    %2571 = vmatpush1.msra.mxu0 0.0
    %2572 = vmatprep.subr.mxu0 0.0
    %2573 = vmatpush1.msra.mxu0 0.0
    %2574 = vmatprep.subr.mxu0 0.0
    %2575 = vmatpush1.msra.mxu0 %v2535
    %2576 = vmatprep.subr.mxu0 0.0
    %2577 = vmatpush1.msra.mxu0 %v2534
    %2578 = vmatprep.subr.mxu0 0.0
    %2579 = vmatpush1.msra.mxu0 %v2533
    %2580 = vmatprep.subr.mxu0 0.0
    %2581 = vmatpush1.msra.mxu0 %v2532
    %2582 = vmatprep.subr.mxu0 0.0
    %2583 = vmatpush2.msra.mxu0 0.0
    %2584 = vmatprep.subr.mxu0 0.0
    %2585 = vmatpush2.msra.mxu0 0.0
    %2586 = vmatprep.subr.mxu0 0.0
    %2587 = vmatpush2.msra.mxu0 0.0
    %2588 = vmatprep.subr.mxu0 0.0
    %2589 = vmatpush2.msra.mxu0 0.0
    %2590 = vmatprep.subr.mxu0 0.0
    %2591 = vmatpush2.msra.mxu0 0.0
    %2592 = vmatprep.subr.mxu0 0.0
    %2593 = vmatpush2.msra.mxu0 0.0
    %2594 = vmatprep.subr.mxu0 0.0
    %2595 = vmatpush2.msra.mxu0 0.0
    %2596 = vmatprep.subr.mxu0 0.0
    %2597 = vmatpush2.msra.mxu0 0.0
    %2598 = vmatprep.subr.mxu0 0.0
    %2599 = vmatpush2.msra.mxu0 0.0
    %2600 = vmatprep.subr.mxu0 0.0
    %2601 = vmatpush2.msra.mxu0 0.0
    %2602 = vmatprep.subr.mxu0 0.0
    %2603 = vmatpush2.msra.mxu0 0.0
    %2604 = vmatprep.subr.mxu0 0.0
    %2605 = vmatpush2.msra.mxu0 0.0
    %2606 = vmatprep.subr.mxu0 0.0
    %2607 = vmatpush2.msra.mxu0 0.0
    %2608 = vmatprep.subr.mxu0 0.0
    %2609 = vmatpush2.msra.mxu0 0.0
    %2610 = vmatprep.subr.mxu0 0.0
    %2611 = vmatpush2.msra.mxu0 0.0
    %2612 = vmatprep.subr.mxu0 0.0
    %2613 = vmatpush2.msra.mxu0 0.0
    %2614 = vmatprep.mubr.f32.mxu0 0.0
    %2615 = vmatmul.mubr.f32.gmra.mxu0 %v2545
    %v2616 = vpop.f32.mrf.mxu0
    %v2617 = vadd.f32 %v2542, %v2616
    %v2618 = vpop.f32.mrf.mxu0
    %2619 = vmatprep.mubr.f32.mxu0 0.0
    %2620 = vmatmul.mubr.f32.gmra.mxu0 %v2548
    %v2621 = vpop.f32.mrf.mxu0
    %v2622 = vadd.f32 %v2542, %v2621
    %v2623 = vpop.f32.mrf.mxu0
    %2624 = vdwg.mxu0
    %v2625 = vmax.f32 %v2617, 0.0
    %v2626 = vmax.f32 %v2622, 0.0
    %s2627 = scalar_lea.vmem %s14, 64
    %v2628 = vld [vmem:[%s2627] sm:$0xff]
    %v2629 = vld [vmem:[%s2627 + $0x8] sm:$0xff]
    %v2630 = vld [vmem:[%s2627 + $0x10] sm:$0xff]
    %v2631 = vld [vmem:[%s2627 + $0x18] sm:$0xff]
    %v2632 = vld [vmem:[%s2627 + $0x20] sm:$0xff]
    %v2633 = vld [vmem:[%s2627 + $0x28] sm:$0xff]
    %v2634 = vld [vmem:[%s2627 + $0x30] sm:$0xff]
    %v2635 = vld [vmem:[%s2627 + $0x38] sm:$0xff]
    %s2636 = scalar_lea.vmem %s15, 1
    %v2637 = vld [vmem:[%s2636] sm:$0x1]
    %v2639 = vlaneseq
    %v2640 = vshrl.u32 %v2639, 7
    %v2641 = vsub.s32 0, %v2640
    %v2642 = vrot.slane %v2637, %v2641
    %v2645 = vsel %vm1339, %v2625, 0
    %v2648 = vsel %vm1339, %v2626, 0
    %2650 = vmatprep.subr.mxu0 0.0
    %2651 = vmatpush1.msra.mxu0 0.0
    %2652 = vmatprep.subr.mxu0 0.0
    %2653 = vmatpush1.msra.mxu0 0.0
    %2654 = vmatprep.subr.mxu0 0.0
    %2655 = vmatpush1.msra.mxu0 0.0
    %2656 = vmatprep.subr.mxu0 0.0
    %2657 = vmatpush1.msra.mxu0 0.0
    %2658 = vmatprep.subr.mxu0 0.0
    %2659 = vmatpush1.msra.mxu0 0.0
    %2660 = vmatprep.subr.mxu0 0.0
    %2661 = vmatpush1.msra.mxu0 0.0
    %2662 = vmatprep.subr.mxu0 0.0
    %2663 = vmatpush1.msra.mxu0 0.0
    %2664 = vmatprep.subr.mxu0 0.0
    %2665 = vmatpush1.msra.mxu0 0.0
    %2666 = vmatprep.subr.mxu0 0.0
    %2667 = vmatpush1.msra.mxu0 %v2635
    %2668 = vmatprep.subr.mxu0 0.0
    %2669 = vmatpush1.msra.mxu0 %v2634
    %2670 = vmatprep.subr.mxu0 0.0
    %2671 = vmatpush1.msra.mxu0 %v2633
    %2672 = vmatprep.subr.mxu0 0.0
    %2673 = vmatpush1.msra.mxu0 %v2632
    %2674 = vmatprep.subr.mxu0 0.0
    %2675 = vmatpush1.msra.mxu0 %v2631
    %2676 = vmatprep.subr.mxu0 0.0
    %2677 = vmatpush1.msra.mxu0 %v2630
    %2678 = vmatprep.subr.mxu0 0.0
    %2679 = vmatpush1.msra.mxu0 %v2629
    %2680 = vmatprep.subr.mxu0 0.0
    %2681 = vmatpush1.msra.mxu0 %v2628
    %2682 = vmatprep.subr.mxu0 0.0
    %2683 = vmatpush2.msra.mxu0 0.0
    %2684 = vmatprep.subr.mxu0 0.0
    %2685 = vmatpush2.msra.mxu0 0.0
    %2686 = vmatprep.subr.mxu0 0.0
    %2687 = vmatpush2.msra.mxu0 0.0
    %2688 = vmatprep.subr.mxu0 0.0
    %2689 = vmatpush2.msra.mxu0 0.0
    %2690 = vmatprep.subr.mxu0 0.0
    %2691 = vmatpush2.msra.mxu0 0.0
    %2692 = vmatprep.subr.mxu0 0.0
    %2693 = vmatpush2.msra.mxu0 0.0
    %2694 = vmatprep.subr.mxu0 0.0
    %2695 = vmatpush2.msra.mxu0 0.0
    %2696 = vmatprep.subr.mxu0 0.0
    %2697 = vmatpush2.msra.mxu0 0.0
    %2698 = vmatprep.subr.mxu0 0.0
    %2699 = vmatpush2.msra.mxu0 0.0
    %2700 = vmatprep.subr.mxu0 0.0
    %2701 = vmatpush2.msra.mxu0 0.0
    %2702 = vmatprep.subr.mxu0 0.0
    %2703 = vmatpush2.msra.mxu0 0.0
    %2704 = vmatprep.subr.mxu0 0.0
    %2705 = vmatpush2.msra.mxu0 0.0
    %2706 = vmatprep.subr.mxu0 0.0
    %2707 = vmatpush2.msra.mxu0 0.0
    %2708 = vmatprep.subr.mxu0 0.0
    %2709 = vmatpush2.msra.mxu0 0.0
    %2710 = vmatprep.subr.mxu0 0.0
    %2711 = vmatpush2.msra.mxu0 0.0
    %2712 = vmatprep.subr.mxu0 0.0
    %2713 = vmatpush2.msra.mxu0 0.0
    %2714 = vmatprep.mubr.f32.mxu0 0.0
    %2715 = vmatmul.mubr.f32.gmra.mxu0 %v2645
    %v2716 = vpop.f32.mrf.mxu0
    %v2717 = vadd.f32 %v2642, %v2716
    %v2718 = vpop.f32.mrf.mxu0
    %2719 = vmatprep.mubr.f32.mxu0 0.0
    %2720 = vmatmul.mubr.f32.gmra.mxu0 %v2648
    %v2721 = vpop.f32.mrf.mxu0
    %v2722 = vadd.f32 %v2642, %v2721
    %v2723 = vpop.f32.mrf.mxu0
    %2724 = vdwg.mxu0
    %v2725 = vadd.f32 %v2529, %v2717
    %v2726 = vadd.f32 %v2530, %v2722
    %s2727 = scalar_lea.vmem %s10, 1
    %v2728 = vld [vmem:[%s2727] sm:$0x1]
    %s2729 = scalar_lea.vmem %s11, 1
    %v2730 = vld [vmem:[%s2729] sm:$0x1]
    %v2731 = vsel %vm78, %v2725, 0.0
    %2732 = vadd.xlane.f32.xlu0 %v2731
    %v2733 = vpop.xlane.xlu0 %2732
    %v2734 = vsel %vm78, %v2726, 0.0
    %2735 = vadd.xlane.f32.xlu0 %v2734
    %v2736 = vpop.xlane.xlu0 %2735
    %v2737 = vmul.f32 %v2733, %v1193
    %v2738 = vmul.f32 %v2736, %v1193
    %v2739 = vsub.f32 %v2725, %v2737
    %v2740 = vsub.f32 %v2726, %v2738
    %v2741 = vmul.f32 %v2739, %v2739
    %v2742 = vmul.f32 %v2740, %v2740
    %v2743 = vsel %vm78, %v2741, 0.0
    %2744 = vadd.xlane.f32.xlu0 %v2743
    %v2745 = vpop.xlane.xlu0 %2744
    %v2746 = vsel %vm78, %v2742, 0.0
    %2747 = vadd.xlane.f32.xlu0 %v2746
    %v2748 = vpop.xlane.xlu0 %2747
    %v2749 = vmul.f32 %v2745, %v1193
    %v2750 = vmul.f32 %v2748, %v1193
    %v2751 = vadd.f32 %v2749, 1e-05
    %v2752 = vadd.f32 %v2750, 1e-05
    %v2753 = vrsqrt.pop %v2751
    %v2754 = vrsqrt.pop %v2752
    %v2755 = vmul.f32 %v2739, %v2753
    %v2756 = vmul.f32 %v2740, %v2754
    %v2758 = vlaneseq
    %v2759 = vshrl.u32 %v2758, 7
    %v2760 = vsub.s32 0, %v2759
    %v2761 = vrot.slane %v2728, %v2760
    %v2763 = vmul.f32 %v2755, %v2761
    %v2764 = vmul.f32 %v2756, %v2761
    %v2766 = vlaneseq
    %v2767 = vshrl.u32 %v2766, 7
    %v2768 = vsub.s32 0, %v2767
    %v2769 = vrot.slane %v2730, %v2768
    %v2771 = vadd.f32 %v2763, %v2769
    %v2772 = vadd.f32 %v2764, %v2769
    %v2773 = vld [vmem:[%s16] sm:$0xff]
    %v2774 = vld [vmem:[%s16 + $0x8] sm:$0xff]
    %v2775 = vld [vmem:[%s16 + $0x10] sm:$0xff]
    %v2776 = vld [vmem:[%s16 + $0x18] sm:$0xff]
    %v2777 = vld [vmem:[%s17] sm:$0x1]
    %v2779 = vlaneseq
    %v2780 = vshrl.u32 %v2779, 7
    %v2781 = vsub.s32 0, %v2780
    %v2782 = vrot.slane %v2777, %v2781
    %v2785 = vsel %vm78, %v2771, 0
    %v2788 = vsel %vm78, %v2772, 0
    %2790 = vmatprep.subr.mxu0 0.0
    %2791 = vmatpush1.msra.mxu0 0.0
    %2792 = vmatprep.subr.mxu0 0.0
    %2793 = vmatpush1.msra.mxu0 0.0
    %2794 = vmatprep.subr.mxu0 0.0
    %2795 = vmatpush1.msra.mxu0 0.0
    %2796 = vmatprep.subr.mxu0 0.0
    %2797 = vmatpush1.msra.mxu0 0.0
    %2798 = vmatprep.subr.mxu0 0.0
    %2799 = vmatpush1.msra.mxu0 0.0
    %2800 = vmatprep.subr.mxu0 0.0
    %2801 = vmatpush1.msra.mxu0 0.0
    %2802 = vmatprep.subr.mxu0 0.0
    %2803 = vmatpush1.msra.mxu0 0.0
    %2804 = vmatprep.subr.mxu0 0.0
    %2805 = vmatpush1.msra.mxu0 0.0
    %2806 = vmatprep.subr.mxu0 0.0
    %2807 = vmatpush1.msra.mxu0 0.0
    %2808 = vmatprep.subr.mxu0 0.0
    %2809 = vmatpush1.msra.mxu0 0.0
    %2810 = vmatprep.subr.mxu0 0.0
    %2811 = vmatpush1.msra.mxu0 0.0
    %2812 = vmatprep.subr.mxu0 0.0
    %2813 = vmatpush1.msra.mxu0 0.0
    %2814 = vmatprep.subr.mxu0 0.0
    %2815 = vmatpush1.msra.mxu0 %v2776
    %2816 = vmatprep.subr.mxu0 0.0
    %2817 = vmatpush1.msra.mxu0 %v2775
    %2818 = vmatprep.subr.mxu0 0.0
    %2819 = vmatpush1.msra.mxu0 %v2774
    %2820 = vmatprep.subr.mxu0 0.0
    %2821 = vmatpush1.msra.mxu0 %v2773
    %2822 = vmatprep.subr.mxu0 0.0
    %2823 = vmatpush2.msra.mxu0 0.0
    %2824 = vmatprep.subr.mxu0 0.0
    %2825 = vmatpush2.msra.mxu0 0.0
    %2826 = vmatprep.subr.mxu0 0.0
    %2827 = vmatpush2.msra.mxu0 0.0
    %2828 = vmatprep.subr.mxu0 0.0
    %2829 = vmatpush2.msra.mxu0 0.0
    %2830 = vmatprep.subr.mxu0 0.0
    %2831 = vmatpush2.msra.mxu0 0.0
    %2832 = vmatprep.subr.mxu0 0.0
    %2833 = vmatpush2.msra.mxu0 0.0
    %2834 = vmatprep.subr.mxu0 0.0
    %2835 = vmatpush2.msra.mxu0 0.0
    %2836 = vmatprep.subr.mxu0 0.0
    %2837 = vmatpush2.msra.mxu0 0.0
    %2838 = vmatprep.subr.mxu0 0.0
    %2839 = vmatpush2.msra.mxu0 0.0
    %2840 = vmatprep.subr.mxu0 0.0
    %2841 = vmatpush2.msra.mxu0 0.0
    %2842 = vmatprep.subr.mxu0 0.0
    %2843 = vmatpush2.msra.mxu0 0.0
    %2844 = vmatprep.subr.mxu0 0.0
    %2845 = vmatpush2.msra.mxu0 0.0
    %2846 = vmatprep.subr.mxu0 0.0
    %2847 = vmatpush2.msra.mxu0 0.0
    %2848 = vmatprep.subr.mxu0 0.0
    %2849 = vmatpush2.msra.mxu0 0.0
    %2850 = vmatprep.subr.mxu0 0.0
    %2851 = vmatpush2.msra.mxu0 0.0
    %2852 = vmatprep.subr.mxu0 0.0
    %2853 = vmatpush2.msra.mxu0 0.0
    %2854 = vmatprep.mubr.f32.mxu0 0.0
    %2855 = vmatmul.mubr.f32.gmra.mxu0 %v2785
    %v2856 = vpop.f32.mrf.mxu0
    %v2857 = vadd.f32 %v2782, %v2856
    %v2858 = vpop.f32.mrf.mxu0
    %2859 = vmatprep.mubr.f32.mxu0 0.0
    %2860 = vmatmul.mubr.f32.gmra.mxu0 %v2788
    %v2861 = vpop.f32.mrf.mxu0
    %v2862 = vadd.f32 %v2782, %v2861
    %v2863 = vpop.f32.mrf.mxu0
    %2864 = vdwg.mxu0
    %2865 = vst.msk [vmem:[#allocation2] sm:$0xff] %vm78, %v2857
    %2866 = vst.msk [vmem:[#allocation2 + $0x8] sm:$0xff] %vm78, %v2862
    // Predicated region
    $region74: #{transformer_model_forward.1} parent=1 // pred_check
      _
    $region75: #{transformer_model_forward.1} parent=1 // pred_check_branch
      %2868 = sbr.rel (0) target = $region77
    $region76: #{transformer_model_forward.1} parent=1 // pred_region
      %s2870 = ssub.s32 256, 256
      %2871 = vsyncadd [#allocation3], %s2870
      %s2872 = sshll.u32 [#allocation2], 4
      %s2873 = int_to_ptr.vmem [resolvable:$true] %s2872
      %2878 = dma.vmem_to_hbm [thread:$0]  %s2873, 256, %s18, [#allocation3], 128, 128, 8
    $region77: #{transformer_model_forward.1} parent=1 // pred_fallthru
      _
    // Predicated region
    $region78: #{transformer_model_forward.1} parent=1 // pred_check
      _
    $region79: #{transformer_model_forward.1} parent=1 // pred_check_branch
      %2880 = sbr.rel (0) target = $region81
    $region80: #{transformer_model_forward.1} parent=1 // pred_region
      %2881 = dma.done [#allocation3], 256
    $region81: #{transformer_model_forward.1} parent=1 // pred_fallthru
      _
    %2882 = vsyncpa [#allocation3], 1

</llo_original>
